<compile_context>
chip_gen: v5e
topology: v5e:2x2
jax: 0.10.0
libtpu: 0.0.40
codegen_flags: <defaults>
</compile_context>

<pallas_src>
import functools

import jax
import jax.numpy as jnp
from jax.experimental import pallas as pl
from jax.experimental.pallas import tpu as pltpu


# ---------------------------------------------------------------------------
# Fused kernel: 1x1 conv (2C -> C)  +  ConvLSTM cell with zero initial state.
# Grid is over the batch dimension; each grid step processes one image.
# ---------------------------------------------------------------------------
def _fused_convlstm_kernel(x_ref, w1_ref, b1_ref, wl_ref, bl_ref,
                           h_out_ref, c_out_ref, y_pad_ref,
                           *, H, W, C, h_chunk):
    # x_ref    : (1, H*W, 2C)   bf16  input (NHWC, spatially flattened)
    # w1_ref   : (2C, C)        bf16  1x1-conv weight
    # b1_ref   : (1, C)         f32   1x1-conv bias
    # wl_ref   : (9, C, 3C)     bf16  3x3 LSTM conv taps (x-half only, f-gate dropped)
    # bl_ref   : (1, 3C)        f32   LSTM conv bias (i, o, g columns)
    # h_out_ref: (1, H*W, C)    f32
    # c_out_ref: (1, H*W, C)    f32
    # y_pad_ref: (H+2, W+2, C)  f32   zero-padded 1x1-conv output (VMEM scratch)
    n_chunks = H // h_chunk
    rows = h_chunk * W

    # The halo ring must be exactly 0 every grid step: padding happens AFTER the
    # conv bias, and with a "parallel" batch grid each core owns its own scratch,
    # so a zero-once-at-step-0 scheme would be unsafe.
    y_pad_ref[...] = jnp.zeros_like(y_pad_ref)

    def _aligned(val, mult):
        return val if isinstance(val, int) else pl.multiple_of(val, mult)

    # ---- fused 1x1 conv: y = x @ w1 + b1 (bf16 MXU, f32 acc), chunk by chunk ----
    def conv1x1_chunk(ci):
        r0 = _aligned(ci * rows, rows)
        y = jnp.dot(x_ref[0, pl.ds(r0, rows), :], w1_ref[...],
                    preferred_element_type=jnp.float32) + b1_ref[...]
        y_pad_ref[pl.ds(ci * h_chunk + 1, h_chunk), pl.ds(1, W), :] = (
            y.reshape(h_chunk, W, C))

    # ---- 3x3 ConvLSTM gates + cell update for one chunk of H rows ----
    def cell_chunk(ci):
        r0 = ci * h_chunk
        acc = jnp.zeros((rows, 3 * C), jnp.float32)
        for dy in range(3):
            rows_blk = y_pad_ref[pl.ds(r0 + dy, h_chunk), :, :]   # (h_chunk, W+2, C)
            for dx in range(3):
                slab = rows_blk[:, dx:dx + W, :].reshape(rows, C)
                acc = acc + jnp.dot(slab.astype(wl_ref.dtype),
                                    wl_ref[dy * 3 + dx],
                                    preferred_element_type=jnp.float32)
        gates = acc + bl_ref[...]                                  # (rows, 3C) f32
        # h0 == 0 (x-weights only above); c0 == 0 -> f-gate already dropped.
        i_g = jax.nn.sigmoid(gates[:, 0 * C:1 * C])
        o_g = jax.nn.sigmoid(gates[:, 1 * C:2 * C])
        g_g = jnp.tanh(gates[:, 2 * C:3 * C])
        c_n = i_g * g_g                                            # c1 = f*0 + i*g
        h_n = o_g * jnp.tanh(c_n)

        out0 = _aligned(ci * rows, rows)
        h_out_ref[0, pl.ds(out0, rows), :] = h_n
        c_out_ref[0, pl.ds(out0, rows), :] = c_n

    if n_chunks <= 8:
        # Short, static trip count: unroll so the scheduler sees everything.
        for ci in range(n_chunks):
            conv1x1_chunk(ci)
        for ci in range(n_chunks):
            cell_chunk(ci)
    else:
        @pl.loop(0, n_chunks)
        def _(ci):
            conv1x1_chunk(ci)

        @pl.loop(0, n_chunks)
        def _(ci):
            cell_chunk(ci)


def _pick_h_chunk(H, W, C):
    # Largest divisor of H whose (rows, 3C) f32 gate accumulator fits ~256 KiB,
    # so the gate math stays near the vreg budget instead of bouncing through VMEM.
    budget = 256 * 1024
    best = 1
    for cand in range(1, H + 1):
        if H % cand == 0 and cand * W * 3 * C * 4 <= budget:
            best = cand
    return best


# ---------------------------------------------------------------------------
# Module forward (glue in plain JAX; everything heavy is in the fused kernel).
# ---------------------------------------------------------------------------
@jax.jit
def conv_lstm_forward(x_nchw, params):
    B, C2, H, W = x_nchw.shape
    C = C2 // 2
    h_chunk = _pick_h_chunk(H, W, C)

    # NCHW -> NHWC, flatten spatially; bf16 for the MXU matmul inputs.
    x = jnp.transpose(x_nchw, (0, 2, 3, 1)).reshape(B, H * W, C2)
    x = x.astype(jnp.bfloat16)
    w1 = params["w1"].astype(jnp.bfloat16)                      # (2C, C)
    b1 = params["b1"].reshape(1, C).astype(jnp.float32)

    # h0 == 0: the hidden half of the LSTM conv weight never contributes.
    w_x = params["w_lstm"][:, :C, :]                            # (9, C, 4C)
    # c0 == 0: sigmoid(f)*c0 == 0, so drop the forget-gate columns -> (i, o, g).
    wl = jnp.concatenate([w_x[:, :, 0 * C:1 * C],
                          w_x[:, :, 2 * C:3 * C],
                          w_x[:, :, 3 * C:4 * C]], axis=-1).astype(jnp.bfloat16)
    b_l = params["b_lstm"]
    bl = jnp.concatenate([b_l[0 * C:1 * C], b_l[2 * C:3 * C],
                          b_l[3 * C:4 * C]]).reshape(1, 3 * C).astype(jnp.float32)

    kernel = functools.partial(_fused_convlstm_kernel,
                               H=H, W=W, C=C, h_chunk=h_chunk)

    h_flat, c_flat = pl.pallas_call(
        kernel,
        out_shape=(jax.ShapeDtypeStruct((B, H * W, C), jnp.float32),
                   jax.ShapeDtypeStruct((B, H * W, C), jnp.float32)),
        grid_spec=pltpu.PrefetchScalarGridSpec(
            num_scalar_prefetch=0,
            grid=(B,),
            in_specs=[
                pl.BlockSpec((1, H * W, C2), lambda b: (b, 0, 0)),
                pl.BlockSpec((C2, C), lambda b: (0, 0)),
                pl.BlockSpec((1, C), lambda b: (0, 0)),
                pl.BlockSpec((9, C, 3 * C), lambda b: (0, 0, 0)),
                pl.BlockSpec((1, 3 * C), lambda b: (0, 0)),
            ],
            out_specs=[
                pl.BlockSpec((1, H * W, C), lambda b: (b, 0, 0)),
                pl.BlockSpec((1, H * W, C), lambda b: (b, 0, 0)),
            ],
            scratch_shapes=[pltpu.VMEM((H + 2, W + 2, C), jnp.float32)],
        ),
        compiler_params=pltpu.CompilerParams(
            dimension_semantics=("parallel",)),
    )(x, w1, b1, wl, bl)

    # Back to PyTorch conventions: (B, C, H, W) and (B, T=1, C, H, W).
    h_nchw = jnp.transpose(h_flat.reshape(B, H, W, C), (0, 3, 1, 2))
    c_nchw = jnp.transpose(c_flat.reshape(B, H, W, C), (0, 3, 1, 2))
    layer_output = h_nchw[:, None]
    # canonical ConvLSTM return: (layer_output_list, last_state_list)
    return (layer_output,), ((h_nchw, c_nchw),)


# ---------------------------------------------------------------------------
# Pure-JAX reference (full semantics incl. zero h0/c0 and the f-gate) using the
# same bf16-inputs / f32-accumulate recipe, for a tight correctness check.
# ---------------------------------------------------------------------------
def _reference(x_nchw, params):
    B, C2, H, W = x_nchw.shape
    C = C2 // 2
    x = jnp.transpose(x_nchw, (0, 2, 3, 1)).astype(jnp.bfloat16)
    w1 = params["w1"].astype(jnp.bfloat16)
    y = jnp.einsum("bhwc,cd->bhwd", x, w1,
                   preferred_element_type=jnp.float32) + params["b1"]
    h0 = jnp.zeros((B, H, W, C), jnp.float32)
    combined = jnp.concatenate([y, h0], axis=-1)
    cp = jnp.pad(combined, ((0, 0), (1, 1), (1, 1), (0, 0)))
    wl = params["w_lstm"].astype(jnp.bfloat16)
    gates = jnp.zeros((B, H, W, 4 * C), jnp.float32)
    for dy in range(3):
        for dx in range(3):
            gates = gates + jnp.einsum(
                "bhwc,cd->bhwd",
                cp[:, dy:dy + H, dx:dx + W, :].astype(jnp.bfloat16),
                wl[dy * 3 + dx], preferred_element_type=jnp.float32)
    gates = gates + params["b_lstm"]
    i = jax.nn.sigmoid(gates[..., 0 * C:1 * C])
    f = jax.nn.sigmoid(gates[..., 1 * C:2 * C])
    o = jax.nn.sigmoid(gates[..., 2 * C:3 * C])
    g = jnp.tanh(gates[..., 3 * C:4 * C])
    c0 = jnp.zeros((B, H, W, C), jnp.float32)
    c1 = f * c0 + i * g
    h1 = o * jnp.tanh(c1)
    return jnp.transpose(h1, (0, 3, 1, 2)), jnp.transpose(c1, (0, 3, 1, 2))


if __name__ == "__main__":
    # Small shapes: channel=32 => the module input has 2*channel = 64 channels.
    B, C, H, W = 2, 32, 16, 16
    key = jax.random.PRNGKey(0)
    k0, k1, k2, k3, k4 = jax.random.split(key, 5)

    x = jax.random.normal(k0, (B, 2 * C, H, W), jnp.float32)

    params = {
        # Conv2d(2C, C, kernel_size=1): weight stored as a (2C, C) matmul matrix.
        "w1": jax.random.normal(k1, (2 * C, C), jnp.float32) * 0.05,
        "b1": jax.random.normal(k2, (C,), jnp.float32) * 0.05,
        # ConvLSTM cell conv: Conv2d(2C, 4C, k=3, pad=1) -> (9, 2C, 4C) taps,
        # tap index = dy*3 + dx.
        "w_lstm": jax.random.normal(k3, (9, 2 * C, 4 * C), jnp.float32) * 0.05,
        "b_lstm": jax.random.normal(k4, (4 * C,), jnp.float32) * 0.05,
    }

    (layer_out,), ((h1, c1),) = conv_lstm_forward(x, params)
    jax.block_until_ready((layer_out, h1, c1))

    h_ref, c_ref = _reference(x, params)
    assert layer_out.shape == (B, 1, C, H, W)
    assert jnp.allclose(h1, h_ref, atol=2e-3, rtol=2e-3)
    assert jnp.allclose(c1, c_ref, atol=2e-3, rtol=2e-3)

    print("KERNEL_OK")
</pallas_src>

<mosaic_0001>
module attributes {stable_mosaic.version = 11 : i64} {
  func.func @_fused_convlstm_kernel(%arg0: i32, %arg1: memref<1x256x64xbf16, #tpu.memory_space<vmem>>, %arg2: memref<64x32xbf16, #tpu.memory_space<vmem>>, %arg3: memref<1x32xf32, #tpu.memory_space<vmem>>, %arg4: memref<9x32x96xbf16, #tpu.memory_space<vmem>>, %arg5: memref<1x96xf32, #tpu.memory_space<vmem>>, %arg6: memref<1x256x32xf32, #tpu.memory_space<vmem>>, %arg7: memref<1x256x32xf32, #tpu.memory_space<vmem>>, %arg8: memref<18x18x32xf32, #tpu.memory_space<vmem>>) attributes {dimension_semantics = [#tpu.dimension_semantics<parallel>], iteration_bounds = array<i64: 2>, scalar_prefetch = 0 : i64, scratch_operands = 1 : i64, tpu.core_type = #tpu.core_type<tc>, window_params = [{transform_indices = @transform_0, window_bounds = array<i64: 1, 256, 64>}, {pipeline_mode = #tpu.pipeline_mode<synchronous>, transform_indices = @transform_1, window_bounds = array<i64: 64, 32>}, {pipeline_mode = #tpu.pipeline_mode<synchronous>, transform_indices = @transform_2, window_bounds = array<i64: 1, 32>}, {pipeline_mode = #tpu.pipeline_mode<synchronous>, transform_indices = @transform_3, window_bounds = array<i64: 9, 32, 96>}, {pipeline_mode = #tpu.pipeline_mode<synchronous>, transform_indices = @transform_4, window_bounds = array<i64: 1, 96>}, {transform_indices = @transform_5, window_bounds = array<i64: 1, 256, 32>}, {transform_indices = @transform_6, window_bounds = array<i64: 1, 256, 32>}]} {
    %cst = arith.constant 0.000000e+00 : f32
    %0 = vector.broadcast %cst : f32 to vector<18x18x32xf32>
    %c0 = arith.constant 0 : index
    %c0_0 = arith.constant 0 : index
    %c0_1 = arith.constant 0 : index
    %1 = vector.load %arg8[%c0, %c0_0, %c0_1] : memref<18x18x32xf32, #tpu.memory_space<vmem>>, vector<18x18x32xf32>
    tpu.vector_store %arg8[%c0, %c0_0, %c0_1], %0 {strides = array<i32>} : memref<18x18x32xf32, #tpu.memory_space<vmem>>, vector<18x18x32xf32>,
    %c0_2 = arith.constant 0 : index
    %c0_3 = arith.constant 0 : index
    %c0_4 = arith.constant 0 : index
    %2 = vector.load %arg1[%c0_2, %c0_3, %c0_4] : memref<1x256x64xbf16, #tpu.memory_space<vmem>>, vector<1x256x64xbf16>
    %3 = vector.shape_cast %2 : vector<1x256x64xbf16> to vector<256x64xbf16>
    %c0_5 = arith.constant 0 : index
    %c0_6 = arith.constant 0 : index
    %4 = vector.load %arg2[%c0_5, %c0_6] : memref<64x32xbf16, #tpu.memory_space<vmem>>, vector<64x32xbf16>
    %cst_7 = arith.constant dense<0.000000e+00> : vector<256x32xf32>
    %5 = tpu.matmul %3, %4, %cst_7 {dimension_numbers = #tpu.dot_dimension_numbers<[1], [0], [0], [1], [0, 0, 1, 1], [], []>} : vector<256x64xbf16>, vector<64x32xbf16>, vector<256x32xf32> -> vector<256x32xf32>
    %c0_8 = arith.constant 0 : index
    %c0_9 = arith.constant 0 : index
    %6 = vector.load %arg3[%c0_8, %c0_9] : memref<1x32xf32, #tpu.memory_space<vmem>>, vector<1x32xf32>
    %7 = vector.broadcast %6 : vector<1x32xf32> to vector<256x32xf32>
    %8 = arith.addf %5, %7 : vector<256x32xf32>
    %9 = vector.shape_cast %8 : vector<256x32xf32> to vector<16x16x32xf32>
    %c1 = arith.constant 1 : index
    %c1_10 = arith.constant 1 : index
    %c0_11 = arith.constant 0 : index
    %10 = vector.load %arg8[%c1, %c1_10, %c0_11] : memref<18x18x32xf32, #tpu.memory_space<vmem>>, vector<16x16x32xf32>
    tpu.vector_store %arg8[%c1, %c1_10, %c0_11], %9 {strides = array<i32>} : memref<18x18x32xf32, #tpu.memory_space<vmem>>, vector<16x16x32xf32>,
    %cst_12 = arith.constant 0.000000e+00 : f32
    %11 = vector.broadcast %cst_12 : f32 to vector<256x96xf32>
    %c0_13 = arith.constant 0 : index
    %c0_14 = arith.constant 0 : index
    %c0_15 = arith.constant 0 : index
    %12 = vector.load %arg8[%c0_13, %c0_14, %c0_15] : memref<18x18x32xf32, #tpu.memory_space<vmem>>, vector<16x18x32xf32>
    %13 = vector.extract_strided_slice %12 {offsets = [0, 0, 0], sizes = [16, 16, 32], strides = [1, 1, 1]} : vector<16x18x32xf32> to vector<16x16x32xf32>
    %14 = vector.shape_cast %13 : vector<16x16x32xf32> to vector<256x32xf32>
    %15 = arith.truncf %14 : vector<256x32xf32> to vector<256x32xbf16>
    %c0_16 = arith.constant 0 : index
    %c0_17 = arith.constant 0 : index
    %c0_18 = arith.constant 0 : index
    %16 = vector.load %arg4[%c0_16, %c0_17, %c0_18] : memref<9x32x96xbf16, #tpu.memory_space<vmem>>, vector<1x32x96xbf16>
    %17 = vector.shape_cast %16 : vector<1x32x96xbf16> to vector<32x96xbf16>
    %cst_19 = arith.constant dense<0.000000e+00> : vector<256x96xf32>
    %18 = tpu.matmul %15, %17, %cst_19 {dimension_numbers = #tpu.dot_dimension_numbers<[1], [0], [0], [1], [0, 0, 1, 1], [], []>} : vector<256x32xbf16>, vector<32x96xbf16>, vector<256x96xf32> -> vector<256x96xf32>
    %19 = arith.addf %11, %18 : vector<256x96xf32>
    %20 = vector.extract_strided_slice %12 {offsets = [0, 1, 0], sizes = [16, 16, 32], strides = [1, 1, 1]} : vector<16x18x32xf32> to vector<16x16x32xf32>
    %21 = vector.shape_cast %20 : vector<16x16x32xf32> to vector<256x32xf32>
    %22 = arith.truncf %21 : vector<256x32xf32> to vector<256x32xbf16>
    %c1_20 = arith.constant 1 : index
    %c0_21 = arith.constant 0 : index
    %c0_22 = arith.constant 0 : index
    %23 = vector.load %arg4[%c1_20, %c0_21, %c0_22] : memref<9x32x96xbf16, #tpu.memory_space<vmem>>, vector<1x32x96xbf16>
    %24 = vector.shape_cast %23 : vector<1x32x96xbf16> to vector<32x96xbf16>
    %cst_23 = arith.constant dense<0.000000e+00> : vector<256x96xf32>
    %25 = tpu.matmul %22, %24, %cst_23 {dimension_numbers = #tpu.dot_dimension_numbers<[1], [0], [0], [1], [0, 0, 1, 1], [], []>} : vector<256x32xbf16>, vector<32x96xbf16>, vector<256x96xf32> -> vector<256x96xf32>
    %26 = arith.addf %19, %25 : vector<256x96xf32>
    %27 = vector.extract_strided_slice %12 {offsets = [0, 2, 0], sizes = [16, 16, 32], strides = [1, 1, 1]} : vector<16x18x32xf32> to vector<16x16x32xf32>
    %28 = vector.shape_cast %27 : vector<16x16x32xf32> to vector<256x32xf32>
    %29 = arith.truncf %28 : vector<256x32xf32> to vector<256x32xbf16>
    %c2 = arith.constant 2 : index
    %c0_24 = arith.constant 0 : index
    %c0_25 = arith.constant 0 : index
    %30 = vector.load %arg4[%c2, %c0_24, %c0_25] : memref<9x32x96xbf16, #tpu.memory_space<vmem>>, vector<1x32x96xbf16>
    %31 = vector.shape_cast %30 : vector<1x32x96xbf16> to vector<32x96xbf16>
    %cst_26 = arith.constant dense<0.000000e+00> : vector<256x96xf32>
    %32 = tpu.matmul %29, %31, %cst_26 {dimension_numbers = #tpu.dot_dimension_numbers<[1], [0], [0], [1], [0, 0, 1, 1], [], []>} : vector<256x32xbf16>, vector<32x96xbf16>, vector<256x96xf32> -> vector<256x96xf32>
    %33 = arith.addf %26, %32 : vector<256x96xf32>
    %c1_27 = arith.constant 1 : index
    %c0_28 = arith.constant 0 : index
    %c0_29 = arith.constant 0 : index
    %34 = vector.load %arg8[%c1_27, %c0_28, %c0_29] : memref<18x18x32xf32, #tpu.memory_space<vmem>>, vector<16x18x32xf32>
    %35 = vector.extract_strided_slice %34 {offsets = [0, 0, 0], sizes = [16, 16, 32], strides = [1, 1, 1]} : vector<16x18x32xf32> to vector<16x16x32xf32>
    %36 = vector.shape_cast %35 : vector<16x16x32xf32> to vector<256x32xf32>
    %37 = arith.truncf %36 : vector<256x32xf32> to vector<256x32xbf16>
    %c3 = arith.constant 3 : index
    %c0_30 = arith.constant 0 : index
    %c0_31 = arith.constant 0 : index
    %38 = vector.load %arg4[%c3, %c0_30, %c0_31] : memref<9x32x96xbf16, #tpu.memory_space<vmem>>, vector<1x32x96xbf16>
    %39 = vector.shape_cast %38 : vector<1x32x96xbf16> to vector<32x96xbf16>
    %cst_32 = arith.constant dense<0.000000e+00> : vector<256x96xf32>
    %40 = tpu.matmul %37, %39, %cst_32 {dimension_numbers = #tpu.dot_dimension_numbers<[1], [0], [0], [1], [0, 0, 1, 1], [], []>} : vector<256x32xbf16>, vector<32x96xbf16>, vector<256x96xf32> -> vector<256x96xf32>
    %41 = arith.addf %33, %40 : vector<256x96xf32>
    %42 = vector.extract_strided_slice %34 {offsets = [0, 1, 0], sizes = [16, 16, 32], strides = [1, 1, 1]} : vector<16x18x32xf32> to vector<16x16x32xf32>
    %43 = vector.shape_cast %42 : vector<16x16x32xf32> to vector<256x32xf32>
    %44 = arith.truncf %43 : vector<256x32xf32> to vector<256x32xbf16>
    %c4 = arith.constant 4 : index
    %c0_33 = arith.constant 0 : index
    %c0_34 = arith.constant 0 : index
    %45 = vector.load %arg4[%c4, %c0_33, %c0_34] : memref<9x32x96xbf16, #tpu.memory_space<vmem>>, vector<1x32x96xbf16>
    %46 = vector.shape_cast %45 : vector<1x32x96xbf16> to vector<32x96xbf16>
    %cst_35 = arith.constant dense<0.000000e+00> : vector<256x96xf32>
    %47 = tpu.matmul %44, %46, %cst_35 {dimension_numbers = #tpu.dot_dimension_numbers<[1], [0], [0], [1], [0, 0, 1, 1], [], []>} : vector<256x32xbf16>, vector<32x96xbf16>, vector<256x96xf32> -> vector<256x96xf32>
    %48 = arith.addf %41, %47 : vector<256x96xf32>
    %49 = vector.extract_strided_slice %34 {offsets = [0, 2, 0], sizes = [16, 16, 32], strides = [1, 1, 1]} : vector<16x18x32xf32> to vector<16x16x32xf32>
    %50 = vector.shape_cast %49 : vector<16x16x32xf32> to vector<256x32xf32>
    %51 = arith.truncf %50 : vector<256x32xf32> to vector<256x32xbf16>
    %c5 = arith.constant 5 : index
    %c0_36 = arith.constant 0 : index
    %c0_37 = arith.constant 0 : index
    %52 = vector.load %arg4[%c5, %c0_36, %c0_37] : memref<9x32x96xbf16, #tpu.memory_space<vmem>>, vector<1x32x96xbf16>
    %53 = vector.shape_cast %52 : vector<1x32x96xbf16> to vector<32x96xbf16>
    %cst_38 = arith.constant dense<0.000000e+00> : vector<256x96xf32>
    %54 = tpu.matmul %51, %53, %cst_38 {dimension_numbers = #tpu.dot_dimension_numbers<[1], [0], [0], [1], [0, 0, 1, 1], [], []>} : vector<256x32xbf16>, vector<32x96xbf16>, vector<256x96xf32> -> vector<256x96xf32>
    %55 = arith.addf %48, %54 : vector<256x96xf32>
    %c2_39 = arith.constant 2 : index
    %c0_40 = arith.constant 0 : index
    %c0_41 = arith.constant 0 : index
    %56 = vector.load %arg8[%c2_39, %c0_40, %c0_41] : memref<18x18x32xf32, #tpu.memory_space<vmem>>, vector<16x18x32xf32>
    %57 = vector.extract_strided_slice %56 {offsets = [0, 0, 0], sizes = [16, 16, 32], strides = [1, 1, 1]} : vector<16x18x32xf32> to vector<16x16x32xf32>
    %58 = vector.shape_cast %57 : vector<16x16x32xf32> to vector<256x32xf32>
    %59 = arith.truncf %58 : vector<256x32xf32> to vector<256x32xbf16>
    %c6 = arith.constant 6 : index
    %c0_42 = arith.constant 0 : index
    %c0_43 = arith.constant 0 : index
    %60 = vector.load %arg4[%c6, %c0_42, %c0_43] : memref<9x32x96xbf16, #tpu.memory_space<vmem>>, vector<1x32x96xbf16>
    %61 = vector.shape_cast %60 : vector<1x32x96xbf16> to vector<32x96xbf16>
    %cst_44 = arith.constant dense<0.000000e+00> : vector<256x96xf32>
    %62 = tpu.matmul %59, %61, %cst_44 {dimension_numbers = #tpu.dot_dimension_numbers<[1], [0], [0], [1], [0, 0, 1, 1], [], []>} : vector<256x32xbf16>, vector<32x96xbf16>, vector<256x96xf32> -> vector<256x96xf32>
    %63 = arith.addf %55, %62 : vector<256x96xf32>
    %64 = vector.extract_strided_slice %56 {offsets = [0, 1, 0], sizes = [16, 16, 32], strides = [1, 1, 1]} : vector<16x18x32xf32> to vector<16x16x32xf32>
    %65 = vector.shape_cast %64 : vector<16x16x32xf32> to vector<256x32xf32>
    %66 = arith.truncf %65 : vector<256x32xf32> to vector<256x32xbf16>
    %c7 = arith.constant 7 : index
    %c0_45 = arith.constant 0 : index
    %c0_46 = arith.constant 0 : index
    %67 = vector.load %arg4[%c7, %c0_45, %c0_46] : memref<9x32x96xbf16, #tpu.memory_space<vmem>>, vector<1x32x96xbf16>
    %68 = vector.shape_cast %67 : vector<1x32x96xbf16> to vector<32x96xbf16>
    %cst_47 = arith.constant dense<0.000000e+00> : vector<256x96xf32>
    %69 = tpu.matmul %66, %68, %cst_47 {dimension_numbers = #tpu.dot_dimension_numbers<[1], [0], [0], [1], [0, 0, 1, 1], [], []>} : vector<256x32xbf16>, vector<32x96xbf16>, vector<256x96xf32> -> vector<256x96xf32>
    %70 = arith.addf %63, %69 : vector<256x96xf32>
    %71 = vector.extract_strided_slice %56 {offsets = [0, 2, 0], sizes = [16, 16, 32], strides = [1, 1, 1]} : vector<16x18x32xf32> to vector<16x16x32xf32>
    %72 = vector.shape_cast %71 : vector<16x16x32xf32> to vector<256x32xf32>
    %73 = arith.truncf %72 : vector<256x32xf32> to vector<256x32xbf16>
    %c8 = arith.constant 8 : index
    %c0_48 = arith.constant 0 : index
    %c0_49 = arith.constant 0 : index
    %74 = vector.load %arg4[%c8, %c0_48, %c0_49] : memref<9x32x96xbf16, #tpu.memory_space<vmem>>, vector<1x32x96xbf16>
    %75 = vector.shape_cast %74 : vector<1x32x96xbf16> to vector<32x96xbf16>
    %cst_50 = arith.constant dense<0.000000e+00> : vector<256x96xf32>
    %76 = tpu.matmul %73, %75, %cst_50 {dimension_numbers = #tpu.dot_dimension_numbers<[1], [0], [0], [1], [0, 0, 1, 1], [], []>} : vector<256x32xbf16>, vector<32x96xbf16>, vector<256x96xf32> -> vector<256x96xf32>
    %77 = arith.addf %70, %76 : vector<256x96xf32>
    %c0_51 = arith.constant 0 : index
    %c0_52 = arith.constant 0 : index
    %78 = vector.load %arg5[%c0_51, %c0_52] : memref<1x96xf32, #tpu.memory_space<vmem>>, vector<1x96xf32>
    %79 = vector.broadcast %78 : vector<1x96xf32> to vector<256x96xf32>
    %80 = arith.addf %77, %79 : vector<256x96xf32>
    %81 = vector.extract_strided_slice %80 {offsets = [0, 0], sizes = [256, 32], strides = [1, 1]} : vector<256x96xf32> to vector<256x32xf32>
    %82 = arith.negf %81 : vector<256x32xf32>
    %83 = math.exp %82 : vector<256x32xf32>
    %cst_53 = arith.constant 1.000000e+00 : f32
    %84 = vector.broadcast %cst_53 : f32 to vector<256x32xf32>
    %85 = arith.addf %84, %83 : vector<256x32xf32>
    %86 = arith.divf %84, %85 : vector<256x32xf32>
    %87 = vector.extract_strided_slice %80 {offsets = [0, 32], sizes = [256, 32], strides = [1, 1]} : vector<256x96xf32> to vector<256x32xf32>
    %88 = arith.negf %87 : vector<256x32xf32>
    %89 = math.exp %88 : vector<256x32xf32>
    %cst_54 = arith.constant 1.000000e+00 : f32
    %90 = vector.broadcast %cst_54 : f32 to vector<256x32xf32>
    %91 = arith.addf %90, %89 : vector<256x32xf32>
    %92 = arith.divf %90, %91 : vector<256x32xf32>
    %93 = vector.extract_strided_slice %80 {offsets = [0, 64], sizes = [256, 32], strides = [1, 1]} : vector<256x96xf32> to vector<256x32xf32>
    %94 = math.tanh %93 : vector<256x32xf32>
    %95 = arith.mulf %86, %94 : vector<256x32xf32>
    %96 = math.tanh %95 : vector<256x32xf32>
    %97 = arith.mulf %92, %96 : vector<256x32xf32>
    %c0_55 = arith.constant 0 : index
    %c0_56 = arith.constant 0 : index
    %c0_57 = arith.constant 0 : index
    %98 = vector.load %arg6[%c0_55, %c0_56, %c0_57] : memref<1x256x32xf32, #tpu.memory_space<vmem>>, vector<1x256x32xf32>
    %99 = vector.shape_cast %98 : vector<1x256x32xf32> to vector<256x32xf32>
    %100 = vector.shape_cast %97 : vector<256x32xf32> to vector<1x256x32xf32>
    tpu.vector_store %arg6[%c0_55, %c0_56, %c0_57], %100 {strides = array<i32>} : memref<1x256x32xf32, #tpu.memory_space<vmem>>, vector<1x256x32xf32>,
    %c0_58 = arith.constant 0 : index
    %c0_59 = arith.constant 0 : index
    %c0_60 = arith.constant 0 : index
    %101 = vector.load %arg7[%c0_58, %c0_59, %c0_60] : memref<1x256x32xf32, #tpu.memory_space<vmem>>, vector<1x256x32xf32>
    %102 = vector.shape_cast %101 : vector<1x256x32xf32> to vector<256x32xf32>
    %103 = vector.shape_cast %95 : vector<256x32xf32> to vector<1x256x32xf32>
    tpu.vector_store %arg7[%c0_58, %c0_59, %c0_60], %103 {strides = array<i32>} : memref<1x256x32xf32, #tpu.memory_space<vmem>>, vector<1x256x32xf32>,
    return
  }
  func.func @transform_0(%arg0: i32) -> (i32, i32, i32) {
    %c0_i32 = arith.constant 0 : i32
    %c0_i32_0 = arith.constant 0 : i32
    %c0_i32_1 = arith.constant 0 : i32
    return %arg0, %c0_i32, %c0_i32_0 : i32, i32, i32
  }
  func.func @transform_1(%arg0: i32) -> (i32, i32) {
    %c0_i32 = arith.constant 0 : i32
    %c0_i32_0 = arith.constant 0 : i32
    %c0_i32_1 = arith.constant 0 : i32
    return %c0_i32, %c0_i32_0 : i32, i32
  }
  func.func @transform_2(%arg0: i32) -> (i32, i32) {
    %c0_i32 = arith.constant 0 : i32
    %c0_i32_0 = arith.constant 0 : i32
    %c0_i32_1 = arith.constant 0 : i32
    return %c0_i32, %c0_i32_0 : i32, i32
  }
  func.func @transform_3(%arg0: i32) -> (i32, i32, i32) {
    %c0_i32 = arith.constant 0 : i32
    %c0_i32_0 = arith.constant 0 : i32
    %c0_i32_1 = arith.constant 0 : i32
    %c0_i32_2 = arith.constant 0 : i32
    return %c0_i32, %c0_i32_0, %c0_i32_1 : i32, i32, i32
  }
  func.func @transform_4(%arg0: i32) -> (i32, i32) {
    %c0_i32 = arith.constant 0 : i32
    %c0_i32_0 = arith.constant 0 : i32
    %c0_i32_1 = arith.constant 0 : i32
    return %c0_i32, %c0_i32_0 : i32, i32
  }
  func.func @transform_5(%arg0: i32) -> (i32, i32, i32) {
    %c0_i32 = arith.constant 0 : i32
    %c0_i32_0 = arith.constant 0 : i32
    %c0_i32_1 = arith.constant 0 : i32
    return %arg0, %c0_i32, %c0_i32_0 : i32, i32, i32
  }
  func.func @transform_6(%arg0: i32) -> (i32, i32, i32) {
    %c0_i32 = arith.constant 0 : i32
    %c0_i32_0 = arith.constant 0 : i32
    %c0_i32_1 = arith.constant 0 : i32
    return %arg0, %c0_i32, %c0_i32_0 : i32, i32, i32
  }
}

</mosaic_0001>

<llo_original>
// kernel: conv_lstm_forward.1
$region0: #{conv_lstm_forward.1}
  #allocation0 [shape = 'u32[]', space=smem, size = 0x4, offset = 0x4, fixed_abs, tag = 'smem constant byte address 0x4 - core index']
  #allocation1 [shape = 'u32[72,128]{1,0:T(1,128)}', space=vmem, size = 0x9000, scoped, tag = 'internal scratch']
  #allocation2 [shape = 'f32[18,18,32]{2,1,0:T(8,128)}', space=vmem, size = 0x36000, scoped, tag = 'scratch operand']
  %s0 = inlined_call_operand.vmem [shape: bf16[2,256,64], index: 0, kind: input, shape index: {}]
  %s1 = inlined_call_operand.vmem [shape: bf16[64,32], index: 1, kind: input, shape index: {}]
  %s2 = inlined_call_operand.vmem [shape: f32[1,32], index: 2, kind: input, shape index: {}]
  %s3 = inlined_call_operand.vmem [shape: bf16[9,32,96], index: 3, kind: input, shape index: {}]
  %s4 = inlined_call_operand.vmem [shape: f32[1,96], index: 4, kind: input, shape index: {}]
  %s5 = inlined_call_operand.vmem [shape: f32[2,256,32], index: 5, kind: output, shape index: {0}]
  %s6 = inlined_call_operand.hbm [shape: f32[2,256,32], index: 6, kind: output, shape index: {1}]
  %7 = xla_tuple %s5, %s6
  %s8 = sld [smem:[#allocation0]]
  $region61: #{conv_lstm_forward.1} parent=0
    _
  %s10 = ssub.s32 1, %s8
  %s11 = scalar_select 0, %s10, %s8
  $region1: #{conv_lstm_forward.1} parent=0
    #allocation3 [shape = 'u8[262144]{0}', space=vmem, size = 0x40000, scoped, tag = 'output window, operand 1']
    #allocation4 [shape = 's32[2]{0}', space=sflag, size = 0x8, scoped, tag = 'scoped memory for conv_lstm_forward.1']
    %12 = vsyncpa [#allocation4], 0
    %s13 = scalar_lea.sflag [#allocation4], 1
    %14 = vsyncpa %s13, 0
    loop: start=0, step=1, limit=4
    $region2: #{conv_lstm_forward.1} parent=1 // loop_pre_header
      _
    $region3: #{conv_lstm_forward.1} parent=1 // loop_header
      %s16 = sphi 0, %s20
      %p17 = scmp.ge.s32.totalorder %s16, 4
      %s26 = sphi 0, %s28
      %s29 = sphi 0, %s26
      %s30 = sphi 0, %s29
      %s46 = sphi 0, %s30
      %s50 = sphi 0, %s50
      %s52 = sphi 0, %s50
      %s53 = sphi 0, %s52
      %s67 = sphi 0, %s53
      %s71 = sphi 0, %s71
      %s73 = sphi 0, %s71
      %s74 = sphi 0, %s73
      %s88 = sphi 0, %s74
      %s92 = sphi 0, %s92
      %s94 = sphi 0, %s92
      %s95 = sphi 0, %s94
      %s109 = sphi 0, %s95
      %s113 = sphi 0, %s113
      %s115 = sphi 0, %s113
      %s116 = sphi 0, %s115
      %s130 = sphi 0, %s116
      %s136 = sphi 0, %s138
      %s139 = sphi 0, %s136
      %s140 = sphi 0, %s139
      %s156 = sphi 0, %s140
      %s162 = sphi 0, %s164
      %s165 = sphi 0, %s162
      %s166 = sphi 0, %s165
      %s182 = sphi 0, %s166
    $region4: #{conv_lstm_forward.1} parent=1 // loop_header_branch
      %19 = sbr.rel (%p17) target = $region8
    $region5: #{conv_lstm_forward.1} parent=1 // loop_body
      %s21 = ssub.s32 %s16, 1
      %s22 = ssub.s32 %s16, 2
      %s23 = sadd.s32 %s16, 1
      %s24 = ssub.s32 %s16, %s23
      %p25 = scmp.eq.s32.totalorder %s24, 0
      %s27 = sadd.s32 %s26, 1
      %s28 = scalar_select %p25, %s26, %s27
      %p31 = pneg %p25
      %p32 = scmp.eq.s32.totalorder %s16, 1
      %p33 = por %p31, %p32
      %p34 = scmp.ne.s32.totalorder %s26, %s29
      %p35 = scmp.eq.s32.totalorder %s16, 0
      %p36 = por %p34, %p35
      %p37 = scmp.ne.s32.totalorder %s26, %s29
      %p38 = scmp.eq.s32.totalorder %s21, 1
      %p39 = por %p37, %p38
      %p40 = scmp.ne.s32.totalorder %s29, %s30
      %p41 = scmp.eq.s32.totalorder %s21, 0
      %p42 = por %p40, %p41
      %p43 = scmp.ne.s32.totalorder %s29, %s30
      %p44 = scmp.eq.s32.totalorder %s22, 1
      %p45 = por %p43, %p44
      %p47 = scmp.ne.s32.totalorder %s30, %s46
      %p48 = scmp.eq.s32.totalorder %s22, 0
      %p49 = por %p47, %p48
      %s51 = sadd.s32 %s50, 1
      %p54 = scmp.eq.s32.totalorder %s16, 1
      %p55 = scmp.ne.s32.totalorder %s50, %s52
      %p56 = scmp.eq.s32.totalorder %s16, 0
      %p57 = por %p55, %p56
      %p58 = scmp.ne.s32.totalorder %s50, %s52
      %p59 = scmp.eq.s32.totalorder %s21, 1
      %p60 = por %p58, %p59
      %p61 = scmp.ne.s32.totalorder %s52, %s53
      %p62 = scmp.eq.s32.totalorder %s21, 0
      %p63 = por %p61, %p62
      %p64 = scmp.ne.s32.totalorder %s52, %s53
      %p65 = scmp.eq.s32.totalorder %s22, 1
      %p66 = por %p64, %p65
      %p68 = scmp.ne.s32.totalorder %s53, %s67
      %p69 = scmp.eq.s32.totalorder %s22, 0
      %p70 = por %p68, %p69
      %s72 = sadd.s32 %s71, 1
      %p75 = scmp.eq.s32.totalorder %s16, 1
      %p76 = scmp.ne.s32.totalorder %s71, %s73
      %p77 = scmp.eq.s32.totalorder %s16, 0
      %p78 = por %p76, %p77
      %p79 = scmp.ne.s32.totalorder %s71, %s73
      %p80 = scmp.eq.s32.totalorder %s21, 1
      %p81 = por %p79, %p80
      %p82 = scmp.ne.s32.totalorder %s73, %s74
      %p83 = scmp.eq.s32.totalorder %s21, 0
      %p84 = por %p82, %p83
      %p85 = scmp.ne.s32.totalorder %s73, %s74
      %p86 = scmp.eq.s32.totalorder %s22, 1
      %p87 = por %p85, %p86
      %p89 = scmp.ne.s32.totalorder %s74, %s88
      %p90 = scmp.eq.s32.totalorder %s22, 0
      %p91 = por %p89, %p90
      %s93 = sadd.s32 %s92, 1
      %p96 = scmp.eq.s32.totalorder %s16, 1
      %p97 = scmp.ne.s32.totalorder %s92, %s94
      %p98 = scmp.eq.s32.totalorder %s16, 0
      %p99 = por %p97, %p98
      %p100 = scmp.ne.s32.totalorder %s92, %s94
      %p101 = scmp.eq.s32.totalorder %s21, 1
      %p102 = por %p100, %p101
      %p103 = scmp.ne.s32.totalorder %s94, %s95
      %p104 = scmp.eq.s32.totalorder %s21, 0
      %p105 = por %p103, %p104
      %p106 = scmp.ne.s32.totalorder %s94, %s95
      %p107 = scmp.eq.s32.totalorder %s22, 1
      %p108 = por %p106, %p107
      %p110 = scmp.ne.s32.totalorder %s95, %s109
      %p111 = scmp.eq.s32.totalorder %s22, 0
      %p112 = por %p110, %p111
      %s114 = sadd.s32 %s113, 1
      %p117 = scmp.eq.s32.totalorder %s16, 1
      %p118 = scmp.ne.s32.totalorder %s113, %s115
      %p119 = scmp.eq.s32.totalorder %s16, 0
      %p120 = por %p118, %p119
      %p121 = scmp.ne.s32.totalorder %s113, %s115
      %p122 = scmp.eq.s32.totalorder %s21, 1
      %p123 = por %p121, %p122
      %p124 = scmp.ne.s32.totalorder %s115, %s116
      %p125 = scmp.eq.s32.totalorder %s21, 0
      %p126 = por %p124, %p125
      %p127 = scmp.ne.s32.totalorder %s115, %s116
      %p128 = scmp.eq.s32.totalorder %s22, 1
      %p129 = por %p127, %p128
      %p131 = scmp.ne.s32.totalorder %s116, %s130
      %p132 = scmp.eq.s32.totalorder %s22, 0
      %p133 = por %p131, %p132
      %s134 = ssub.s32 %s16, %s23
      %p135 = scmp.eq.s32.totalorder %s134, 0
      %s137 = sadd.s32 %s136, 1
      %s138 = scalar_select %p135, %s136, %s137
      %p141 = pneg %p135
      %p142 = scmp.eq.s32.totalorder %s16, 1
      %p143 = por %p141, %p142
      %p144 = scmp.ne.s32.totalorder %s136, %s139
      %p145 = scmp.eq.s32.totalorder %s16, 0
      %p146 = por %p144, %p145
      %p147 = scmp.ne.s32.totalorder %s136, %s139
      %p148 = scmp.eq.s32.totalorder %s21, 1
      %p149 = por %p147, %p148
      %p150 = scmp.ne.s32.totalorder %s139, %s140
      %p151 = scmp.eq.s32.totalorder %s21, 0
      %p152 = por %p150, %p151
      %p153 = scmp.ne.s32.totalorder %s139, %s140
      %p154 = scmp.eq.s32.totalorder %s22, 1
      %p155 = por %p153, %p154
      %p157 = scmp.ne.s32.totalorder %s140, %s156
      %p158 = scmp.eq.s32.totalorder %s22, 0
      %p159 = por %p157, %p158
      %s160 = ssub.s32 %s16, %s23
      %p161 = scmp.eq.s32.totalorder %s160, 0
      %s163 = sadd.s32 %s162, 1
      %s164 = scalar_select %p161, %s162, %s163
      %p167 = pneg %p161
      %p168 = scmp.eq.s32.totalorder %s16, 1
      %p169 = por %p167, %p168
      %p170 = scmp.ne.s32.totalorder %s162, %s165
      %p171 = scmp.eq.s32.totalorder %s16, 0
      %p172 = por %p170, %p171
      %p173 = scmp.ne.s32.totalorder %s162, %s165
      %p174 = scmp.eq.s32.totalorder %s21, 1
      %p175 = por %p173, %p174
      %p176 = scmp.ne.s32.totalorder %s165, %s166
      %p177 = scmp.eq.s32.totalorder %s21, 0
      %p178 = por %p176, %p177
      %p179 = scmp.ne.s32.totalorder %s165, %s166
      %p180 = scmp.eq.s32.totalorder %s22, 1
      %p181 = por %p179, %p180
      %p183 = scmp.ne.s32.totalorder %s166, %s182
      %p184 = scmp.eq.s32.totalorder %s22, 0
      %p185 = por %p183, %p184
      %p186 = scmp.le.s32.totalorder 1, %s16
      %p187 = scmp.lt.s32.totalorder %s16, 3
      %p188 = pnand %p186, %p187
      %p189 = pneg %p188
      // Predicated region
      $region9: #{conv_lstm_forward.1} parent=5 // pred_check
        _
      $region10: #{conv_lstm_forward.1} parent=5 // pred_check_branch
        %191 = sbr.rel (%p188) target = $region12
      $region11: #{conv_lstm_forward.1} parent=5 // pred_region
        %s192 = ssub.s32 %s16, 1
        // Predicated region
        $region13: #{conv_lstm_forward.1} parent=11 // pred_check
          %p193 = pneg %p63
        $region14: #{conv_lstm_forward.1} parent=11 // pred_check_branch
          %195 = sbr.rel (%p193) target = $region16
        $region15: #{conv_lstm_forward.1} parent=11 // pred_region
          _
        $region16: #{conv_lstm_forward.1} parent=11 // pred_fallthru
          _
        // Predicated region
        $region17: #{conv_lstm_forward.1} parent=11 // pred_check
          %p196 = pneg %p84
        $region18: #{conv_lstm_forward.1} parent=11 // pred_check_branch
          %198 = sbr.rel (%p196) target = $region20
        $region19: #{conv_lstm_forward.1} parent=11 // pred_region
          _
        $region20: #{conv_lstm_forward.1} parent=11 // pred_fallthru
          _
        // Predicated region
        $region21: #{conv_lstm_forward.1} parent=11 // pred_check
          %p199 = pneg %p105
        $region22: #{conv_lstm_forward.1} parent=11 // pred_check_branch
          %201 = sbr.rel (%p199) target = $region24
        $region23: #{conv_lstm_forward.1} parent=11 // pred_region
          _
        $region24: #{conv_lstm_forward.1} parent=11 // pred_fallthru
          _
        // Predicated region
        $region25: #{conv_lstm_forward.1} parent=11 // pred_check
          %p202 = pneg %p126
        $region26: #{conv_lstm_forward.1} parent=11 // pred_check_branch
          %204 = sbr.rel (%p202) target = $region28
        $region27: #{conv_lstm_forward.1} parent=11 // pred_region
          _
        $region28: #{conv_lstm_forward.1} parent=11 // pred_fallthru
          _
      $region12: #{conv_lstm_forward.1} parent=5 // pred_fallthru
        _
      %p205 = scmp.lt.s32.totalorder %s16, 2
      // Predicated region
      $region29: #{conv_lstm_forward.1} parent=5 // pred_check
        %p206 = pneg %p205
      $region30: #{conv_lstm_forward.1} parent=5 // pred_check_branch
        %208 = sbr.rel (%p206) target = $region32
      $region31: #{conv_lstm_forward.1} parent=5 // pred_region
        // Predicated region
        $region33: #{conv_lstm_forward.1} parent=31 // pred_check
          %p209 = pneg %p36
        $region34: #{conv_lstm_forward.1} parent=31 // pred_check_branch
          %211 = sbr.rel (%p209) target = $region36
        $region35: #{conv_lstm_forward.1} parent=31 // pred_region
          %p212 = scmp.lt.s32.totalorder %s16, 1
          %s213 = scalar_select %p212, %s16, 1
          %s214 = smul.addr %s213, 32
          %s215 = smul.addr %s214, 4
          %s216 = scalar_lea.vmem %s0, %s215
        $region36: #{conv_lstm_forward.1} parent=31 // pred_fallthru
          _
      $region32: #{conv_lstm_forward.1} parent=5 // pred_fallthru
        _
      %p217 = scmp.le.s32.totalorder 1, %s16
      %p218 = scmp.lt.s32.totalorder %s16, 3
      %p219 = pnand %p217, %p218
      %p220 = pneg %p219
      // Predicated region
      $region37: #{conv_lstm_forward.1} parent=5 // pred_check
        _
      $region38: #{conv_lstm_forward.1} parent=5 // pred_check_branch
        %222 = sbr.rel (%p219) target = $region40
      $region39: #{conv_lstm_forward.1} parent=5 // pred_region
        %s223 = ssub.s32 %s16, 1
        %p224 = scmp.lt.s32.totalorder %s21, 1
        %s225 = scalar_select %p224, %s21, 1
        %s226 = smul.addr %s225, 32
        %s227 = smul.addr %s226, 4
        %s228 = scalar_lea.vmem %s0, %s227
        %p229 = pneg %p42
        %p230 = pneg %p39
        %p231 = pneg %p63
        %p232 = pneg %p60
        %p233 = pneg %p84
        %p234 = pneg %p81
        %p235 = pneg %p105
        %p236 = pneg %p102
        %p237 = pneg %p126
        %p238 = pneg %p123
        %p239 = pneg %p152
        %p240 = pneg %p149
        %p241 = scmp.lt.s32.totalorder %s21, 1
        %s242 = scalar_select %p241, %s21, 1
        %s243 = smul.addr %s242, 32
        %s244 = smul.addr %s243, 8
        %s245 = scalar_lea.vmem %s5, %s244
        %p246 = pneg %p178
        %p247 = pneg %p175
        %s248 = sand.u32 %s165, 1
        %s249 = scalar_lea.sflag [#allocation4], %s248
        %s250 = sand.u32 %s165, 1
        %s251 = smul.addr %s250, 256
        %s252 = scalar_lea.vmem [#allocation3], %s251
        %p253 = scmp.lt.s32.totalorder %s21, 1
        %s254 = scalar_select %p253, %s21, 1
        %s255 = smul.addr %s254, 32
        %s256 = smul.addr %s255, 4
        %s257 = scalar_lea.vmem %s0, %s256
        %p258 = scmp.lt.s32.totalorder %s21, 1
        %s259 = scalar_select %p258, %s21, 1
        %s260 = smul.addr %s259, 32
        %s261 = smul.addr %s260, 8
        %s262 = scalar_lea.vmem %s5, %s261
        %vm264 = vcmask 261120
        %265 = vst.msk [vmem:[#allocation2] sm:$0xff] %vm264, 0.0
        %266 = vst.msk [vmem:[#allocation2 + $0x8] sm:$0xff] %vm264, 0.0
        %vm267 = vcmask 254976
        %268 = vst.msk [vmem:[#allocation2 + $0x10] sm:$0x3] %vm267, 0.0
        %269 = vst.msk [vmem:[#allocation2 + $0x18] sm:$0xff] %vm264, 0.0
        %270 = vst.msk [vmem:[#allocation2 + $0x20] sm:$0xff] %vm264, 0.0
        %271 = vst.msk [vmem:[#allocation2 + $0x28] sm:$0x3] %vm267, 0.0
        %272 = vst.msk [vmem:[#allocation2 + $0x30] sm:$0xff] %vm264, 0.0
        %273 = vst.msk [vmem:[#allocation2 + $0x38] sm:$0xff] %vm264, 0.0
        %274 = vst.msk [vmem:[#allocation2 + $0x40] sm:$0x3] %vm267, 0.0
        %275 = vst.msk [vmem:[#allocation2 + $0x48] sm:$0xff] %vm264, 0.0
        %276 = vst.msk [vmem:[#allocation2 + $0x50] sm:$0xff] %vm264, 0.0
        %277 = vst.msk [vmem:[#allocation2 + $0x58] sm:$0x3] %vm267, 0.0
        %278 = vst.msk [vmem:[#allocation2 + $0x60] sm:$0xff] %vm264, 0.0
        %279 = vst.msk [vmem:[#allocation2 + $0x68] sm:$0xff] %vm264, 0.0
        %280 = vst.msk [vmem:[#allocation2 + $0x70] sm:$0x3] %vm267, 0.0
        %281 = vst.msk [vmem:[#allocation2 + $0x78] sm:$0xff] %vm264, 0.0
        %282 = vst.msk [vmem:[#allocation2 + $0x80] sm:$0xff] %vm264, 0.0
        %283 = vst.msk [vmem:[#allocation2 + $0x88] sm:$0x3] %vm267, 0.0
        %284 = vst.msk [vmem:[#allocation2 + $0x90] sm:$0xff] %vm264, 0.0
        %285 = vst.msk [vmem:[#allocation2 + $0x98] sm:$0xff] %vm264, 0.0
        %286 = vst.msk [vmem:[#allocation2 + $0xa0] sm:$0x3] %vm267, 0.0
        %287 = vst.msk [vmem:[#allocation2 + $0xa8] sm:$0xff] %vm264, 0.0
        %288 = vst.msk [vmem:[#allocation2 + $0xb0] sm:$0xff] %vm264, 0.0
        %289 = vst.msk [vmem:[#allocation2 + $0xb8] sm:$0x3] %vm267, 0.0
        %290 = vst.msk [vmem:[#allocation2 + $0xc0] sm:$0xff] %vm264, 0.0
        %291 = vst.msk [vmem:[#allocation2 + $0xc8] sm:$0xff] %vm264, 0.0
        %292 = vst.msk [vmem:[#allocation2 + $0xd0] sm:$0x3] %vm267, 0.0
        %293 = vst.msk [vmem:[#allocation2 + $0xd8] sm:$0xff] %vm264, 0.0
        %294 = vst.msk [vmem:[#allocation2 + $0xe0] sm:$0xff] %vm264, 0.0
        %295 = vst.msk [vmem:[#allocation2 + $0xe8] sm:$0x3] %vm267, 0.0
        %296 = vst.msk [vmem:[#allocation2 + $0xf0] sm:$0xff] %vm264, 0.0
        %297 = vst.msk [vmem:[#allocation2 + $0xf8] sm:$0xff] %vm264, 0.0
        %298 = vst.msk [vmem:[#allocation2 + $0x100] sm:$0x3] %vm267, 0.0
        %299 = vst.msk [vmem:[#allocation2 + $0x108] sm:$0xff] %vm264, 0.0
        %300 = vst.msk [vmem:[#allocation2 + $0x110] sm:$0xff] %vm264, 0.0
        %301 = vst.msk [vmem:[#allocation2 + $0x118] sm:$0x3] %vm267, 0.0
        %302 = vst.msk [vmem:[#allocation2 + $0x120] sm:$0xff] %vm264, 0.0
        %303 = vst.msk [vmem:[#allocation2 + $0x128] sm:$0xff] %vm264, 0.0
        %304 = vst.msk [vmem:[#allocation2 + $0x130] sm:$0x3] %vm267, 0.0
        %305 = vst.msk [vmem:[#allocation2 + $0x138] sm:$0xff] %vm264, 0.0
        %306 = vst.msk [vmem:[#allocation2 + $0x140] sm:$0xff] %vm264, 0.0
        %307 = vst.msk [vmem:[#allocation2 + $0x148] sm:$0x3] %vm267, 0.0
        %308 = vst.msk [vmem:[#allocation2 + $0x150] sm:$0xff] %vm264, 0.0
        %309 = vst.msk [vmem:[#allocation2 + $0x158] sm:$0xff] %vm264, 0.0
        %310 = vst.msk [vmem:[#allocation2 + $0x160] sm:$0x3] %vm267, 0.0
        %311 = vst.msk [vmem:[#allocation2 + $0x168] sm:$0xff] %vm264, 0.0
        %312 = vst.msk [vmem:[#allocation2 + $0x170] sm:$0xff] %vm264, 0.0
        %313 = vst.msk [vmem:[#allocation2 + $0x178] sm:$0x3] %vm267, 0.0
        %314 = vst.msk [vmem:[#allocation2 + $0x180] sm:$0xff] %vm264, 0.0
        %315 = vst.msk [vmem:[#allocation2 + $0x188] sm:$0xff] %vm264, 0.0
        %316 = vst.msk [vmem:[#allocation2 + $0x190] sm:$0x3] %vm267, 0.0
        %317 = vst.msk [vmem:[#allocation2 + $0x198] sm:$0xff] %vm264, 0.0
        %318 = vst.msk [vmem:[#allocation2 + $0x1a0] sm:$0xff] %vm264, 0.0
        %319 = vst.msk [vmem:[#allocation2 + $0x1a8] sm:$0x3] %vm267, 0.0
        %v320 = vld [vmem:[%s257] sm:$0xf]
        %v321 = vld [vmem:[%s257 + $0x4] sm:$0xf]
        %v322 = vld [vmem:[%s257 + $0x8] sm:$0xf]
        %v323 = vld [vmem:[%s257 + $0xc] sm:$0xf]
        %v324 = vld [vmem:[%s257 + $0x10] sm:$0xf]
        %v325 = vld [vmem:[%s257 + $0x14] sm:$0xf]
        %v326 = vld [vmem:[%s257 + $0x18] sm:$0xf]
        %v327 = vld [vmem:[%s257 + $0x1c] sm:$0xf]
        %v328 = vld [vmem:[%s257 + $0x20] sm:$0xf]
        %v329 = vld [vmem:[%s257 + $0x24] sm:$0xf]
        %v330 = vld [vmem:[%s257 + $0x28] sm:$0xf]
        %v331 = vld [vmem:[%s257 + $0x2c] sm:$0xf]
        %v332 = vld [vmem:[%s257 + $0x30] sm:$0xf]
        %v333 = vld [vmem:[%s257 + $0x34] sm:$0xf]
        %v334 = vld [vmem:[%s257 + $0x38] sm:$0xf]
        %v335 = vld [vmem:[%s257 + $0x3c] sm:$0xf]
        %v336 = vld [vmem:[%s257 + $0x40] sm:$0xf]
        %v337 = vld [vmem:[%s257 + $0x44] sm:$0xf]
        %v338 = vld [vmem:[%s257 + $0x48] sm:$0xf]
        %v339 = vld [vmem:[%s257 + $0x4c] sm:$0xf]
        %v340 = vld [vmem:[%s257 + $0x50] sm:$0xf]
        %v341 = vld [vmem:[%s257 + $0x54] sm:$0xf]
        %v342 = vld [vmem:[%s257 + $0x58] sm:$0xf]
        %v343 = vld [vmem:[%s257 + $0x5c] sm:$0xf]
        %v344 = vld [vmem:[%s257 + $0x60] sm:$0xf]
        %v345 = vld [vmem:[%s257 + $0x64] sm:$0xf]
        %v346 = vld [vmem:[%s257 + $0x68] sm:$0xf]
        %v347 = vld [vmem:[%s257 + $0x6c] sm:$0xf]
        %v348 = vld [vmem:[%s257 + $0x70] sm:$0xf]
        %v349 = vld [vmem:[%s257 + $0x74] sm:$0xf]
        %v350 = vld [vmem:[%s257 + $0x78] sm:$0xf]
        %v351 = vld [vmem:[%s257 + $0x7c] sm:$0xf]
        %v352 = vld [vmem:[%s1] sm:$0xf]
        %v353 = vld [vmem:[%s1 + $0x4] sm:$0xf]
        %v354 = vld [vmem:[%s1 + $0x8] sm:$0xf]
        %v355 = vld [vmem:[%s1 + $0xc] sm:$0xf]
        %v356 = vld [vmem:[%s1 + $0x10] sm:$0xf]
        %v357 = vld [vmem:[%s1 + $0x14] sm:$0xf]
        %v358 = vld [vmem:[%s1 + $0x18] sm:$0xf]
        %v359 = vld [vmem:[%s1 + $0x1c] sm:$0xf]
        %v360 = vld [vmem:[%s2] sm:$0x1]
        %v362 = vperm.slane %v360, 0
        %v396 = vunpack.c.l.b16 %v320
        %v397 = vunpack.c.l.b16 %v321
        %v398 = vunpack.c.l.b16 %v322
        %v399 = vunpack.c.l.b16 %v323
        %v400 = vunpack.c.l.b16 %v324
        %v401 = vunpack.c.l.b16 %v325
        %v402 = vunpack.c.l.b16 %v326
        %v403 = vunpack.c.l.b16 %v327
        %v404 = vunpack.c.l.b16 %v328
        %v405 = vunpack.c.l.b16 %v329
        %v406 = vunpack.c.l.b16 %v330
        %v407 = vunpack.c.l.b16 %v331
        %v408 = vunpack.c.l.b16 %v332
        %v409 = vunpack.c.l.b16 %v333
        %v410 = vunpack.c.l.b16 %v334
        %v411 = vunpack.c.l.b16 %v335
        %v412 = vunpack.c.l.b16 %v336
        %v413 = vunpack.c.l.b16 %v337
        %v414 = vunpack.c.l.b16 %v338
        %v415 = vunpack.c.l.b16 %v339
        %v416 = vunpack.c.l.b16 %v340
        %v417 = vunpack.c.l.b16 %v341
        %v418 = vunpack.c.l.b16 %v342
        %v419 = vunpack.c.l.b16 %v343
        %v420 = vunpack.c.l.b16 %v344
        %v421 = vunpack.c.l.b16 %v345
        %v422 = vunpack.c.l.b16 %v346
        %v423 = vunpack.c.l.b16 %v347
        %v424 = vunpack.c.l.b16 %v348
        %v425 = vunpack.c.l.b16 %v349
        %v426 = vunpack.c.l.b16 %v350
        %v427 = vunpack.c.l.b16 %v351
        %v428 = vpack.c.b16 %v397, %v396
        %v429 = vpack.c.b16 %v399, %v398
        %v430 = vpack.c.b16 %v401, %v400
        %v431 = vpack.c.b16 %v403, %v402
        %v432 = vpack.c.b16 %v405, %v404
        %v433 = vpack.c.b16 %v407, %v406
        %v434 = vpack.c.b16 %v409, %v408
        %v435 = vpack.c.b16 %v411, %v410
        %v436 = vpack.c.b16 %v413, %v412
        %v437 = vpack.c.b16 %v415, %v414
        %v438 = vpack.c.b16 %v417, %v416
        %v439 = vpack.c.b16 %v419, %v418
        %v440 = vpack.c.b16 %v421, %v420
        %v441 = vpack.c.b16 %v423, %v422
        %v442 = vpack.c.b16 %v425, %v424
        %v443 = vpack.c.b16 %v427, %v426
        %v452 = vunpack.c.l.b16 %v352
        %v453 = vunpack.c.l.b16 %v353
        %v454 = vunpack.c.l.b16 %v354
        %v455 = vunpack.c.l.b16 %v355
        %v456 = vunpack.c.l.b16 %v356
        %v457 = vunpack.c.l.b16 %v357
        %v458 = vunpack.c.l.b16 %v358
        %v459 = vunpack.c.l.b16 %v359
        %v460 = vpack.c.b16 %v453, %v452
        %v461 = vpack.c.b16 %v455, %v454
        %v462 = vpack.c.b16 %v457, %v456
        %v463 = vpack.c.b16 %v459, %v458
        %vm468 = vcmask 523264
        %v470 = vsel %vm468, %v428, 0
        %v473 = vsel %vm468, %v429, 0
        %v476 = vsel %vm468, %v430, 0
        %v479 = vsel %vm468, %v431, 0
        %v482 = vsel %vm468, %v432, 0
        %v485 = vsel %vm468, %v433, 0
        %v488 = vsel %vm468, %v434, 0
        %v491 = vsel %vm468, %v435, 0
        %v494 = vsel %vm468, %v436, 0
        %v497 = vsel %vm468, %v437, 0
        %v500 = vsel %vm468, %v438, 0
        %v503 = vsel %vm468, %v439, 0
        %v506 = vsel %vm468, %v440, 0
        %v509 = vsel %vm468, %v441, 0
        %v512 = vsel %vm468, %v442, 0
        %v515 = vsel %vm468, %v443, 0
        %517 = vmatpush.bf16.msra.mxu0 0
        %518 = vmatpush.bf16.msra.mxu0 0
        %519 = vmatpush.bf16.msra.mxu0 0
        %520 = vmatpush.bf16.msra.mxu0 0
        %521 = vmatpush.bf16.msra.mxu0 %v463
        %522 = vmatpush.bf16.msra.mxu0 %v462
        %523 = vmatpush.bf16.msra.mxu0 %v461
        %524 = vmatpush.bf16.msra.mxu0 %v460
        %525 = vmatmul.bf16.gmra.mxu0 %v470
        %v526 = vpop.f32.mrf.mxu0
        %v527 = vadd.f32 %v362, %v526
        %v528 = vpop.f32.mrf.mxu0
        %v529 = vadd.f32 %v362, %v528
        %530 = vmatmul.bf16.gmra.mxu0 %v473
        %v531 = vpop.f32.mrf.mxu0
        %v532 = vadd.f32 %v362, %v531
        %v533 = vpop.f32.mrf.mxu0
        %v534 = vadd.f32 %v362, %v533
        %535 = vmatmul.bf16.gmra.mxu0 %v476
        %v536 = vpop.f32.mrf.mxu0
        %v537 = vadd.f32 %v362, %v536
        %v538 = vpop.f32.mrf.mxu0
        %v539 = vadd.f32 %v362, %v538
        %540 = vmatmul.bf16.gmra.mxu0 %v479
        %v541 = vpop.f32.mrf.mxu0
        %v542 = vadd.f32 %v362, %v541
        %v543 = vpop.f32.mrf.mxu0
        %v544 = vadd.f32 %v362, %v543
        %545 = vmatmul.bf16.gmra.mxu0 %v482
        %v546 = vpop.f32.mrf.mxu0
        %v547 = vadd.f32 %v362, %v546
        %v548 = vpop.f32.mrf.mxu0
        %v549 = vadd.f32 %v362, %v548
        %550 = vmatmul.bf16.gmra.mxu0 %v485
        %v551 = vpop.f32.mrf.mxu0
        %v552 = vadd.f32 %v362, %v551
        %v553 = vpop.f32.mrf.mxu0
        %v554 = vadd.f32 %v362, %v553
        %555 = vmatmul.bf16.gmra.mxu0 %v488
        %v556 = vpop.f32.mrf.mxu0
        %v557 = vadd.f32 %v362, %v556
        %v558 = vpop.f32.mrf.mxu0
        %v559 = vadd.f32 %v362, %v558
        %560 = vmatmul.bf16.gmra.mxu0 %v491
        %v561 = vpop.f32.mrf.mxu0
        %v562 = vadd.f32 %v362, %v561
        %v563 = vpop.f32.mrf.mxu0
        %v564 = vadd.f32 %v362, %v563
        %565 = vmatmul.bf16.gmra.mxu0 %v494
        %v566 = vpop.f32.mrf.mxu0
        %v567 = vadd.f32 %v362, %v566
        %v568 = vpop.f32.mrf.mxu0
        %v569 = vadd.f32 %v362, %v568
        %570 = vmatmul.bf16.gmra.mxu0 %v497
        %v571 = vpop.f32.mrf.mxu0
        %v572 = vadd.f32 %v362, %v571
        %v573 = vpop.f32.mrf.mxu0
        %v574 = vadd.f32 %v362, %v573
        %575 = vmatmul.bf16.gmra.mxu0 %v500
        %v576 = vpop.f32.mrf.mxu0
        %v577 = vadd.f32 %v362, %v576
        %v578 = vpop.f32.mrf.mxu0
        %v579 = vadd.f32 %v362, %v578
        %580 = vmatmul.bf16.gmra.mxu0 %v503
        %v581 = vpop.f32.mrf.mxu0
        %v582 = vadd.f32 %v362, %v581
        %v583 = vpop.f32.mrf.mxu0
        %v584 = vadd.f32 %v362, %v583
        %585 = vmatmul.bf16.gmra.mxu0 %v506
        %v586 = vpop.f32.mrf.mxu0
        %v587 = vadd.f32 %v362, %v586
        %v588 = vpop.f32.mrf.mxu0
        %v589 = vadd.f32 %v362, %v588
        %590 = vmatmul.bf16.gmra.mxu0 %v509
        %v591 = vpop.f32.mrf.mxu0
        %v592 = vadd.f32 %v362, %v591
        %v593 = vpop.f32.mrf.mxu0
        %v594 = vadd.f32 %v362, %v593
        %595 = vmatmul.bf16.gmra.mxu0 %v512
        %v596 = vpop.f32.mrf.mxu0
        %v597 = vadd.f32 %v362, %v596
        %v598 = vpop.f32.mrf.mxu0
        %v599 = vadd.f32 %v362, %v598
        %600 = vmatmul.bf16.gmra.mxu0 %v515
        %v601 = vpop.f32.mrf.mxu0
        %v602 = vadd.f32 %v362, %v601
        %v603 = vpop.f32.mrf.mxu0
        %v604 = vadd.f32 %v362, %v603
        %605 = vdwg.mxu0
        %s606 = scalar_lea.vmem [#allocation2], 24
        %607 = vst.msk [vmem:[%s606 + $0x1] sm:$0xff] %vm264, %v527
        %608 = vst.msk [vmem:[%s606 + $0x9] sm:$0xff] %vm264, %v529
        %609 = vst.msk [vmem:[%s606 + $0x19] sm:$0xff] %vm264, %v532
        %610 = vst.msk [vmem:[%s606 + $0x21] sm:$0xff] %vm264, %v534
        %611 = vst.msk [vmem:[%s606 + $0x31] sm:$0xff] %vm264, %v537
        %612 = vst.msk [vmem:[%s606 + $0x39] sm:$0xff] %vm264, %v539
        %613 = vst.msk [vmem:[%s606 + $0x49] sm:$0xff] %vm264, %v542
        %614 = vst.msk [vmem:[%s606 + $0x51] sm:$0xff] %vm264, %v544
        %615 = vst.msk [vmem:[%s606 + $0x61] sm:$0xff] %vm264, %v547
        %616 = vst.msk [vmem:[%s606 + $0x69] sm:$0xff] %vm264, %v549
        %617 = vst.msk [vmem:[%s606 + $0x79] sm:$0xff] %vm264, %v552
        %618 = vst.msk [vmem:[%s606 + $0x81] sm:$0xff] %vm264, %v554
        %619 = vst.msk [vmem:[%s606 + $0x91] sm:$0xff] %vm264, %v557
        %620 = vst.msk [vmem:[%s606 + $0x99] sm:$0xff] %vm264, %v559
        %621 = vst.msk [vmem:[%s606 + $0xa9] sm:$0xff] %vm264, %v562
        %622 = vst.msk [vmem:[%s606 + $0xb1] sm:$0xff] %vm264, %v564
        %623 = vst.msk [vmem:[%s606 + $0xc1] sm:$0xff] %vm264, %v567
        %624 = vst.msk [vmem:[%s606 + $0xc9] sm:$0xff] %vm264, %v569
        %625 = vst.msk [vmem:[%s606 + $0xd9] sm:$0xff] %vm264, %v572
        %626 = vst.msk [vmem:[%s606 + $0xe1] sm:$0xff] %vm264, %v574
        %627 = vst.msk [vmem:[%s606 + $0xf1] sm:$0xff] %vm264, %v577
        %628 = vst.msk [vmem:[%s606 + $0xf9] sm:$0xff] %vm264, %v579
        %629 = vst.msk [vmem:[%s606 + $0x109] sm:$0xff] %vm264, %v582
        %630 = vst.msk [vmem:[%s606 + $0x111] sm:$0xff] %vm264, %v584
        %631 = vst.msk [vmem:[%s606 + $0x121] sm:$0xff] %vm264, %v587
        %632 = vst.msk [vmem:[%s606 + $0x129] sm:$0xff] %vm264, %v589
        %633 = vst.msk [vmem:[%s606 + $0x139] sm:$0xff] %vm264, %v592
        %634 = vst.msk [vmem:[%s606 + $0x141] sm:$0xff] %vm264, %v594
        %635 = vst.msk [vmem:[%s606 + $0x151] sm:$0xff] %vm264, %v597
        %636 = vst.msk [vmem:[%s606 + $0x159] sm:$0xff] %vm264, %v599
        %637 = vst.msk [vmem:[%s606 + $0x169] sm:$0xff] %vm264, %v602
        %638 = vst.msk [vmem:[%s606 + $0x171] sm:$0xff] %vm264, %v604
        %v639 = vld [vmem:[#allocation2] sm:$0xff]
        %v640 = vld [vmem:[#allocation2 + $0x8] sm:$0xff]
        %v641 = vld [vmem:[#allocation2 + $0x10] sm:$0x3]
        %v642 = vld [vmem:[#allocation2 + $0x18] sm:$0xff]
        %v643 = vld [vmem:[#allocation2 + $0x20] sm:$0xff]
        %v644 = vld [vmem:[#allocation2 + $0x28] sm:$0x3]
        %v645 = vld [vmem:[#allocation2 + $0x30] sm:$0xff]
        %v646 = vld [vmem:[#allocation2 + $0x38] sm:$0xff]
        %v647 = vld [vmem:[#allocation2 + $0x40] sm:$0x3]
        %v648 = vld [vmem:[#allocation2 + $0x48] sm:$0xff]
        %v649 = vld [vmem:[#allocation2 + $0x50] sm:$0xff]
        %v650 = vld [vmem:[#allocation2 + $0x58] sm:$0x3]
        %v651 = vld [vmem:[#allocation2 + $0x60] sm:$0xff]
        %v652 = vld [vmem:[#allocation2 + $0x68] sm:$0xff]
        %v653 = vld [vmem:[#allocation2 + $0x70] sm:$0x3]
        %v654 = vld [vmem:[#allocation2 + $0x78] sm:$0xff]
        %v655 = vld [vmem:[#allocation2 + $0x80] sm:$0xff]
        %v656 = vld [vmem:[#allocation2 + $0x88] sm:$0x3]
        %v657 = vld [vmem:[#allocation2 + $0x90] sm:$0xff]
        %v658 = vld [vmem:[#allocation2 + $0x98] sm:$0xff]
        %v659 = vld [vmem:[#allocation2 + $0xa0] sm:$0x3]
        %v660 = vld [vmem:[#allocation2 + $0xa8] sm:$0xff]
        %v661 = vld [vmem:[#allocation2 + $0xb0] sm:$0xff]
        %v662 = vld [vmem:[#allocation2 + $0xb8] sm:$0x3]
        %v663 = vld [vmem:[#allocation2 + $0xc0] sm:$0xff]
        %v664 = vld [vmem:[#allocation2 + $0xc8] sm:$0xff]
        %v665 = vld [vmem:[#allocation2 + $0xd0] sm:$0x3]
        %v666 = vld [vmem:[#allocation2 + $0xd8] sm:$0xff]
        %v667 = vld [vmem:[#allocation2 + $0xe0] sm:$0xff]
        %v668 = vld [vmem:[#allocation2 + $0xe8] sm:$0x3]
        %v669 = vld [vmem:[#allocation2 + $0xf0] sm:$0xff]
        %v670 = vld [vmem:[#allocation2 + $0xf8] sm:$0xff]
        %v671 = vld [vmem:[#allocation2 + $0x100] sm:$0x3]
        %v672 = vld [vmem:[#allocation2 + $0x108] sm:$0xff]
        %v673 = vld [vmem:[#allocation2 + $0x110] sm:$0xff]
        %v674 = vld [vmem:[#allocation2 + $0x118] sm:$0x3]
        %v675 = vld [vmem:[#allocation2 + $0x120] sm:$0xff]
        %v676 = vld [vmem:[#allocation2 + $0x128] sm:$0xff]
        %v677 = vld [vmem:[#allocation2 + $0x130] sm:$0x3]
        %v678 = vld [vmem:[#allocation2 + $0x138] sm:$0xff]
        %v679 = vld [vmem:[#allocation2 + $0x140] sm:$0xff]
        %v680 = vld [vmem:[#allocation2 + $0x148] sm:$0x3]
        %v681 = vld [vmem:[#allocation2 + $0x150] sm:$0xff]
        %v682 = vld [vmem:[#allocation2 + $0x158] sm:$0xff]
        %v683 = vld [vmem:[#allocation2 + $0x160] sm:$0x3]
        %v684 = vld [vmem:[#allocation2 + $0x168] sm:$0xff]
        %v685 = vld [vmem:[#allocation2 + $0x170] sm:$0xff]
        %v686 = vld [vmem:[#allocation2 + $0x178] sm:$0x3]
        %v687 = vpack.c.bf16 %v640, %v639
        %v688 = vpack.c.bf16 %v643, %v642
        %v689 = vpack.c.bf16 %v646, %v645
        %v690 = vpack.c.bf16 %v649, %v648
        %v691 = vpack.c.bf16 %v652, %v651
        %v692 = vpack.c.bf16 %v655, %v654
        %v693 = vpack.c.bf16 %v658, %v657
        %v694 = vpack.c.bf16 %v661, %v660
        %v695 = vpack.c.bf16 %v664, %v663
        %v696 = vpack.c.bf16 %v667, %v666
        %v697 = vpack.c.bf16 %v670, %v669
        %v698 = vpack.c.bf16 %v673, %v672
        %v699 = vpack.c.bf16 %v676, %v675
        %v700 = vpack.c.bf16 %v679, %v678
        %v701 = vpack.c.bf16 %v682, %v681
        %v702 = vpack.c.bf16 %v685, %v684
        %v703 = vld [vmem:[%s3] sm:$0xf]
        %v704 = vld [vmem:[%s3 + $0x4] sm:$0xf]
        %v705 = vld [vmem:[%s3 + $0x8] sm:$0xf]
        %v706 = vld [vmem:[%s3 + $0xc] sm:$0xf]
        %vm755 = vcmask 1046528
        %v756 = vrot.slane %v639, 1
        %v757 = vrot.slane %v640, 1
        %v758 = vsel %vm755, %v756, %v757
        %v759 = vrot.slane %v641, 1
        %v760 = vsel %vm755, %v757, %v759
        %v761 = vrot.slane %v642, 1
        %v762 = vrot.slane %v643, 1
        %v763 = vsel %vm755, %v761, %v762
        %v764 = vrot.slane %v644, 1
        %v765 = vsel %vm755, %v762, %v764
        %v766 = vrot.slane %v645, 1
        %v767 = vrot.slane %v646, 1
        %v768 = vsel %vm755, %v766, %v767
        %v769 = vrot.slane %v647, 1
        %v770 = vsel %vm755, %v767, %v769
        %v771 = vrot.slane %v648, 1
        %v772 = vrot.slane %v649, 1
        %v773 = vsel %vm755, %v771, %v772
        %v774 = vrot.slane %v650, 1
        %v775 = vsel %vm755, %v772, %v774
        %v776 = vrot.slane %v651, 1
        %v777 = vrot.slane %v652, 1
        %v778 = vsel %vm755, %v776, %v777
        %v779 = vrot.slane %v653, 1
        %v780 = vsel %vm755, %v777, %v779
        %v781 = vrot.slane %v654, 1
        %v782 = vrot.slane %v655, 1
        %v783 = vsel %vm755, %v781, %v782
        %v784 = vrot.slane %v656, 1
        %v785 = vsel %vm755, %v782, %v784
        %v786 = vrot.slane %v657, 1
        %v787 = vrot.slane %v658, 1
        %v788 = vsel %vm755, %v786, %v787
        %v789 = vrot.slane %v659, 1
        %v790 = vsel %vm755, %v787, %v789
        %v791 = vrot.slane %v660, 1
        %v792 = vrot.slane %v661, 1
        %v793 = vsel %vm755, %v791, %v792
        %v794 = vrot.slane %v662, 1
        %v795 = vsel %vm755, %v792, %v794
        %v796 = vrot.slane %v663, 1
        %v797 = vrot.slane %v664, 1
        %v798 = vsel %vm755, %v796, %v797
        %v799 = vrot.slane %v665, 1
        %v800 = vsel %vm755, %v797, %v799
        %v801 = vrot.slane %v666, 1
        %v802 = vrot.slane %v667, 1
        %v803 = vsel %vm755, %v801, %v802
        %v804 = vrot.slane %v668, 1
        %v805 = vsel %vm755, %v802, %v804
        %v806 = vrot.slane %v669, 1
        %v807 = vrot.slane %v670, 1
        %v808 = vsel %vm755, %v806, %v807
        %v809 = vrot.slane %v671, 1
        %v810 = vsel %vm755, %v807, %v809
        %v811 = vrot.slane %v672, 1
        %v812 = vrot.slane %v673, 1
        %v813 = vsel %vm755, %v811, %v812
        %v814 = vrot.slane %v674, 1
        %v815 = vsel %vm755, %v812, %v814
        %v816 = vrot.slane %v675, 1
        %v817 = vrot.slane %v676, 1
        %v818 = vsel %vm755, %v816, %v817
        %v819 = vrot.slane %v677, 1
        %v820 = vsel %vm755, %v817, %v819
        %v821 = vrot.slane %v678, 1
        %v822 = vrot.slane %v679, 1
        %v823 = vsel %vm755, %v821, %v822
        %v824 = vrot.slane %v680, 1
        %v825 = vsel %vm755, %v822, %v824
        %v826 = vrot.slane %v681, 1
        %v827 = vrot.slane %v682, 1
        %v828 = vsel %vm755, %v826, %v827
        %v829 = vrot.slane %v683, 1
        %v830 = vsel %vm755, %v827, %v829
        %v831 = vrot.slane %v684, 1
        %v832 = vrot.slane %v685, 1
        %v833 = vsel %vm755, %v831, %v832
        %v834 = vrot.slane %v686, 1
        %v835 = vsel %vm755, %v832, %v834
        %v868 = vpack.c.bf16 %v760, %v758
        %v869 = vpack.c.bf16 %v765, %v763
        %v870 = vpack.c.bf16 %v770, %v768
        %v871 = vpack.c.bf16 %v775, %v773
        %v872 = vpack.c.bf16 %v780, %v778
        %v873 = vpack.c.bf16 %v785, %v783
        %v874 = vpack.c.bf16 %v790, %v788
        %v875 = vpack.c.bf16 %v795, %v793
        %v876 = vpack.c.bf16 %v800, %v798
        %v877 = vpack.c.bf16 %v805, %v803
        %v878 = vpack.c.bf16 %v810, %v808
        %v879 = vpack.c.bf16 %v815, %v813
        %v880 = vpack.c.bf16 %v820, %v818
        %v881 = vpack.c.bf16 %v825, %v823
        %v882 = vpack.c.bf16 %v830, %v828
        %v883 = vpack.c.bf16 %v835, %v833
        %s884 = scalar_lea.vmem %s3, 16
        %v885 = vld [vmem:[%s884] sm:$0xf]
        %v886 = vld [vmem:[%s884 + $0x4] sm:$0xf]
        %v887 = vld [vmem:[%s884 + $0x8] sm:$0xf]
        %v888 = vld [vmem:[%s884 + $0xc] sm:$0xf]
        %v893 = vunpack.c.l.b16 %v885
        %v894 = vunpack.c.l.b16 %v886
        %v895 = vunpack.c.l.b16 %v887
        %v896 = vunpack.c.l.b16 %v888
        %v897 = vpack.c.b16 %v894, %v893
        %v898 = vpack.c.b16 %v896, %v895
        %v902 = vsel %vm264, %v868, 0
        %v905 = vsel %vm264, %v869, 0
        %v908 = vsel %vm264, %v870, 0
        %v911 = vsel %vm264, %v871, 0
        %v914 = vsel %vm264, %v872, 0
        %v917 = vsel %vm264, %v873, 0
        %v920 = vsel %vm264, %v874, 0
        %v923 = vsel %vm264, %v875, 0
        %v926 = vsel %vm264, %v876, 0
        %v929 = vsel %vm264, %v877, 0
        %v932 = vsel %vm264, %v878, 0
        %v935 = vsel %vm264, %v879, 0
        %v938 = vsel %vm264, %v880, 0
        %v941 = vsel %vm264, %v881, 0
        %v944 = vsel %vm264, %v882, 0
        %v947 = vsel %vm264, %v883, 0
        %949 = vmatpush.bf16.msra.mxu0 0
        %950 = vmatpush.bf16.msra.mxu0 0
        %951 = vmatpush.bf16.msra.mxu0 0
        %952 = vmatpush.bf16.msra.mxu0 0
        %953 = vmatpush.bf16.msra.mxu0 0
        %954 = vmatpush.bf16.msra.mxu0 0
        %955 = vmatpush.bf16.msra.mxu0 %v898
        %956 = vmatpush.bf16.msra.mxu0 %v897
        %957 = vmatmul.bf16.gmra.mxu0 %v902
        %v958 = vpop.f32.mrf.mxu0
        %v959 = vadd.f32 0.0, %v958
        %v960 = vpop.f32.mrf.mxu0
        %v961 = vadd.f32 0.0, %v960
        %962 = vmatmul.bf16.gmra.mxu0 %v905
        %v963 = vpop.f32.mrf.mxu0
        %v964 = vadd.f32 0.0, %v963
        %v965 = vpop.f32.mrf.mxu0
        %v966 = vadd.f32 0.0, %v965
        %967 = vmatmul.bf16.gmra.mxu0 %v908
        %v968 = vpop.f32.mrf.mxu0
        %v969 = vadd.f32 0.0, %v968
        %v970 = vpop.f32.mrf.mxu0
        %v971 = vadd.f32 0.0, %v970
        %972 = vmatmul.bf16.gmra.mxu0 %v911
        %v973 = vpop.f32.mrf.mxu0
        %v974 = vadd.f32 0.0, %v973
        %v975 = vpop.f32.mrf.mxu0
        %v976 = vadd.f32 0.0, %v975
        %977 = vmatmul.bf16.gmra.mxu0 %v914
        %v978 = vpop.f32.mrf.mxu0
        %v979 = vadd.f32 0.0, %v978
        %v980 = vpop.f32.mrf.mxu0
        %v981 = vadd.f32 0.0, %v980
        %982 = vmatmul.bf16.gmra.mxu0 %v917
        %v983 = vpop.f32.mrf.mxu0
        %v984 = vadd.f32 0.0, %v983
        %v985 = vpop.f32.mrf.mxu0
        %v986 = vadd.f32 0.0, %v985
        %987 = vmatmul.bf16.gmra.mxu0 %v920
        %v988 = vpop.f32.mrf.mxu0
        %v989 = vadd.f32 0.0, %v988
        %v990 = vpop.f32.mrf.mxu0
        %v991 = vadd.f32 0.0, %v990
        %992 = vmatmul.bf16.gmra.mxu0 %v923
        %v993 = vpop.f32.mrf.mxu0
        %v994 = vadd.f32 0.0, %v993
        %v995 = vpop.f32.mrf.mxu0
        %v996 = vadd.f32 0.0, %v995
        %997 = vmatmul.bf16.gmra.mxu0 %v926
        %v998 = vpop.f32.mrf.mxu0
        %v999 = vadd.f32 0.0, %v998
        %v1000 = vpop.f32.mrf.mxu0
        %v1001 = vadd.f32 0.0, %v1000
        %1002 = vmatmul.bf16.gmra.mxu0 %v929
        %v1003 = vpop.f32.mrf.mxu0
        %v1004 = vadd.f32 0.0, %v1003
        %v1005 = vpop.f32.mrf.mxu0
        %v1006 = vadd.f32 0.0, %v1005
        %1007 = vmatmul.bf16.gmra.mxu0 %v932
        %v1008 = vpop.f32.mrf.mxu0
        %v1009 = vadd.f32 0.0, %v1008
        %v1010 = vpop.f32.mrf.mxu0
        %v1011 = vadd.f32 0.0, %v1010
        %1012 = vmatmul.bf16.gmra.mxu0 %v935
        %v1013 = vpop.f32.mrf.mxu0
        %v1014 = vadd.f32 0.0, %v1013
        %v1015 = vpop.f32.mrf.mxu0
        %v1016 = vadd.f32 0.0, %v1015
        %1017 = vmatmul.bf16.gmra.mxu0 %v938
        %v1018 = vpop.f32.mrf.mxu0
        %v1019 = vadd.f32 0.0, %v1018
        %v1020 = vpop.f32.mrf.mxu0
        %v1021 = vadd.f32 0.0, %v1020
        %1022 = vmatmul.bf16.gmra.mxu0 %v941
        %v1023 = vpop.f32.mrf.mxu0
        %v1024 = vadd.f32 0.0, %v1023
        %v1025 = vpop.f32.mrf.mxu0
        %v1026 = vadd.f32 0.0, %v1025
        %1027 = vmatmul.bf16.gmra.mxu0 %v944
        %v1028 = vpop.f32.mrf.mxu0
        %v1029 = vadd.f32 0.0, %v1028
        %v1030 = vpop.f32.mrf.mxu0
        %v1031 = vadd.f32 0.0, %v1030
        %1032 = vmatmul.bf16.gmra.mxu0 %v947
        %v1033 = vpop.f32.mrf.mxu0
        %v1034 = vadd.f32 0.0, %v1033
        %v1035 = vpop.f32.mrf.mxu0
        %v1036 = vadd.f32 0.0, %v1035
        %1037 = vdwg.mxu0
        %v1042 = vunpack.c.l.b16 %v703
        %v1043 = vunpack.c.l.b16 %v704
        %v1044 = vunpack.c.l.b16 %v705
        %v1045 = vunpack.c.l.b16 %v706
        %v1046 = vpack.c.b16 %v1043, %v1042
        %v1047 = vpack.c.b16 %v1045, %v1044
        %v1051 = vsel %vm264, %v687, 0
        %v1054 = vsel %vm264, %v688, 0
        %v1057 = vsel %vm264, %v689, 0
        %v1060 = vsel %vm264, %v690, 0
        %v1063 = vsel %vm264, %v691, 0
        %v1066 = vsel %vm264, %v692, 0
        %v1069 = vsel %vm264, %v693, 0
        %v1072 = vsel %vm264, %v694, 0
        %v1075 = vsel %vm264, %v695, 0
        %v1078 = vsel %vm264, %v696, 0
        %v1081 = vsel %vm264, %v697, 0
        %v1084 = vsel %vm264, %v698, 0
        %v1087 = vsel %vm264, %v699, 0
        %v1090 = vsel %vm264, %v700, 0
        %v1093 = vsel %vm264, %v701, 0
        %v1096 = vsel %vm264, %v702, 0
        %1098 = vmatpush.bf16.msra.mxu0 0
        %1099 = vmatpush.bf16.msra.mxu0 0
        %1100 = vmatpush.bf16.msra.mxu0 0
        %1101 = vmatpush.bf16.msra.mxu0 0
        %1102 = vmatpush.bf16.msra.mxu0 0
        %1103 = vmatpush.bf16.msra.mxu0 0
        %1104 = vmatpush.bf16.msra.mxu0 %v1047
        %1105 = vmatpush.bf16.msra.mxu0 %v1046
        %1106 = vmatmul.bf16.gmra.mxu0 %v1051
        %v1107 = vpop.f32.mrf.mxu0
        %v1108 = vadd.f32 %v959, %v1107
        %v1109 = vpop.f32.mrf.mxu0
        %v1110 = vadd.f32 %v961, %v1109
        %1111 = vmatmul.bf16.gmra.mxu0 %v1054
        %v1112 = vpop.f32.mrf.mxu0
        %v1113 = vadd.f32 %v964, %v1112
        %v1114 = vpop.f32.mrf.mxu0
        %v1115 = vadd.f32 %v966, %v1114
        %1116 = vmatmul.bf16.gmra.mxu0 %v1057
        %v1117 = vpop.f32.mrf.mxu0
        %v1118 = vadd.f32 %v969, %v1117
        %v1119 = vpop.f32.mrf.mxu0
        %v1120 = vadd.f32 %v971, %v1119
        %1121 = vmatmul.bf16.gmra.mxu0 %v1060
        %v1122 = vpop.f32.mrf.mxu0
        %v1123 = vadd.f32 %v974, %v1122
        %v1124 = vpop.f32.mrf.mxu0
        %v1125 = vadd.f32 %v976, %v1124
        %1126 = vmatmul.bf16.gmra.mxu0 %v1063
        %v1127 = vpop.f32.mrf.mxu0
        %v1128 = vadd.f32 %v979, %v1127
        %v1129 = vpop.f32.mrf.mxu0
        %v1130 = vadd.f32 %v981, %v1129
        %1131 = vmatmul.bf16.gmra.mxu0 %v1066
        %v1132 = vpop.f32.mrf.mxu0
        %v1133 = vadd.f32 %v984, %v1132
        %v1134 = vpop.f32.mrf.mxu0
        %v1135 = vadd.f32 %v986, %v1134
        %1136 = vmatmul.bf16.gmra.mxu0 %v1069
        %v1137 = vpop.f32.mrf.mxu0
        %v1138 = vadd.f32 %v989, %v1137
        %v1139 = vpop.f32.mrf.mxu0
        %v1140 = vadd.f32 %v991, %v1139
        %1141 = vmatmul.bf16.gmra.mxu0 %v1072
        %v1142 = vpop.f32.mrf.mxu0
        %v1143 = vadd.f32 %v994, %v1142
        %v1144 = vpop.f32.mrf.mxu0
        %v1145 = vadd.f32 %v996, %v1144
        %1146 = vmatmul.bf16.gmra.mxu0 %v1075
        %v1147 = vpop.f32.mrf.mxu0
        %v1148 = vadd.f32 %v999, %v1147
        %v1149 = vpop.f32.mrf.mxu0
        %v1150 = vadd.f32 %v1001, %v1149
        %1151 = vmatmul.bf16.gmra.mxu0 %v1078
        %v1152 = vpop.f32.mrf.mxu0
        %v1153 = vadd.f32 %v1004, %v1152
        %v1154 = vpop.f32.mrf.mxu0
        %v1155 = vadd.f32 %v1006, %v1154
        %1156 = vmatmul.bf16.gmra.mxu0 %v1081
        %v1157 = vpop.f32.mrf.mxu0
        %v1158 = vadd.f32 %v1009, %v1157
        %v1159 = vpop.f32.mrf.mxu0
        %v1160 = vadd.f32 %v1011, %v1159
        %1161 = vmatmul.bf16.gmra.mxu0 %v1084
        %v1162 = vpop.f32.mrf.mxu0
        %v1163 = vadd.f32 %v1014, %v1162
        %v1164 = vpop.f32.mrf.mxu0
        %v1165 = vadd.f32 %v1016, %v1164
        %1166 = vmatmul.bf16.gmra.mxu0 %v1087
        %v1167 = vpop.f32.mrf.mxu0
        %v1168 = vadd.f32 %v1019, %v1167
        %v1169 = vpop.f32.mrf.mxu0
        %v1170 = vadd.f32 %v1021, %v1169
        %1171 = vmatmul.bf16.gmra.mxu0 %v1090
        %v1172 = vpop.f32.mrf.mxu0
        %v1173 = vadd.f32 %v1024, %v1172
        %v1174 = vpop.f32.mrf.mxu0
        %v1175 = vadd.f32 %v1026, %v1174
        %1176 = vmatmul.bf16.gmra.mxu0 %v1093
        %v1177 = vpop.f32.mrf.mxu0
        %v1178 = vadd.f32 %v1029, %v1177
        %v1179 = vpop.f32.mrf.mxu0
        %v1180 = vadd.f32 %v1031, %v1179
        %1181 = vmatmul.bf16.gmra.mxu0 %v1096
        %v1182 = vpop.f32.mrf.mxu0
        %v1183 = vadd.f32 %v1034, %v1182
        %v1184 = vpop.f32.mrf.mxu0
        %v1185 = vadd.f32 %v1036, %v1184
        %1186 = vdwg.mxu0
        %vm1187 = vcmask 1045504
        %v1188 = vrot.slane %v639, 2
        %v1189 = vrot.slane %v640, 2
        %v1190 = vsel %vm1187, %v1188, %v1189
        %v1191 = vrot.slane %v641, 2
        %v1192 = vsel %vm1187, %v1189, %v1191
        %v1193 = vrot.slane %v642, 2
        %v1194 = vrot.slane %v643, 2
        %v1195 = vsel %vm1187, %v1193, %v1194
        %v1196 = vrot.slane %v644, 2
        %v1197 = vsel %vm1187, %v1194, %v1196
        %v1198 = vrot.slane %v645, 2
        %v1199 = vrot.slane %v646, 2
        %v1200 = vsel %vm1187, %v1198, %v1199
        %v1201 = vrot.slane %v647, 2
        %v1202 = vsel %vm1187, %v1199, %v1201
        %v1203 = vrot.slane %v648, 2
        %v1204 = vrot.slane %v649, 2
        %v1205 = vsel %vm1187, %v1203, %v1204
        %v1206 = vrot.slane %v650, 2
        %v1207 = vsel %vm1187, %v1204, %v1206
        %v1208 = vrot.slane %v651, 2
        %v1209 = vrot.slane %v652, 2
        %v1210 = vsel %vm1187, %v1208, %v1209
        %v1211 = vrot.slane %v653, 2
        %v1212 = vsel %vm1187, %v1209, %v1211
        %v1213 = vrot.slane %v654, 2
        %v1214 = vrot.slane %v655, 2
        %v1215 = vsel %vm1187, %v1213, %v1214
        %v1216 = vrot.slane %v656, 2
        %v1217 = vsel %vm1187, %v1214, %v1216
        %v1218 = vrot.slane %v657, 2
        %v1219 = vrot.slane %v658, 2
        %v1220 = vsel %vm1187, %v1218, %v1219
        %v1221 = vrot.slane %v659, 2
        %v1222 = vsel %vm1187, %v1219, %v1221
        %v1223 = vrot.slane %v660, 2
        %v1224 = vrot.slane %v661, 2
        %v1225 = vsel %vm1187, %v1223, %v1224
        %v1226 = vrot.slane %v662, 2
        %v1227 = vsel %vm1187, %v1224, %v1226
        %v1228 = vrot.slane %v663, 2
        %v1229 = vrot.slane %v664, 2
        %v1230 = vsel %vm1187, %v1228, %v1229
        %v1231 = vrot.slane %v665, 2
        %v1232 = vsel %vm1187, %v1229, %v1231
        %v1233 = vrot.slane %v666, 2
        %v1234 = vrot.slane %v667, 2
        %v1235 = vsel %vm1187, %v1233, %v1234
        %v1236 = vrot.slane %v668, 2
        %v1237 = vsel %vm1187, %v1234, %v1236
        %v1238 = vrot.slane %v669, 2
        %v1239 = vrot.slane %v670, 2
        %v1240 = vsel %vm1187, %v1238, %v1239
        %v1241 = vrot.slane %v671, 2
        %v1242 = vsel %vm1187, %v1239, %v1241
        %v1243 = vrot.slane %v672, 2
        %v1244 = vrot.slane %v673, 2
        %v1245 = vsel %vm1187, %v1243, %v1244
        %v1246 = vrot.slane %v674, 2
        %v1247 = vsel %vm1187, %v1244, %v1246
        %v1248 = vrot.slane %v675, 2
        %v1249 = vrot.slane %v676, 2
        %v1250 = vsel %vm1187, %v1248, %v1249
        %v1251 = vrot.slane %v677, 2
        %v1252 = vsel %vm1187, %v1249, %v1251
        %v1253 = vrot.slane %v678, 2
        %v1254 = vrot.slane %v679, 2
        %v1255 = vsel %vm1187, %v1253, %v1254
        %v1256 = vrot.slane %v680, 2
        %v1257 = vsel %vm1187, %v1254, %v1256
        %v1258 = vrot.slane %v681, 2
        %v1259 = vrot.slane %v682, 2
        %v1260 = vsel %vm1187, %v1258, %v1259
        %v1261 = vrot.slane %v683, 2
        %v1262 = vsel %vm1187, %v1259, %v1261
        %v1263 = vrot.slane %v684, 2
        %v1264 = vrot.slane %v685, 2
        %v1265 = vsel %vm1187, %v1263, %v1264
        %v1266 = vrot.slane %v686, 2
        %v1267 = vsel %vm1187, %v1264, %v1266
        %v1300 = vpack.c.bf16 %v1192, %v1190
        %v1301 = vpack.c.bf16 %v1197, %v1195
        %v1302 = vpack.c.bf16 %v1202, %v1200
        %v1303 = vpack.c.bf16 %v1207, %v1205
        %v1304 = vpack.c.bf16 %v1212, %v1210
        %v1305 = vpack.c.bf16 %v1217, %v1215
        %v1306 = vpack.c.bf16 %v1222, %v1220
        %v1307 = vpack.c.bf16 %v1227, %v1225
        %v1308 = vpack.c.bf16 %v1232, %v1230
        %v1309 = vpack.c.bf16 %v1237, %v1235
        %v1310 = vpack.c.bf16 %v1242, %v1240
        %v1311 = vpack.c.bf16 %v1247, %v1245
        %v1312 = vpack.c.bf16 %v1252, %v1250
        %v1313 = vpack.c.bf16 %v1257, %v1255
        %v1314 = vpack.c.bf16 %v1262, %v1260
        %v1315 = vpack.c.bf16 %v1267, %v1265
        %s1316 = scalar_lea.vmem %s3, 32
        %v1317 = vld [vmem:[%s1316] sm:$0xf]
        %v1318 = vld [vmem:[%s1316 + $0x4] sm:$0xf]
        %v1319 = vld [vmem:[%s1316 + $0x8] sm:$0xf]
        %v1320 = vld [vmem:[%s1316 + $0xc] sm:$0xf]
        %v1325 = vunpack.c.l.b16 %v1317
        %v1326 = vunpack.c.l.b16 %v1318
        %v1327 = vunpack.c.l.b16 %v1319
        %v1328 = vunpack.c.l.b16 %v1320
        %v1329 = vpack.c.b16 %v1326, %v1325
        %v1330 = vpack.c.b16 %v1328, %v1327
        %v1334 = vsel %vm264, %v1300, 0
        %v1337 = vsel %vm264, %v1301, 0
        %v1340 = vsel %vm264, %v1302, 0
        %v1343 = vsel %vm264, %v1303, 0
        %v1346 = vsel %vm264, %v1304, 0
        %v1349 = vsel %vm264, %v1305, 0
        %v1352 = vsel %vm264, %v1306, 0
        %v1355 = vsel %vm264, %v1307, 0
        %v1358 = vsel %vm264, %v1308, 0
        %v1361 = vsel %vm264, %v1309, 0
        %v1364 = vsel %vm264, %v1310, 0
        %v1367 = vsel %vm264, %v1311, 0
        %v1370 = vsel %vm264, %v1312, 0
        %v1373 = vsel %vm264, %v1313, 0
        %v1376 = vsel %vm264, %v1314, 0
        %v1379 = vsel %vm264, %v1315, 0
        %1381 = vmatpush.bf16.msra.mxu0 0
        %1382 = vmatpush.bf16.msra.mxu0 0
        %1383 = vmatpush.bf16.msra.mxu0 0
        %1384 = vmatpush.bf16.msra.mxu0 0
        %1385 = vmatpush.bf16.msra.mxu0 0
        %1386 = vmatpush.bf16.msra.mxu0 0
        %1387 = vmatpush.bf16.msra.mxu0 %v1330
        %1388 = vmatpush.bf16.msra.mxu0 %v1329
        %1389 = vmatmul.bf16.gmra.mxu0 %v1334
        %v1390 = vpop.f32.mrf.mxu0
        %v1391 = vadd.f32 0.0, %v1390
        %v1392 = vpop.f32.mrf.mxu0
        %v1393 = vadd.f32 0.0, %v1392
        %1394 = vmatmul.bf16.gmra.mxu0 %v1337
        %v1395 = vpop.f32.mrf.mxu0
        %v1396 = vadd.f32 0.0, %v1395
        %v1397 = vpop.f32.mrf.mxu0
        %v1398 = vadd.f32 0.0, %v1397
        %1399 = vmatmul.bf16.gmra.mxu0 %v1340
        %v1400 = vpop.f32.mrf.mxu0
        %v1401 = vadd.f32 0.0, %v1400
        %v1402 = vpop.f32.mrf.mxu0
        %v1403 = vadd.f32 0.0, %v1402
        %1404 = vmatmul.bf16.gmra.mxu0 %v1343
        %v1405 = vpop.f32.mrf.mxu0
        %v1406 = vadd.f32 0.0, %v1405
        %v1407 = vpop.f32.mrf.mxu0
        %v1408 = vadd.f32 0.0, %v1407
        %1409 = vmatmul.bf16.gmra.mxu0 %v1346
        %v1410 = vpop.f32.mrf.mxu0
        %v1411 = vadd.f32 0.0, %v1410
        %v1412 = vpop.f32.mrf.mxu0
        %v1413 = vadd.f32 0.0, %v1412
        %1414 = vmatmul.bf16.gmra.mxu0 %v1349
        %v1415 = vpop.f32.mrf.mxu0
        %v1416 = vadd.f32 0.0, %v1415
        %v1417 = vpop.f32.mrf.mxu0
        %v1418 = vadd.f32 0.0, %v1417
        %1419 = vmatmul.bf16.gmra.mxu0 %v1352
        %v1420 = vpop.f32.mrf.mxu0
        %v1421 = vadd.f32 0.0, %v1420
        %v1422 = vpop.f32.mrf.mxu0
        %v1423 = vadd.f32 0.0, %v1422
        %1424 = vmatmul.bf16.gmra.mxu0 %v1355
        %v1425 = vpop.f32.mrf.mxu0
        %v1426 = vadd.f32 0.0, %v1425
        %v1427 = vpop.f32.mrf.mxu0
        %v1428 = vadd.f32 0.0, %v1427
        %1429 = vmatmul.bf16.gmra.mxu0 %v1358
        %v1430 = vpop.f32.mrf.mxu0
        %v1431 = vadd.f32 0.0, %v1430
        %v1432 = vpop.f32.mrf.mxu0
        %v1433 = vadd.f32 0.0, %v1432
        %1434 = vmatmul.bf16.gmra.mxu0 %v1361
        %v1435 = vpop.f32.mrf.mxu0
        %v1436 = vadd.f32 0.0, %v1435
        %v1437 = vpop.f32.mrf.mxu0
        %v1438 = vadd.f32 0.0, %v1437
        %1439 = vmatmul.bf16.gmra.mxu0 %v1364
        %v1440 = vpop.f32.mrf.mxu0
        %v1441 = vadd.f32 0.0, %v1440
        %v1442 = vpop.f32.mrf.mxu0
        %v1443 = vadd.f32 0.0, %v1442
        %1444 = vmatmul.bf16.gmra.mxu0 %v1367
        %v1445 = vpop.f32.mrf.mxu0
        %v1446 = vadd.f32 0.0, %v1445
        %v1447 = vpop.f32.mrf.mxu0
        %v1448 = vadd.f32 0.0, %v1447
        %1449 = vmatmul.bf16.gmra.mxu0 %v1370
        %v1450 = vpop.f32.mrf.mxu0
        %v1451 = vadd.f32 0.0, %v1450
        %v1452 = vpop.f32.mrf.mxu0
        %v1453 = vadd.f32 0.0, %v1452
        %1454 = vmatmul.bf16.gmra.mxu0 %v1373
        %v1455 = vpop.f32.mrf.mxu0
        %v1456 = vadd.f32 0.0, %v1455
        %v1457 = vpop.f32.mrf.mxu0
        %v1458 = vadd.f32 0.0, %v1457
        %1459 = vmatmul.bf16.gmra.mxu0 %v1376
        %v1460 = vpop.f32.mrf.mxu0
        %v1461 = vadd.f32 0.0, %v1460
        %v1462 = vpop.f32.mrf.mxu0
        %v1463 = vadd.f32 0.0, %v1462
        %1464 = vmatmul.bf16.gmra.mxu0 %v1379
        %v1465 = vpop.f32.mrf.mxu0
        %v1466 = vadd.f32 0.0, %v1465
        %v1467 = vpop.f32.mrf.mxu0
        %v1468 = vadd.f32 0.0, %v1467
        %1469 = vdwg.mxu0
        %v1470 = vadd.f32 %v1108, %v1391
        %v1471 = vadd.f32 %v1110, %v1393
        %v1472 = vadd.f32 %v1113, %v1396
        %v1473 = vadd.f32 %v1115, %v1398
        %v1474 = vadd.f32 %v1118, %v1401
        %v1475 = vadd.f32 %v1120, %v1403
        %v1476 = vadd.f32 %v1123, %v1406
        %v1477 = vadd.f32 %v1125, %v1408
        %v1478 = vadd.f32 %v1128, %v1411
        %v1479 = vadd.f32 %v1130, %v1413
        %v1480 = vadd.f32 %v1133, %v1416
        %v1481 = vadd.f32 %v1135, %v1418
        %v1482 = vadd.f32 %v1138, %v1421
        %v1483 = vadd.f32 %v1140, %v1423
        %v1484 = vadd.f32 %v1143, %v1426
        %v1485 = vadd.f32 %v1145, %v1428
        %v1486 = vadd.f32 %v1148, %v1431
        %v1487 = vadd.f32 %v1150, %v1433
        %v1488 = vadd.f32 %v1153, %v1436
        %v1489 = vadd.f32 %v1155, %v1438
        %v1490 = vadd.f32 %v1158, %v1441
        %v1491 = vadd.f32 %v1160, %v1443
        %v1492 = vadd.f32 %v1163, %v1446
        %v1493 = vadd.f32 %v1165, %v1448
        %v1494 = vadd.f32 %v1168, %v1451
        %v1495 = vadd.f32 %v1170, %v1453
        %v1496 = vadd.f32 %v1173, %v1456
        %v1497 = vadd.f32 %v1175, %v1458
        %v1498 = vadd.f32 %v1178, %v1461
        %v1499 = vadd.f32 %v1180, %v1463
        %v1500 = vadd.f32 %v1183, %v1466
        %v1501 = vadd.f32 %v1185, %v1468
        %v1502 = vld [vmem:[%s606] sm:$0xff]
        %v1503 = vld [vmem:[%s606 + $0x8] sm:$0xff]
        %v1504 = vld [vmem:[%s606 + $0x10] sm:$0x3]
        %v1505 = vld [vmem:[%s606 + $0x18] sm:$0xff]
        %v1506 = vld [vmem:[%s606 + $0x20] sm:$0xff]
        %v1507 = vld [vmem:[%s606 + $0x28] sm:$0x3]
        %v1508 = vld [vmem:[%s606 + $0x30] sm:$0xff]
        %v1509 = vld [vmem:[%s606 + $0x38] sm:$0xff]
        %v1510 = vld [vmem:[%s606 + $0x40] sm:$0x3]
        %v1511 = vld [vmem:[%s606 + $0x48] sm:$0xff]
        %v1512 = vld [vmem:[%s606 + $0x50] sm:$0xff]
        %v1513 = vld [vmem:[%s606 + $0x58] sm:$0x3]
        %v1514 = vld [vmem:[%s606 + $0x60] sm:$0xff]
        %v1515 = vld [vmem:[%s606 + $0x68] sm:$0xff]
        %v1516 = vld [vmem:[%s606 + $0x70] sm:$0x3]
        %v1517 = vld [vmem:[%s606 + $0x78] sm:$0xff]
        %v1518 = vld [vmem:[%s606 + $0x80] sm:$0xff]
        %v1519 = vld [vmem:[%s606 + $0x88] sm:$0x3]
        %v1520 = vld [vmem:[%s606 + $0x90] sm:$0xff]
        %v1521 = vld [vmem:[%s606 + $0x98] sm:$0xff]
        %v1522 = vld [vmem:[%s606 + $0xa0] sm:$0x3]
        %v1523 = vld [vmem:[%s606 + $0xa8] sm:$0xff]
        %v1524 = vld [vmem:[%s606 + $0xb0] sm:$0xff]
        %v1525 = vld [vmem:[%s606 + $0xb8] sm:$0x3]
        %v1526 = vld [vmem:[%s606 + $0xc0] sm:$0xff]
        %v1527 = vld [vmem:[%s606 + $0xc8] sm:$0xff]
        %v1528 = vld [vmem:[%s606 + $0xd0] sm:$0x3]
        %v1529 = vld [vmem:[%s606 + $0xd8] sm:$0xff]
        %v1530 = vld [vmem:[%s606 + $0xe0] sm:$0xff]
        %v1531 = vld [vmem:[%s606 + $0xe8] sm:$0x3]
        %v1532 = vld [vmem:[%s606 + $0xf0] sm:$0xff]
        %v1533 = vld [vmem:[%s606 + $0xf8] sm:$0xff]
        %v1534 = vld [vmem:[%s606 + $0x100] sm:$0x3]
        %v1535 = vld [vmem:[%s606 + $0x108] sm:$0xff]
        %v1536 = vld [vmem:[%s606 + $0x110] sm:$0xff]
        %v1537 = vld [vmem:[%s606 + $0x118] sm:$0x3]
        %v1538 = vld [vmem:[%s606 + $0x120] sm:$0xff]
        %v1539 = vld [vmem:[%s606 + $0x128] sm:$0xff]
        %v1540 = vld [vmem:[%s606 + $0x130] sm:$0x3]
        %v1541 = vld [vmem:[%s606 + $0x138] sm:$0xff]
        %v1542 = vld [vmem:[%s606 + $0x140] sm:$0xff]
        %v1543 = vld [vmem:[%s606 + $0x148] sm:$0x3]
        %v1544 = vld [vmem:[%s606 + $0x150] sm:$0xff]
        %v1545 = vld [vmem:[%s606 + $0x158] sm:$0xff]
        %v1546 = vld [vmem:[%s606 + $0x160] sm:$0x3]
        %v1547 = vld [vmem:[%s606 + $0x168] sm:$0xff]
        %v1548 = vld [vmem:[%s606 + $0x170] sm:$0xff]
        %v1549 = vld [vmem:[%s606 + $0x178] sm:$0x3]
        %v1550 = vpack.c.bf16 %v1503, %v1502
        %v1551 = vpack.c.bf16 %v1506, %v1505
        %v1552 = vpack.c.bf16 %v1509, %v1508
        %v1553 = vpack.c.bf16 %v1512, %v1511
        %v1554 = vpack.c.bf16 %v1515, %v1514
        %v1555 = vpack.c.bf16 %v1518, %v1517
        %v1556 = vpack.c.bf16 %v1521, %v1520
        %v1557 = vpack.c.bf16 %v1524, %v1523
        %v1558 = vpack.c.bf16 %v1527, %v1526
        %v1559 = vpack.c.bf16 %v1530, %v1529
        %v1560 = vpack.c.bf16 %v1533, %v1532
        %v1561 = vpack.c.bf16 %v1536, %v1535
        %v1562 = vpack.c.bf16 %v1539, %v1538
        %v1563 = vpack.c.bf16 %v1542, %v1541
        %v1564 = vpack.c.bf16 %v1545, %v1544
        %v1565 = vpack.c.bf16 %v1548, %v1547
        %s1566 = scalar_lea.vmem %s3, 48
        %v1567 = vld [vmem:[%s1566] sm:$0xf]
        %v1568 = vld [vmem:[%s1566 + $0x4] sm:$0xf]
        %v1569 = vld [vmem:[%s1566 + $0x8] sm:$0xf]
        %v1570 = vld [vmem:[%s1566 + $0xc] sm:$0xf]
        %v1575 = vunpack.c.l.b16 %v1567
        %v1576 = vunpack.c.l.b16 %v1568
        %v1577 = vunpack.c.l.b16 %v1569
        %v1578 = vunpack.c.l.b16 %v1570
        %v1579 = vpack.c.b16 %v1576, %v1575
        %v1580 = vpack.c.b16 %v1578, %v1577
        %v1584 = vsel %vm264, %v1550, 0
        %v1587 = vsel %vm264, %v1551, 0
        %v1590 = vsel %vm264, %v1552, 0
        %v1593 = vsel %vm264, %v1553, 0
        %v1596 = vsel %vm264, %v1554, 0
        %v1599 = vsel %vm264, %v1555, 0
        %v1602 = vsel %vm264, %v1556, 0
        %v1605 = vsel %vm264, %v1557, 0
        %v1608 = vsel %vm264, %v1558, 0
        %v1611 = vsel %vm264, %v1559, 0
        %v1614 = vsel %vm264, %v1560, 0
        %v1617 = vsel %vm264, %v1561, 0
        %v1620 = vsel %vm264, %v1562, 0
        %v1623 = vsel %vm264, %v1563, 0
        %v1626 = vsel %vm264, %v1564, 0
        %v1629 = vsel %vm264, %v1565, 0
        %1631 = vmatpush.bf16.msra.mxu0 0
        %1632 = vmatpush.bf16.msra.mxu0 0
        %1633 = vmatpush.bf16.msra.mxu0 0
        %1634 = vmatpush.bf16.msra.mxu0 0
        %1635 = vmatpush.bf16.msra.mxu0 0
        %1636 = vmatpush.bf16.msra.mxu0 0
        %1637 = vmatpush.bf16.msra.mxu0 %v1580
        %1638 = vmatpush.bf16.msra.mxu0 %v1579
        %1639 = vmatmul.bf16.gmra.mxu0 %v1584
        %v1640 = vpop.f32.mrf.mxu0
        %v1641 = vadd.f32 0.0, %v1640
        %v1642 = vpop.f32.mrf.mxu0
        %v1643 = vadd.f32 0.0, %v1642
        %1644 = vmatmul.bf16.gmra.mxu0 %v1587
        %v1645 = vpop.f32.mrf.mxu0
        %v1646 = vadd.f32 0.0, %v1645
        %v1647 = vpop.f32.mrf.mxu0
        %v1648 = vadd.f32 0.0, %v1647
        %1649 = vmatmul.bf16.gmra.mxu0 %v1590
        %v1650 = vpop.f32.mrf.mxu0
        %v1651 = vadd.f32 0.0, %v1650
        %v1652 = vpop.f32.mrf.mxu0
        %v1653 = vadd.f32 0.0, %v1652
        %1654 = vmatmul.bf16.gmra.mxu0 %v1593
        %v1655 = vpop.f32.mrf.mxu0
        %v1656 = vadd.f32 0.0, %v1655
        %v1657 = vpop.f32.mrf.mxu0
        %v1658 = vadd.f32 0.0, %v1657
        %1659 = vmatmul.bf16.gmra.mxu0 %v1596
        %v1660 = vpop.f32.mrf.mxu0
        %v1661 = vadd.f32 0.0, %v1660
        %v1662 = vpop.f32.mrf.mxu0
        %v1663 = vadd.f32 0.0, %v1662
        %1664 = vmatmul.bf16.gmra.mxu0 %v1599
        %v1665 = vpop.f32.mrf.mxu0
        %v1666 = vadd.f32 0.0, %v1665
        %v1667 = vpop.f32.mrf.mxu0
        %v1668 = vadd.f32 0.0, %v1667
        %1669 = vmatmul.bf16.gmra.mxu0 %v1602
        %v1670 = vpop.f32.mrf.mxu0
        %v1671 = vadd.f32 0.0, %v1670
        %v1672 = vpop.f32.mrf.mxu0
        %v1673 = vadd.f32 0.0, %v1672
        %1674 = vmatmul.bf16.gmra.mxu0 %v1605
        %v1675 = vpop.f32.mrf.mxu0
        %v1676 = vadd.f32 0.0, %v1675
        %v1677 = vpop.f32.mrf.mxu0
        %v1678 = vadd.f32 0.0, %v1677
        %1679 = vmatmul.bf16.gmra.mxu0 %v1608
        %v1680 = vpop.f32.mrf.mxu0
        %v1681 = vadd.f32 0.0, %v1680
        %v1682 = vpop.f32.mrf.mxu0
        %v1683 = vadd.f32 0.0, %v1682
        %1684 = vmatmul.bf16.gmra.mxu0 %v1611
        %v1685 = vpop.f32.mrf.mxu0
        %v1686 = vadd.f32 0.0, %v1685
        %v1687 = vpop.f32.mrf.mxu0
        %v1688 = vadd.f32 0.0, %v1687
        %1689 = vmatmul.bf16.gmra.mxu0 %v1614
        %v1690 = vpop.f32.mrf.mxu0
        %v1691 = vadd.f32 0.0, %v1690
        %v1692 = vpop.f32.mrf.mxu0
        %v1693 = vadd.f32 0.0, %v1692
        %1694 = vmatmul.bf16.gmra.mxu0 %v1617
        %v1695 = vpop.f32.mrf.mxu0
        %v1696 = vadd.f32 0.0, %v1695
        %v1697 = vpop.f32.mrf.mxu0
        %v1698 = vadd.f32 0.0, %v1697
        %1699 = vmatmul.bf16.gmra.mxu0 %v1620
        %v1700 = vpop.f32.mrf.mxu0
        %v1701 = vadd.f32 0.0, %v1700
        %v1702 = vpop.f32.mrf.mxu0
        %v1703 = vadd.f32 0.0, %v1702
        %1704 = vmatmul.bf16.gmra.mxu0 %v1623
        %v1705 = vpop.f32.mrf.mxu0
        %v1706 = vadd.f32 0.0, %v1705
        %v1707 = vpop.f32.mrf.mxu0
        %v1708 = vadd.f32 0.0, %v1707
        %1709 = vmatmul.bf16.gmra.mxu0 %v1626
        %v1710 = vpop.f32.mrf.mxu0
        %v1711 = vadd.f32 0.0, %v1710
        %v1712 = vpop.f32.mrf.mxu0
        %v1713 = vadd.f32 0.0, %v1712
        %1714 = vmatmul.bf16.gmra.mxu0 %v1629
        %v1715 = vpop.f32.mrf.mxu0
        %v1716 = vadd.f32 0.0, %v1715
        %v1717 = vpop.f32.mrf.mxu0
        %v1718 = vadd.f32 0.0, %v1717
        %1719 = vdwg.mxu0
        %v1720 = vadd.f32 %v1470, %v1641
        %v1721 = vadd.f32 %v1471, %v1643
        %v1722 = vadd.f32 %v1472, %v1646
        %v1723 = vadd.f32 %v1473, %v1648
        %v1724 = vadd.f32 %v1474, %v1651
        %v1725 = vadd.f32 %v1475, %v1653
        %v1726 = vadd.f32 %v1476, %v1656
        %v1727 = vadd.f32 %v1477, %v1658
        %v1728 = vadd.f32 %v1478, %v1661
        %v1729 = vadd.f32 %v1479, %v1663
        %v1730 = vadd.f32 %v1480, %v1666
        %v1731 = vadd.f32 %v1481, %v1668
        %v1732 = vadd.f32 %v1482, %v1671
        %v1733 = vadd.f32 %v1483, %v1673
        %v1734 = vadd.f32 %v1484, %v1676
        %v1735 = vadd.f32 %v1485, %v1678
        %v1736 = vadd.f32 %v1486, %v1681
        %v1737 = vadd.f32 %v1487, %v1683
        %v1738 = vadd.f32 %v1488, %v1686
        %v1739 = vadd.f32 %v1489, %v1688
        %v1740 = vadd.f32 %v1490, %v1691
        %v1741 = vadd.f32 %v1491, %v1693
        %v1742 = vadd.f32 %v1492, %v1696
        %v1743 = vadd.f32 %v1493, %v1698
        %v1744 = vadd.f32 %v1494, %v1701
        %v1745 = vadd.f32 %v1495, %v1703
        %v1746 = vadd.f32 %v1496, %v1706
        %v1747 = vadd.f32 %v1497, %v1708
        %v1748 = vadd.f32 %v1498, %v1711
        %v1749 = vadd.f32 %v1499, %v1713
        %v1750 = vadd.f32 %v1500, %v1716
        %v1751 = vadd.f32 %v1501, %v1718
        %v1800 = vrot.slane %v1502, 1
        %v1801 = vrot.slane %v1503, 1
        %v1802 = vsel %vm755, %v1800, %v1801
        %v1803 = vrot.slane %v1504, 1
        %v1804 = vsel %vm755, %v1801, %v1803
        %v1805 = vrot.slane %v1505, 1
        %v1806 = vrot.slane %v1506, 1
        %v1807 = vsel %vm755, %v1805, %v1806
        %v1808 = vrot.slane %v1507, 1
        %v1809 = vsel %vm755, %v1806, %v1808
        %v1810 = vrot.slane %v1508, 1
        %v1811 = vrot.slane %v1509, 1
        %v1812 = vsel %vm755, %v1810, %v1811
        %v1813 = vrot.slane %v1510, 1
        %v1814 = vsel %vm755, %v1811, %v1813
        %v1815 = vrot.slane %v1511, 1
        %v1816 = vrot.slane %v1512, 1
        %v1817 = vsel %vm755, %v1815, %v1816
        %v1818 = vrot.slane %v1513, 1
        %v1819 = vsel %vm755, %v1816, %v1818
        %v1820 = vrot.slane %v1514, 1
        %v1821 = vrot.slane %v1515, 1
        %v1822 = vsel %vm755, %v1820, %v1821
        %v1823 = vrot.slane %v1516, 1
        %v1824 = vsel %vm755, %v1821, %v1823
        %v1825 = vrot.slane %v1517, 1
        %v1826 = vrot.slane %v1518, 1
        %v1827 = vsel %vm755, %v1825, %v1826
        %v1828 = vrot.slane %v1519, 1
        %v1829 = vsel %vm755, %v1826, %v1828
        %v1830 = vrot.slane %v1520, 1
        %v1831 = vrot.slane %v1521, 1
        %v1832 = vsel %vm755, %v1830, %v1831
        %v1833 = vrot.slane %v1522, 1
        %v1834 = vsel %vm755, %v1831, %v1833
        %v1835 = vrot.slane %v1523, 1
        %v1836 = vrot.slane %v1524, 1
        %v1837 = vsel %vm755, %v1835, %v1836
        %v1838 = vrot.slane %v1525, 1
        %v1839 = vsel %vm755, %v1836, %v1838
        %v1840 = vrot.slane %v1526, 1
        %v1841 = vrot.slane %v1527, 1
        %v1842 = vsel %vm755, %v1840, %v1841
        %v1843 = vrot.slane %v1528, 1
        %v1844 = vsel %vm755, %v1841, %v1843
        %v1845 = vrot.slane %v1529, 1
        %v1846 = vrot.slane %v1530, 1
        %v1847 = vsel %vm755, %v1845, %v1846
        %v1848 = vrot.slane %v1531, 1
        %v1849 = vsel %vm755, %v1846, %v1848
        %v1850 = vrot.slane %v1532, 1
        %v1851 = vrot.slane %v1533, 1
        %v1852 = vsel %vm755, %v1850, %v1851
        %v1853 = vrot.slane %v1534, 1
        %v1854 = vsel %vm755, %v1851, %v1853
        %v1855 = vrot.slane %v1535, 1
        %v1856 = vrot.slane %v1536, 1
        %v1857 = vsel %vm755, %v1855, %v1856
        %v1858 = vrot.slane %v1537, 1
        %v1859 = vsel %vm755, %v1856, %v1858
        %v1860 = vrot.slane %v1538, 1
        %v1861 = vrot.slane %v1539, 1
        %v1862 = vsel %vm755, %v1860, %v1861
        %v1863 = vrot.slane %v1540, 1
        %v1864 = vsel %vm755, %v1861, %v1863
        %v1865 = vrot.slane %v1541, 1
        %v1866 = vrot.slane %v1542, 1
        %v1867 = vsel %vm755, %v1865, %v1866
        %v1868 = vrot.slane %v1543, 1
        %v1869 = vsel %vm755, %v1866, %v1868
        %v1870 = vrot.slane %v1544, 1
        %v1871 = vrot.slane %v1545, 1
        %v1872 = vsel %vm755, %v1870, %v1871
        %v1873 = vrot.slane %v1546, 1
        %v1874 = vsel %vm755, %v1871, %v1873
        %v1875 = vrot.slane %v1547, 1
        %v1876 = vrot.slane %v1548, 1
        %v1877 = vsel %vm755, %v1875, %v1876
        %v1878 = vrot.slane %v1549, 1
        %v1879 = vsel %vm755, %v1876, %v1878
        %v1912 = vpack.c.bf16 %v1804, %v1802
        %v1913 = vpack.c.bf16 %v1809, %v1807
        %v1914 = vpack.c.bf16 %v1814, %v1812
        %v1915 = vpack.c.bf16 %v1819, %v1817
        %v1916 = vpack.c.bf16 %v1824, %v1822
        %v1917 = vpack.c.bf16 %v1829, %v1827
        %v1918 = vpack.c.bf16 %v1834, %v1832
        %v1919 = vpack.c.bf16 %v1839, %v1837
        %v1920 = vpack.c.bf16 %v1844, %v1842
        %v1921 = vpack.c.bf16 %v1849, %v1847
        %v1922 = vpack.c.bf16 %v1854, %v1852
        %v1923 = vpack.c.bf16 %v1859, %v1857
        %v1924 = vpack.c.bf16 %v1864, %v1862
        %v1925 = vpack.c.bf16 %v1869, %v1867
        %v1926 = vpack.c.bf16 %v1874, %v1872
        %v1927 = vpack.c.bf16 %v1879, %v1877
        %s1928 = scalar_lea.vmem %s3, 64
        %v1929 = vld [vmem:[%s1928] sm:$0xf]
        %v1930 = vld [vmem:[%s1928 + $0x4] sm:$0xf]
        %v1931 = vld [vmem:[%s1928 + $0x8] sm:$0xf]
        %v1932 = vld [vmem:[%s1928 + $0xc] sm:$0xf]
        %v1937 = vunpack.c.l.b16 %v1929
        %v1938 = vunpack.c.l.b16 %v1930
        %v1939 = vunpack.c.l.b16 %v1931
        %v1940 = vunpack.c.l.b16 %v1932
        %v1941 = vpack.c.b16 %v1938, %v1937
        %v1942 = vpack.c.b16 %v1940, %v1939
        %v1946 = vsel %vm264, %v1912, 0
        %v1949 = vsel %vm264, %v1913, 0
        %v1952 = vsel %vm264, %v1914, 0
        %v1955 = vsel %vm264, %v1915, 0
        %v1958 = vsel %vm264, %v1916, 0
        %v1961 = vsel %vm264, %v1917, 0
        %v1964 = vsel %vm264, %v1918, 0
        %v1967 = vsel %vm264, %v1919, 0
        %v1970 = vsel %vm264, %v1920, 0
        %v1973 = vsel %vm264, %v1921, 0
        %v1976 = vsel %vm264, %v1922, 0
        %v1979 = vsel %vm264, %v1923, 0
        %v1982 = vsel %vm264, %v1924, 0
        %v1985 = vsel %vm264, %v1925, 0
        %v1988 = vsel %vm264, %v1926, 0
        %v1991 = vsel %vm264, %v1927, 0
        %1993 = vmatpush.bf16.msra.mxu0 0
        %1994 = vmatpush.bf16.msra.mxu0 0
        %1995 = vmatpush.bf16.msra.mxu0 0
        %1996 = vmatpush.bf16.msra.mxu0 0
        %1997 = vmatpush.bf16.msra.mxu0 0
        %1998 = vmatpush.bf16.msra.mxu0 0
        %1999 = vmatpush.bf16.msra.mxu0 %v1942
        %2000 = vmatpush.bf16.msra.mxu0 %v1941
        %2001 = vmatmul.bf16.gmra.mxu0 %v1946
        %v2002 = vpop.f32.mrf.mxu0
        %v2003 = vadd.f32 0.0, %v2002
        %v2004 = vpop.f32.mrf.mxu0
        %v2005 = vadd.f32 0.0, %v2004
        %2006 = vmatmul.bf16.gmra.mxu0 %v1949
        %v2007 = vpop.f32.mrf.mxu0
        %v2008 = vadd.f32 0.0, %v2007
        %v2009 = vpop.f32.mrf.mxu0
        %v2010 = vadd.f32 0.0, %v2009
        %2011 = vmatmul.bf16.gmra.mxu0 %v1952
        %v2012 = vpop.f32.mrf.mxu0
        %v2013 = vadd.f32 0.0, %v2012
        %v2014 = vpop.f32.mrf.mxu0
        %v2015 = vadd.f32 0.0, %v2014
        %2016 = vmatmul.bf16.gmra.mxu0 %v1955
        %v2017 = vpop.f32.mrf.mxu0
        %v2018 = vadd.f32 0.0, %v2017
        %v2019 = vpop.f32.mrf.mxu0
        %v2020 = vadd.f32 0.0, %v2019
        %2021 = vmatmul.bf16.gmra.mxu0 %v1958
        %v2022 = vpop.f32.mrf.mxu0
        %v2023 = vadd.f32 0.0, %v2022
        %v2024 = vpop.f32.mrf.mxu0
        %v2025 = vadd.f32 0.0, %v2024
        %2026 = vmatmul.bf16.gmra.mxu0 %v1961
        %v2027 = vpop.f32.mrf.mxu0
        %v2028 = vadd.f32 0.0, %v2027
        %v2029 = vpop.f32.mrf.mxu0
        %v2030 = vadd.f32 0.0, %v2029
        %2031 = vmatmul.bf16.gmra.mxu0 %v1964
        %v2032 = vpop.f32.mrf.mxu0
        %v2033 = vadd.f32 0.0, %v2032
        %v2034 = vpop.f32.mrf.mxu0
        %v2035 = vadd.f32 0.0, %v2034
        %2036 = vmatmul.bf16.gmra.mxu0 %v1967
        %v2037 = vpop.f32.mrf.mxu0
        %v2038 = vadd.f32 0.0, %v2037
        %v2039 = vpop.f32.mrf.mxu0
        %v2040 = vadd.f32 0.0, %v2039
        %2041 = vmatmul.bf16.gmra.mxu0 %v1970
        %v2042 = vpop.f32.mrf.mxu0
        %v2043 = vadd.f32 0.0, %v2042
        %v2044 = vpop.f32.mrf.mxu0
        %v2045 = vadd.f32 0.0, %v2044
        %2046 = vmatmul.bf16.gmra.mxu0 %v1973
        %v2047 = vpop.f32.mrf.mxu0
        %v2048 = vadd.f32 0.0, %v2047
        %v2049 = vpop.f32.mrf.mxu0
        %v2050 = vadd.f32 0.0, %v2049
        %2051 = vmatmul.bf16.gmra.mxu0 %v1976
        %v2052 = vpop.f32.mrf.mxu0
        %v2053 = vadd.f32 0.0, %v2052
        %v2054 = vpop.f32.mrf.mxu0
        %v2055 = vadd.f32 0.0, %v2054
        %2056 = vmatmul.bf16.gmra.mxu0 %v1979
        %v2057 = vpop.f32.mrf.mxu0
        %v2058 = vadd.f32 0.0, %v2057
        %v2059 = vpop.f32.mrf.mxu0
        %v2060 = vadd.f32 0.0, %v2059
        %2061 = vmatmul.bf16.gmra.mxu0 %v1982
        %v2062 = vpop.f32.mrf.mxu0
        %v2063 = vadd.f32 0.0, %v2062
        %v2064 = vpop.f32.mrf.mxu0
        %v2065 = vadd.f32 0.0, %v2064
        %2066 = vmatmul.bf16.gmra.mxu0 %v1985
        %v2067 = vpop.f32.mrf.mxu0
        %v2068 = vadd.f32 0.0, %v2067
        %v2069 = vpop.f32.mrf.mxu0
        %v2070 = vadd.f32 0.0, %v2069
        %2071 = vmatmul.bf16.gmra.mxu0 %v1988
        %v2072 = vpop.f32.mrf.mxu0
        %v2073 = vadd.f32 0.0, %v2072
        %v2074 = vpop.f32.mrf.mxu0
        %v2075 = vadd.f32 0.0, %v2074
        %2076 = vmatmul.bf16.gmra.mxu0 %v1991
        %v2077 = vpop.f32.mrf.mxu0
        %v2078 = vadd.f32 0.0, %v2077
        %v2079 = vpop.f32.mrf.mxu0
        %v2080 = vadd.f32 0.0, %v2079
        %2081 = vdwg.mxu0
        %v2082 = vadd.f32 %v1720, %v2003
        %v2083 = vadd.f32 %v1721, %v2005
        %v2084 = vadd.f32 %v1722, %v2008
        %v2085 = vadd.f32 %v1723, %v2010
        %v2086 = vadd.f32 %v1724, %v2013
        %v2087 = vadd.f32 %v1725, %v2015
        %v2088 = vadd.f32 %v1726, %v2018
        %v2089 = vadd.f32 %v1727, %v2020
        %v2090 = vadd.f32 %v1728, %v2023
        %v2091 = vadd.f32 %v1729, %v2025
        %v2092 = vadd.f32 %v1730, %v2028
        %v2093 = vadd.f32 %v1731, %v2030
        %v2094 = vadd.f32 %v1732, %v2033
        %v2095 = vadd.f32 %v1733, %v2035
        %v2096 = vadd.f32 %v1734, %v2038
        %v2097 = vadd.f32 %v1735, %v2040
        %v2098 = vadd.f32 %v1736, %v2043
        %v2099 = vadd.f32 %v1737, %v2045
        %v2100 = vadd.f32 %v1738, %v2048
        %v2101 = vadd.f32 %v1739, %v2050
        %v2102 = vadd.f32 %v1740, %v2053
        %v2103 = vadd.f32 %v1741, %v2055
        %v2104 = vadd.f32 %v1742, %v2058
        %v2105 = vadd.f32 %v1743, %v2060
        %v2106 = vadd.f32 %v1744, %v2063
        %v2107 = vadd.f32 %v1745, %v2065
        %v2108 = vadd.f32 %v1746, %v2068
        %v2109 = vadd.f32 %v1747, %v2070
        %v2110 = vadd.f32 %v1748, %v2073
        %v2111 = vadd.f32 %v1749, %v2075
        %v2112 = vadd.f32 %v1750, %v2078
        %v2113 = vadd.f32 %v1751, %v2080
        %v2114 = vrot.slane %v1502, 2
        %v2115 = vrot.slane %v1503, 2
        %v2116 = vsel %vm1187, %v2114, %v2115
        %v2117 = vrot.slane %v1504, 2
        %v2118 = vsel %vm1187, %v2115, %v2117
        %v2119 = vrot.slane %v1505, 2
        %v2120 = vrot.slane %v1506, 2
        %v2121 = vsel %vm1187, %v2119, %v2120
        %v2122 = vrot.slane %v1507, 2
        %v2123 = vsel %vm1187, %v2120, %v2122
        %v2124 = vrot.slane %v1508, 2
        %v2125 = vrot.slane %v1509, 2
        %v2126 = vsel %vm1187, %v2124, %v2125
        %v2127 = vrot.slane %v1510, 2
        %v2128 = vsel %vm1187, %v2125, %v2127
        %v2129 = vrot.slane %v1511, 2
        %v2130 = vrot.slane %v1512, 2
        %v2131 = vsel %vm1187, %v2129, %v2130
        %v2132 = vrot.slane %v1513, 2
        %v2133 = vsel %vm1187, %v2130, %v2132
        %v2134 = vrot.slane %v1514, 2
        %v2135 = vrot.slane %v1515, 2
        %v2136 = vsel %vm1187, %v2134, %v2135
        %v2137 = vrot.slane %v1516, 2
        %v2138 = vsel %vm1187, %v2135, %v2137
        %v2139 = vrot.slane %v1517, 2
        %v2140 = vrot.slane %v1518, 2
        %v2141 = vsel %vm1187, %v2139, %v2140
        %v2142 = vrot.slane %v1519, 2
        %v2143 = vsel %vm1187, %v2140, %v2142
        %v2144 = vrot.slane %v1520, 2
        %v2145 = vrot.slane %v1521, 2
        %v2146 = vsel %vm1187, %v2144, %v2145
        %v2147 = vrot.slane %v1522, 2
        %v2148 = vsel %vm1187, %v2145, %v2147
        %v2149 = vrot.slane %v1523, 2
        %v2150 = vrot.slane %v1524, 2
        %v2151 = vsel %vm1187, %v2149, %v2150
        %v2152 = vrot.slane %v1525, 2
        %v2153 = vsel %vm1187, %v2150, %v2152
        %v2154 = vrot.slane %v1526, 2
        %v2155 = vrot.slane %v1527, 2
        %v2156 = vsel %vm1187, %v2154, %v2155
        %v2157 = vrot.slane %v1528, 2
        %v2158 = vsel %vm1187, %v2155, %v2157
        %v2159 = vrot.slane %v1529, 2
        %v2160 = vrot.slane %v1530, 2
        %v2161 = vsel %vm1187, %v2159, %v2160
        %v2162 = vrot.slane %v1531, 2
        %v2163 = vsel %vm1187, %v2160, %v2162
        %v2164 = vrot.slane %v1532, 2
        %v2165 = vrot.slane %v1533, 2
        %v2166 = vsel %vm1187, %v2164, %v2165
        %v2167 = vrot.slane %v1534, 2
        %v2168 = vsel %vm1187, %v2165, %v2167
        %v2169 = vrot.slane %v1535, 2
        %v2170 = vrot.slane %v1536, 2
        %v2171 = vsel %vm1187, %v2169, %v2170
        %v2172 = vrot.slane %v1537, 2
        %v2173 = vsel %vm1187, %v2170, %v2172
        %v2174 = vrot.slane %v1538, 2
        %v2175 = vrot.slane %v1539, 2
        %v2176 = vsel %vm1187, %v2174, %v2175
        %v2177 = vrot.slane %v1540, 2
        %v2178 = vsel %vm1187, %v2175, %v2177
        %v2179 = vrot.slane %v1541, 2
        %v2180 = vrot.slane %v1542, 2
        %v2181 = vsel %vm1187, %v2179, %v2180
        %v2182 = vrot.slane %v1543, 2
        %v2183 = vsel %vm1187, %v2180, %v2182
        %v2184 = vrot.slane %v1544, 2
        %v2185 = vrot.slane %v1545, 2
        %v2186 = vsel %vm1187, %v2184, %v2185
        %v2187 = vrot.slane %v1546, 2
        %v2188 = vsel %vm1187, %v2185, %v2187
        %v2189 = vrot.slane %v1547, 2
        %v2190 = vrot.slane %v1548, 2
        %v2191 = vsel %vm1187, %v2189, %v2190
        %v2192 = vrot.slane %v1549, 2
        %v2193 = vsel %vm1187, %v2190, %v2192
        %v2226 = vpack.c.bf16 %v2118, %v2116
        %v2227 = vpack.c.bf16 %v2123, %v2121
        %v2228 = vpack.c.bf16 %v2128, %v2126
        %v2229 = vpack.c.bf16 %v2133, %v2131
        %v2230 = vpack.c.bf16 %v2138, %v2136
        %v2231 = vpack.c.bf16 %v2143, %v2141
        %v2232 = vpack.c.bf16 %v2148, %v2146
        %v2233 = vpack.c.bf16 %v2153, %v2151
        %v2234 = vpack.c.bf16 %v2158, %v2156
        %v2235 = vpack.c.bf16 %v2163, %v2161
        %v2236 = vpack.c.bf16 %v2168, %v2166
        %v2237 = vpack.c.bf16 %v2173, %v2171
        %v2238 = vpack.c.bf16 %v2178, %v2176
        %v2239 = vpack.c.bf16 %v2183, %v2181
        %v2240 = vpack.c.bf16 %v2188, %v2186
        %v2241 = vpack.c.bf16 %v2193, %v2191
        %s2242 = scalar_lea.vmem %s3, 80
        %v2243 = vld [vmem:[%s2242] sm:$0xf]
        %v2244 = vld [vmem:[%s2242 + $0x4] sm:$0xf]
        %v2245 = vld [vmem:[%s2242 + $0x8] sm:$0xf]
        %v2246 = vld [vmem:[%s2242 + $0xc] sm:$0xf]
        %v2251 = vunpack.c.l.b16 %v2243
        %v2252 = vunpack.c.l.b16 %v2244
        %v2253 = vunpack.c.l.b16 %v2245
        %v2254 = vunpack.c.l.b16 %v2246
        %v2255 = vpack.c.b16 %v2252, %v2251
        %v2256 = vpack.c.b16 %v2254, %v2253
        %v2260 = vsel %vm264, %v2226, 0
        %v2263 = vsel %vm264, %v2227, 0
        %v2266 = vsel %vm264, %v2228, 0
        %v2269 = vsel %vm264, %v2229, 0
        %v2272 = vsel %vm264, %v2230, 0
        %v2275 = vsel %vm264, %v2231, 0
        %v2278 = vsel %vm264, %v2232, 0
        %v2281 = vsel %vm264, %v2233, 0
        %v2284 = vsel %vm264, %v2234, 0
        %v2287 = vsel %vm264, %v2235, 0
        %v2290 = vsel %vm264, %v2236, 0
        %v2293 = vsel %vm264, %v2237, 0
        %v2296 = vsel %vm264, %v2238, 0
        %v2299 = vsel %vm264, %v2239, 0
        %v2302 = vsel %vm264, %v2240, 0
        %v2305 = vsel %vm264, %v2241, 0
        %2307 = vmatpush.bf16.msra.mxu0 0
        %2308 = vmatpush.bf16.msra.mxu0 0
        %2309 = vmatpush.bf16.msra.mxu0 0
        %2310 = vmatpush.bf16.msra.mxu0 0
        %2311 = vmatpush.bf16.msra.mxu0 0
        %2312 = vmatpush.bf16.msra.mxu0 0
        %2313 = vmatpush.bf16.msra.mxu0 %v2256
        %2314 = vmatpush.bf16.msra.mxu0 %v2255
        %2315 = vmatmul.bf16.gmra.mxu0 %v2260
        %v2316 = vpop.f32.mrf.mxu0
        %v2317 = vadd.f32 0.0, %v2316
        %v2318 = vpop.f32.mrf.mxu0
        %v2319 = vadd.f32 0.0, %v2318
        %2320 = vmatmul.bf16.gmra.mxu0 %v2263
        %v2321 = vpop.f32.mrf.mxu0
        %v2322 = vadd.f32 0.0, %v2321
        %v2323 = vpop.f32.mrf.mxu0
        %v2324 = vadd.f32 0.0, %v2323
        %2325 = vmatmul.bf16.gmra.mxu0 %v2266
        %v2326 = vpop.f32.mrf.mxu0
        %v2327 = vadd.f32 0.0, %v2326
        %v2328 = vpop.f32.mrf.mxu0
        %v2329 = vadd.f32 0.0, %v2328
        %2330 = vmatmul.bf16.gmra.mxu0 %v2269
        %v2331 = vpop.f32.mrf.mxu0
        %v2332 = vadd.f32 0.0, %v2331
        %v2333 = vpop.f32.mrf.mxu0
        %v2334 = vadd.f32 0.0, %v2333
        %2335 = vmatmul.bf16.gmra.mxu0 %v2272
        %v2336 = vpop.f32.mrf.mxu0
        %v2337 = vadd.f32 0.0, %v2336
        %v2338 = vpop.f32.mrf.mxu0
        %v2339 = vadd.f32 0.0, %v2338
        %2340 = vmatmul.bf16.gmra.mxu0 %v2275
        %v2341 = vpop.f32.mrf.mxu0
        %v2342 = vadd.f32 0.0, %v2341
        %v2343 = vpop.f32.mrf.mxu0
        %v2344 = vadd.f32 0.0, %v2343
        %2345 = vmatmul.bf16.gmra.mxu0 %v2278
        %v2346 = vpop.f32.mrf.mxu0
        %v2347 = vadd.f32 0.0, %v2346
        %v2348 = vpop.f32.mrf.mxu0
        %v2349 = vadd.f32 0.0, %v2348
        %2350 = vmatmul.bf16.gmra.mxu0 %v2281
        %v2351 = vpop.f32.mrf.mxu0
        %v2352 = vadd.f32 0.0, %v2351
        %v2353 = vpop.f32.mrf.mxu0
        %v2354 = vadd.f32 0.0, %v2353
        %2355 = vmatmul.bf16.gmra.mxu0 %v2284
        %v2356 = vpop.f32.mrf.mxu0
        %v2357 = vadd.f32 0.0, %v2356
        %v2358 = vpop.f32.mrf.mxu0
        %v2359 = vadd.f32 0.0, %v2358
        %2360 = vmatmul.bf16.gmra.mxu0 %v2287
        %v2361 = vpop.f32.mrf.mxu0
        %v2362 = vadd.f32 0.0, %v2361
        %v2363 = vpop.f32.mrf.mxu0
        %v2364 = vadd.f32 0.0, %v2363
        %2365 = vmatmul.bf16.gmra.mxu0 %v2290
        %v2366 = vpop.f32.mrf.mxu0
        %v2367 = vadd.f32 0.0, %v2366
        %v2368 = vpop.f32.mrf.mxu0
        %v2369 = vadd.f32 0.0, %v2368
        %2370 = vmatmul.bf16.gmra.mxu0 %v2293
        %v2371 = vpop.f32.mrf.mxu0
        %v2372 = vadd.f32 0.0, %v2371
        %v2373 = vpop.f32.mrf.mxu0
        %v2374 = vadd.f32 0.0, %v2373
        %2375 = vmatmul.bf16.gmra.mxu0 %v2296
        %v2376 = vpop.f32.mrf.mxu0
        %v2377 = vadd.f32 0.0, %v2376
        %v2378 = vpop.f32.mrf.mxu0
        %v2379 = vadd.f32 0.0, %v2378
        %2380 = vmatmul.bf16.gmra.mxu0 %v2299
        %v2381 = vpop.f32.mrf.mxu0
        %v2382 = vadd.f32 0.0, %v2381
        %v2383 = vpop.f32.mrf.mxu0
        %v2384 = vadd.f32 0.0, %v2383
        %2385 = vmatmul.bf16.gmra.mxu0 %v2302
        %v2386 = vpop.f32.mrf.mxu0
        %v2387 = vadd.f32 0.0, %v2386
        %v2388 = vpop.f32.mrf.mxu0
        %v2389 = vadd.f32 0.0, %v2388
        %2390 = vmatmul.bf16.gmra.mxu0 %v2305
        %v2391 = vpop.f32.mrf.mxu0
        %v2392 = vadd.f32 0.0, %v2391
        %v2393 = vpop.f32.mrf.mxu0
        %v2394 = vadd.f32 0.0, %v2393
        %2395 = vdwg.mxu0
        %v2396 = vadd.f32 %v2082, %v2317
        %v2397 = vadd.f32 %v2083, %v2319
        %v2398 = vadd.f32 %v2084, %v2322
        %v2399 = vadd.f32 %v2085, %v2324
        %v2400 = vadd.f32 %v2086, %v2327
        %v2401 = vadd.f32 %v2087, %v2329
        %v2402 = vadd.f32 %v2088, %v2332
        %v2403 = vadd.f32 %v2089, %v2334
        %v2404 = vadd.f32 %v2090, %v2337
        %v2405 = vadd.f32 %v2091, %v2339
        %v2406 = vadd.f32 %v2092, %v2342
        %v2407 = vadd.f32 %v2093, %v2344
        %v2408 = vadd.f32 %v2094, %v2347
        %v2409 = vadd.f32 %v2095, %v2349
        %v2410 = vadd.f32 %v2096, %v2352
        %v2411 = vadd.f32 %v2097, %v2354
        %v2412 = vadd.f32 %v2098, %v2357
        %v2413 = vadd.f32 %v2099, %v2359
        %v2414 = vadd.f32 %v2100, %v2362
        %v2415 = vadd.f32 %v2101, %v2364
        %v2416 = vadd.f32 %v2102, %v2367
        %v2417 = vadd.f32 %v2103, %v2369
        %v2418 = vadd.f32 %v2104, %v2372
        %v2419 = vadd.f32 %v2105, %v2374
        %v2420 = vadd.f32 %v2106, %v2377
        %v2421 = vadd.f32 %v2107, %v2379
        %v2422 = vadd.f32 %v2108, %v2382
        %v2423 = vadd.f32 %v2109, %v2384
        %v2424 = vadd.f32 %v2110, %v2387
        %v2425 = vadd.f32 %v2111, %v2389
        %v2426 = vadd.f32 %v2112, %v2392
        %v2427 = vadd.f32 %v2113, %v2394
        %s2428 = scalar_lea.vmem [#allocation2], 48
        %v2429 = vld [vmem:[%s2428] sm:$0xff]
        %v2430 = vld [vmem:[%s2428 + $0x8] sm:$0xff]
        %v2431 = vld [vmem:[%s2428 + $0x10] sm:$0x3]
        %v2432 = vld [vmem:[%s2428 + $0x18] sm:$0xff]
        %v2433 = vld [vmem:[%s2428 + $0x20] sm:$0xff]
        %v2434 = vld [vmem:[%s2428 + $0x28] sm:$0x3]
        %v2435 = vld [vmem:[%s2428 + $0x30] sm:$0xff]
        %v2436 = vld [vmem:[%s2428 + $0x38] sm:$0xff]
        %v2437 = vld [vmem:[%s2428 + $0x40] sm:$0x3]
        %v2438 = vld [vmem:[%s2428 + $0x48] sm:$0xff]
        %v2439 = vld [vmem:[%s2428 + $0x50] sm:$0xff]
        %v2440 = vld [vmem:[%s2428 + $0x58] sm:$0x3]
        %v2441 = vld [vmem:[%s2428 + $0x60] sm:$0xff]
        %v2442 = vld [vmem:[%s2428 + $0x68] sm:$0xff]
        %v2443 = vld [vmem:[%s2428 + $0x70] sm:$0x3]
        %v2444 = vld [vmem:[%s2428 + $0x78] sm:$0xff]
        %v2445 = vld [vmem:[%s2428 + $0x80] sm:$0xff]
        %v2446 = vld [vmem:[%s2428 + $0x88] sm:$0x3]
        %v2447 = vld [vmem:[%s2428 + $0x90] sm:$0xff]
        %v2448 = vld [vmem:[%s2428 + $0x98] sm:$0xff]
        %v2449 = vld [vmem:[%s2428 + $0xa0] sm:$0x3]
        %v2450 = vld [vmem:[%s2428 + $0xa8] sm:$0xff]
        %v2451 = vld [vmem:[%s2428 + $0xb0] sm:$0xff]
        %v2452 = vld [vmem:[%s2428 + $0xb8] sm:$0x3]
        %v2453 = vld [vmem:[%s2428 + $0xc0] sm:$0xff]
        %v2454 = vld [vmem:[%s2428 + $0xc8] sm:$0xff]
        %v2455 = vld [vmem:[%s2428 + $0xd0] sm:$0x3]
        %v2456 = vld [vmem:[%s2428 + $0xd8] sm:$0xff]
        %v2457 = vld [vmem:[%s2428 + $0xe0] sm:$0xff]
        %v2458 = vld [vmem:[%s2428 + $0xe8] sm:$0x3]
        %v2459 = vld [vmem:[%s2428 + $0xf0] sm:$0xff]
        %v2460 = vld [vmem:[%s2428 + $0xf8] sm:$0xff]
        %v2461 = vld [vmem:[%s2428 + $0x100] sm:$0x3]
        %v2462 = vld [vmem:[%s2428 + $0x108] sm:$0xff]
        %v2463 = vld [vmem:[%s2428 + $0x110] sm:$0xff]
        %v2464 = vld [vmem:[%s2428 + $0x118] sm:$0x3]
        %v2465 = vld [vmem:[%s2428 + $0x120] sm:$0xff]
        %v2466 = vld [vmem:[%s2428 + $0x128] sm:$0xff]
        %v2467 = vld [vmem:[%s2428 + $0x130] sm:$0x3]
        %v2468 = vld [vmem:[%s2428 + $0x138] sm:$0xff]
        %v2469 = vld [vmem:[%s2428 + $0x140] sm:$0xff]
        %v2470 = vld [vmem:[%s2428 + $0x148] sm:$0x3]
        %v2471 = vld [vmem:[%s2428 + $0x150] sm:$0xff]
        %v2472 = vld [vmem:[%s2428 + $0x158] sm:$0xff]
        %v2473 = vld [vmem:[%s2428 + $0x160] sm:$0x3]
        %v2474 = vld [vmem:[%s2428 + $0x168] sm:$0xff]
        %v2475 = vld [vmem:[%s2428 + $0x170] sm:$0xff]
        %v2476 = vld [vmem:[%s2428 + $0x178] sm:$0x3]
        %v2477 = vpack.c.bf16 %v2430, %v2429
        %v2478 = vpack.c.bf16 %v2433, %v2432
        %v2479 = vpack.c.bf16 %v2436, %v2435
        %v2480 = vpack.c.bf16 %v2439, %v2438
        %v2481 = vpack.c.bf16 %v2442, %v2441
        %v2482 = vpack.c.bf16 %v2445, %v2444
        %v2483 = vpack.c.bf16 %v2448, %v2447
        %v2484 = vpack.c.bf16 %v2451, %v2450
        %v2485 = vpack.c.bf16 %v2454, %v2453
        %v2486 = vpack.c.bf16 %v2457, %v2456
        %v2487 = vpack.c.bf16 %v2460, %v2459
        %v2488 = vpack.c.bf16 %v2463, %v2462
        %v2489 = vpack.c.bf16 %v2466, %v2465
        %v2490 = vpack.c.bf16 %v2469, %v2468
        %v2491 = vpack.c.bf16 %v2472, %v2471
        %v2492 = vpack.c.bf16 %v2475, %v2474
        %s2493 = scalar_lea.vmem %s3, 96
        %v2494 = vld [vmem:[%s2493] sm:$0xf]
        %v2495 = vld [vmem:[%s2493 + $0x4] sm:$0xf]
        %v2496 = vld [vmem:[%s2493 + $0x8] sm:$0xf]
        %v2497 = vld [vmem:[%s2493 + $0xc] sm:$0xf]
        %v2502 = vunpack.c.l.b16 %v2494
        %v2503 = vunpack.c.l.b16 %v2495
        %v2504 = vunpack.c.l.b16 %v2496
        %v2505 = vunpack.c.l.b16 %v2497
        %v2506 = vpack.c.b16 %v2503, %v2502
        %v2507 = vpack.c.b16 %v2505, %v2504
        %v2511 = vsel %vm264, %v2477, 0
        %v2514 = vsel %vm264, %v2478, 0
        %v2517 = vsel %vm264, %v2479, 0
        %v2520 = vsel %vm264, %v2480, 0
        %v2523 = vsel %vm264, %v2481, 0
        %v2526 = vsel %vm264, %v2482, 0
        %v2529 = vsel %vm264, %v2483, 0
        %v2532 = vsel %vm264, %v2484, 0
        %v2535 = vsel %vm264, %v2485, 0
        %v2538 = vsel %vm264, %v2486, 0
        %v2541 = vsel %vm264, %v2487, 0
        %v2544 = vsel %vm264, %v2488, 0
        %v2547 = vsel %vm264, %v2489, 0
        %v2550 = vsel %vm264, %v2490, 0
        %v2553 = vsel %vm264, %v2491, 0
        %v2556 = vsel %vm264, %v2492, 0
        %2558 = vmatpush.bf16.msra.mxu0 0
        %2559 = vmatpush.bf16.msra.mxu0 0
        %2560 = vmatpush.bf16.msra.mxu0 0
        %2561 = vmatpush.bf16.msra.mxu0 0
        %2562 = vmatpush.bf16.msra.mxu0 0
        %2563 = vmatpush.bf16.msra.mxu0 0
        %2564 = vmatpush.bf16.msra.mxu0 %v2507
        %2565 = vmatpush.bf16.msra.mxu0 %v2506
        %2566 = vmatmul.bf16.gmra.mxu0 %v2511
        %v2567 = vpop.f32.mrf.mxu0
        %v2568 = vadd.f32 0.0, %v2567
        %v2569 = vpop.f32.mrf.mxu0
        %v2570 = vadd.f32 0.0, %v2569
        %2571 = vmatmul.bf16.gmra.mxu0 %v2514
        %v2572 = vpop.f32.mrf.mxu0
        %v2573 = vadd.f32 0.0, %v2572
        %v2574 = vpop.f32.mrf.mxu0
        %v2575 = vadd.f32 0.0, %v2574
        %2576 = vmatmul.bf16.gmra.mxu0 %v2517
        %v2577 = vpop.f32.mrf.mxu0
        %v2578 = vadd.f32 0.0, %v2577
        %v2579 = vpop.f32.mrf.mxu0
        %v2580 = vadd.f32 0.0, %v2579
        %2581 = vmatmul.bf16.gmra.mxu0 %v2520
        %v2582 = vpop.f32.mrf.mxu0
        %v2583 = vadd.f32 0.0, %v2582
        %v2584 = vpop.f32.mrf.mxu0
        %v2585 = vadd.f32 0.0, %v2584
        %2586 = vmatmul.bf16.gmra.mxu0 %v2523
        %v2587 = vpop.f32.mrf.mxu0
        %v2588 = vadd.f32 0.0, %v2587
        %v2589 = vpop.f32.mrf.mxu0
        %v2590 = vadd.f32 0.0, %v2589
        %2591 = vmatmul.bf16.gmra.mxu0 %v2526
        %v2592 = vpop.f32.mrf.mxu0
        %v2593 = vadd.f32 0.0, %v2592
        %v2594 = vpop.f32.mrf.mxu0
        %v2595 = vadd.f32 0.0, %v2594
        %2596 = vmatmul.bf16.gmra.mxu0 %v2529
        %v2597 = vpop.f32.mrf.mxu0
        %v2598 = vadd.f32 0.0, %v2597
        %v2599 = vpop.f32.mrf.mxu0
        %v2600 = vadd.f32 0.0, %v2599
        %2601 = vmatmul.bf16.gmra.mxu0 %v2532
        %v2602 = vpop.f32.mrf.mxu0
        %v2603 = vadd.f32 0.0, %v2602
        %v2604 = vpop.f32.mrf.mxu0
        %v2605 = vadd.f32 0.0, %v2604
        %2606 = vmatmul.bf16.gmra.mxu0 %v2535
        %v2607 = vpop.f32.mrf.mxu0
        %v2608 = vadd.f32 0.0, %v2607
        %v2609 = vpop.f32.mrf.mxu0
        %v2610 = vadd.f32 0.0, %v2609
        %2611 = vmatmul.bf16.gmra.mxu0 %v2538
        %v2612 = vpop.f32.mrf.mxu0
        %v2613 = vadd.f32 0.0, %v2612
        %v2614 = vpop.f32.mrf.mxu0
        %v2615 = vadd.f32 0.0, %v2614
        %2616 = vmatmul.bf16.gmra.mxu0 %v2541
        %v2617 = vpop.f32.mrf.mxu0
        %v2618 = vadd.f32 0.0, %v2617
        %v2619 = vpop.f32.mrf.mxu0
        %v2620 = vadd.f32 0.0, %v2619
        %2621 = vmatmul.bf16.gmra.mxu0 %v2544
        %v2622 = vpop.f32.mrf.mxu0
        %v2623 = vadd.f32 0.0, %v2622
        %v2624 = vpop.f32.mrf.mxu0
        %v2625 = vadd.f32 0.0, %v2624
        %2626 = vmatmul.bf16.gmra.mxu0 %v2547
        %v2627 = vpop.f32.mrf.mxu0
        %v2628 = vadd.f32 0.0, %v2627
        %v2629 = vpop.f32.mrf.mxu0
        %v2630 = vadd.f32 0.0, %v2629
        %2631 = vmatmul.bf16.gmra.mxu0 %v2550
        %v2632 = vpop.f32.mrf.mxu0
        %v2633 = vadd.f32 0.0, %v2632
        %v2634 = vpop.f32.mrf.mxu0
        %v2635 = vadd.f32 0.0, %v2634
        %2636 = vmatmul.bf16.gmra.mxu0 %v2553
        %v2637 = vpop.f32.mrf.mxu0
        %v2638 = vadd.f32 0.0, %v2637
        %v2639 = vpop.f32.mrf.mxu0
        %v2640 = vadd.f32 0.0, %v2639
        %2641 = vmatmul.bf16.gmra.mxu0 %v2556
        %v2642 = vpop.f32.mrf.mxu0
        %v2643 = vadd.f32 0.0, %v2642
        %v2644 = vpop.f32.mrf.mxu0
        %v2645 = vadd.f32 0.0, %v2644
        %2646 = vdwg.mxu0
        %v2647 = vadd.f32 %v2396, %v2568
        %v2648 = vadd.f32 %v2397, %v2570
        %v2649 = vadd.f32 %v2398, %v2573
        %v2650 = vadd.f32 %v2399, %v2575
        %v2651 = vadd.f32 %v2400, %v2578
        %v2652 = vadd.f32 %v2401, %v2580
        %v2653 = vadd.f32 %v2402, %v2583
        %v2654 = vadd.f32 %v2403, %v2585
        %v2655 = vadd.f32 %v2404, %v2588
        %v2656 = vadd.f32 %v2405, %v2590
        %v2657 = vadd.f32 %v2406, %v2593
        %v2658 = vadd.f32 %v2407, %v2595
        %v2659 = vadd.f32 %v2408, %v2598
        %v2660 = vadd.f32 %v2409, %v2600
        %v2661 = vadd.f32 %v2410, %v2603
        %v2662 = vadd.f32 %v2411, %v2605
        %v2663 = vadd.f32 %v2412, %v2608
        %v2664 = vadd.f32 %v2413, %v2610
        %v2665 = vadd.f32 %v2414, %v2613
        %v2666 = vadd.f32 %v2415, %v2615
        %v2667 = vadd.f32 %v2416, %v2618
        %v2668 = vadd.f32 %v2417, %v2620
        %v2669 = vadd.f32 %v2418, %v2623
        %v2670 = vadd.f32 %v2419, %v2625
        %v2671 = vadd.f32 %v2420, %v2628
        %v2672 = vadd.f32 %v2421, %v2630
        %v2673 = vadd.f32 %v2422, %v2633
        %v2674 = vadd.f32 %v2423, %v2635
        %v2675 = vadd.f32 %v2424, %v2638
        %v2676 = vadd.f32 %v2425, %v2640
        %v2677 = vadd.f32 %v2426, %v2643
        %v2678 = vadd.f32 %v2427, %v2645
        %v2727 = vrot.slane %v2429, 1
        %v2728 = vrot.slane %v2430, 1
        %v2729 = vsel %vm755, %v2727, %v2728
        %v2730 = vrot.slane %v2431, 1
        %v2731 = vsel %vm755, %v2728, %v2730
        %v2732 = vrot.slane %v2432, 1
        %v2733 = vrot.slane %v2433, 1
        %v2734 = vsel %vm755, %v2732, %v2733
        %v2735 = vrot.slane %v2434, 1
        %v2736 = vsel %vm755, %v2733, %v2735
        %v2737 = vrot.slane %v2435, 1
        %v2738 = vrot.slane %v2436, 1
        %v2739 = vsel %vm755, %v2737, %v2738
        %v2740 = vrot.slane %v2437, 1
        %v2741 = vsel %vm755, %v2738, %v2740
        %v2742 = vrot.slane %v2438, 1
        %v2743 = vrot.slane %v2439, 1
        %v2744 = vsel %vm755, %v2742, %v2743
        %v2745 = vrot.slane %v2440, 1
        %v2746 = vsel %vm755, %v2743, %v2745
        %v2747 = vrot.slane %v2441, 1
        %v2748 = vrot.slane %v2442, 1
        %v2749 = vsel %vm755, %v2747, %v2748
        %v2750 = vrot.slane %v2443, 1
        %v2751 = vsel %vm755, %v2748, %v2750
        %v2752 = vrot.slane %v2444, 1
        %v2753 = vrot.slane %v2445, 1
        %v2754 = vsel %vm755, %v2752, %v2753
        %v2755 = vrot.slane %v2446, 1
        %v2756 = vsel %vm755, %v2753, %v2755
        %v2757 = vrot.slane %v2447, 1
        %v2758 = vrot.slane %v2448, 1
        %v2759 = vsel %vm755, %v2757, %v2758
        %v2760 = vrot.slane %v2449, 1
        %v2761 = vsel %vm755, %v2758, %v2760
        %v2762 = vrot.slane %v2450, 1
        %v2763 = vrot.slane %v2451, 1
        %v2764 = vsel %vm755, %v2762, %v2763
        %v2765 = vrot.slane %v2452, 1
        %v2766 = vsel %vm755, %v2763, %v2765
        %v2767 = vrot.slane %v2453, 1
        %v2768 = vrot.slane %v2454, 1
        %v2769 = vsel %vm755, %v2767, %v2768
        %v2770 = vrot.slane %v2455, 1
        %v2771 = vsel %vm755, %v2768, %v2770
        %v2772 = vrot.slane %v2456, 1
        %v2773 = vrot.slane %v2457, 1
        %v2774 = vsel %vm755, %v2772, %v2773
        %v2775 = vrot.slane %v2458, 1
        %v2776 = vsel %vm755, %v2773, %v2775
        %v2777 = vrot.slane %v2459, 1
        %v2778 = vrot.slane %v2460, 1
        %v2779 = vsel %vm755, %v2777, %v2778
        %v2780 = vrot.slane %v2461, 1
        %v2781 = vsel %vm755, %v2778, %v2780
        %v2782 = vrot.slane %v2462, 1
        %v2783 = vrot.slane %v2463, 1
        %v2784 = vsel %vm755, %v2782, %v2783
        %v2785 = vrot.slane %v2464, 1
        %v2786 = vsel %vm755, %v2783, %v2785
        %v2787 = vrot.slane %v2465, 1
        %v2788 = vrot.slane %v2466, 1
        %v2789 = vsel %vm755, %v2787, %v2788
        %v2790 = vrot.slane %v2467, 1
        %v2791 = vsel %vm755, %v2788, %v2790
        %v2792 = vrot.slane %v2468, 1
        %v2793 = vrot.slane %v2469, 1
        %v2794 = vsel %vm755, %v2792, %v2793
        %v2795 = vrot.slane %v2470, 1
        %v2796 = vsel %vm755, %v2793, %v2795
        %v2797 = vrot.slane %v2471, 1
        %v2798 = vrot.slane %v2472, 1
        %v2799 = vsel %vm755, %v2797, %v2798
        %v2800 = vrot.slane %v2473, 1
        %v2801 = vsel %vm755, %v2798, %v2800
        %v2802 = vrot.slane %v2474, 1
        %v2803 = vrot.slane %v2475, 1
        %v2804 = vsel %vm755, %v2802, %v2803
        %v2805 = vrot.slane %v2476, 1
        %v2806 = vsel %vm755, %v2803, %v2805
        %v2839 = vpack.c.bf16 %v2731, %v2729
        %v2840 = vpack.c.bf16 %v2736, %v2734
        %v2841 = vpack.c.bf16 %v2741, %v2739
        %v2842 = vpack.c.bf16 %v2746, %v2744
        %v2843 = vpack.c.bf16 %v2751, %v2749
        %v2844 = vpack.c.bf16 %v2756, %v2754
        %v2845 = vpack.c.bf16 %v2761, %v2759
        %v2846 = vpack.c.bf16 %v2766, %v2764
        %v2847 = vpack.c.bf16 %v2771, %v2769
        %v2848 = vpack.c.bf16 %v2776, %v2774
        %v2849 = vpack.c.bf16 %v2781, %v2779
        %v2850 = vpack.c.bf16 %v2786, %v2784
        %v2851 = vpack.c.bf16 %v2791, %v2789
        %v2852 = vpack.c.bf16 %v2796, %v2794
        %v2853 = vpack.c.bf16 %v2801, %v2799
        %v2854 = vpack.c.bf16 %v2806, %v2804
        %s2855 = scalar_lea.vmem %s3, 112
        %v2856 = vld [vmem:[%s2855] sm:$0xf]
        %v2857 = vld [vmem:[%s2855 + $0x4] sm:$0xf]
        %v2858 = vld [vmem:[%s2855 + $0x8] sm:$0xf]
        %v2859 = vld [vmem:[%s2855 + $0xc] sm:$0xf]
        %v2864 = vunpack.c.l.b16 %v2856
        %v2865 = vunpack.c.l.b16 %v2857
        %v2866 = vunpack.c.l.b16 %v2858
        %v2867 = vunpack.c.l.b16 %v2859
        %v2868 = vpack.c.b16 %v2865, %v2864
        %v2869 = vpack.c.b16 %v2867, %v2866
        %v2873 = vsel %vm264, %v2839, 0
        %v2876 = vsel %vm264, %v2840, 0
        %v2879 = vsel %vm264, %v2841, 0
        %v2882 = vsel %vm264, %v2842, 0
        %v2885 = vsel %vm264, %v2843, 0
        %v2888 = vsel %vm264, %v2844, 0
        %v2891 = vsel %vm264, %v2845, 0
        %v2894 = vsel %vm264, %v2846, 0
        %v2897 = vsel %vm264, %v2847, 0
        %v2900 = vsel %vm264, %v2848, 0
        %v2903 = vsel %vm264, %v2849, 0
        %v2906 = vsel %vm264, %v2850, 0
        %v2909 = vsel %vm264, %v2851, 0
        %v2912 = vsel %vm264, %v2852, 0
        %v2915 = vsel %vm264, %v2853, 0
        %v2918 = vsel %vm264, %v2854, 0
        %2920 = vmatpush.bf16.msra.mxu0 0
        %2921 = vmatpush.bf16.msra.mxu0 0
        %2922 = vmatpush.bf16.msra.mxu0 0
        %2923 = vmatpush.bf16.msra.mxu0 0
        %2924 = vmatpush.bf16.msra.mxu0 0
        %2925 = vmatpush.bf16.msra.mxu0 0
        %2926 = vmatpush.bf16.msra.mxu0 %v2869
        %2927 = vmatpush.bf16.msra.mxu0 %v2868
        %2928 = vmatmul.bf16.gmra.mxu0 %v2873
        %v2929 = vpop.f32.mrf.mxu0
        %v2930 = vadd.f32 0.0, %v2929
        %v2931 = vpop.f32.mrf.mxu0
        %v2932 = vadd.f32 0.0, %v2931
        %2933 = vmatmul.bf16.gmra.mxu0 %v2876
        %v2934 = vpop.f32.mrf.mxu0
        %v2935 = vadd.f32 0.0, %v2934
        %v2936 = vpop.f32.mrf.mxu0
        %v2937 = vadd.f32 0.0, %v2936
        %2938 = vmatmul.bf16.gmra.mxu0 %v2879
        %v2939 = vpop.f32.mrf.mxu0
        %v2940 = vadd.f32 0.0, %v2939
        %v2941 = vpop.f32.mrf.mxu0
        %v2942 = vadd.f32 0.0, %v2941
        %2943 = vmatmul.bf16.gmra.mxu0 %v2882
        %v2944 = vpop.f32.mrf.mxu0
        %v2945 = vadd.f32 0.0, %v2944
        %v2946 = vpop.f32.mrf.mxu0
        %v2947 = vadd.f32 0.0, %v2946
        %2948 = vmatmul.bf16.gmra.mxu0 %v2885
        %v2949 = vpop.f32.mrf.mxu0
        %v2950 = vadd.f32 0.0, %v2949
        %v2951 = vpop.f32.mrf.mxu0
        %v2952 = vadd.f32 0.0, %v2951
        %2953 = vmatmul.bf16.gmra.mxu0 %v2888
        %v2954 = vpop.f32.mrf.mxu0
        %v2955 = vadd.f32 0.0, %v2954
        %v2956 = vpop.f32.mrf.mxu0
        %v2957 = vadd.f32 0.0, %v2956
        %2958 = vmatmul.bf16.gmra.mxu0 %v2891
        %v2959 = vpop.f32.mrf.mxu0
        %v2960 = vadd.f32 0.0, %v2959
        %v2961 = vpop.f32.mrf.mxu0
        %v2962 = vadd.f32 0.0, %v2961
        %2963 = vmatmul.bf16.gmra.mxu0 %v2894
        %v2964 = vpop.f32.mrf.mxu0
        %v2965 = vadd.f32 0.0, %v2964
        %v2966 = vpop.f32.mrf.mxu0
        %v2967 = vadd.f32 0.0, %v2966
        %2968 = vmatmul.bf16.gmra.mxu0 %v2897
        %v2969 = vpop.f32.mrf.mxu0
        %v2970 = vadd.f32 0.0, %v2969
        %v2971 = vpop.f32.mrf.mxu0
        %v2972 = vadd.f32 0.0, %v2971
        %2973 = vmatmul.bf16.gmra.mxu0 %v2900
        %v2974 = vpop.f32.mrf.mxu0
        %v2975 = vadd.f32 0.0, %v2974
        %v2976 = vpop.f32.mrf.mxu0
        %v2977 = vadd.f32 0.0, %v2976
        %2978 = vmatmul.bf16.gmra.mxu0 %v2903
        %v2979 = vpop.f32.mrf.mxu0
        %v2980 = vadd.f32 0.0, %v2979
        %v2981 = vpop.f32.mrf.mxu0
        %v2982 = vadd.f32 0.0, %v2981
        %2983 = vmatmul.bf16.gmra.mxu0 %v2906
        %v2984 = vpop.f32.mrf.mxu0
        %v2985 = vadd.f32 0.0, %v2984
        %v2986 = vpop.f32.mrf.mxu0
        %v2987 = vadd.f32 0.0, %v2986
        %2988 = vmatmul.bf16.gmra.mxu0 %v2909
        %v2989 = vpop.f32.mrf.mxu0
        %v2990 = vadd.f32 0.0, %v2989
        %v2991 = vpop.f32.mrf.mxu0
        %v2992 = vadd.f32 0.0, %v2991
        %2993 = vmatmul.bf16.gmra.mxu0 %v2912
        %v2994 = vpop.f32.mrf.mxu0
        %v2995 = vadd.f32 0.0, %v2994
        %v2996 = vpop.f32.mrf.mxu0
        %v2997 = vadd.f32 0.0, %v2996
        %2998 = vmatmul.bf16.gmra.mxu0 %v2915
        %v2999 = vpop.f32.mrf.mxu0
        %v3000 = vadd.f32 0.0, %v2999
        %v3001 = vpop.f32.mrf.mxu0
        %v3002 = vadd.f32 0.0, %v3001
        %3003 = vmatmul.bf16.gmra.mxu0 %v2918
        %v3004 = vpop.f32.mrf.mxu0
        %v3005 = vadd.f32 0.0, %v3004
        %v3006 = vpop.f32.mrf.mxu0
        %v3007 = vadd.f32 0.0, %v3006
        %3008 = vdwg.mxu0
        %v3009 = vadd.f32 %v2647, %v2930
        %v3010 = vadd.f32 %v2648, %v2932
        %v3011 = vadd.f32 %v2649, %v2935
        %v3012 = vadd.f32 %v2650, %v2937
        %v3013 = vadd.f32 %v2651, %v2940
        %v3014 = vadd.f32 %v2652, %v2942
        %v3015 = vadd.f32 %v2653, %v2945
        %v3016 = vadd.f32 %v2654, %v2947
        %v3017 = vadd.f32 %v2655, %v2950
        %v3018 = vadd.f32 %v2656, %v2952
        %v3019 = vadd.f32 %v2657, %v2955
        %v3020 = vadd.f32 %v2658, %v2957
        %v3021 = vadd.f32 %v2659, %v2960
        %v3022 = vadd.f32 %v2660, %v2962
        %v3023 = vadd.f32 %v2661, %v2965
        %v3024 = vadd.f32 %v2662, %v2967
        %v3025 = vadd.f32 %v2663, %v2970
        %v3026 = vadd.f32 %v2664, %v2972
        %v3027 = vadd.f32 %v2665, %v2975
        %v3028 = vadd.f32 %v2666, %v2977
        %v3029 = vadd.f32 %v2667, %v2980
        %v3030 = vadd.f32 %v2668, %v2982
        %v3031 = vadd.f32 %v2669, %v2985
        %v3032 = vadd.f32 %v2670, %v2987
        %v3033 = vadd.f32 %v2671, %v2990
        %v3034 = vadd.f32 %v2672, %v2992
        %v3035 = vadd.f32 %v2673, %v2995
        %v3036 = vadd.f32 %v2674, %v2997
        %v3037 = vadd.f32 %v2675, %v3000
        %v3038 = vadd.f32 %v2676, %v3002
        %v3039 = vadd.f32 %v2677, %v3005
        %v3040 = vadd.f32 %v2678, %v3007
        %v3041 = vrot.slane %v2429, 2
        %v3042 = vrot.slane %v2430, 2
        %v3043 = vsel %vm1187, %v3041, %v3042
        %v3044 = vrot.slane %v2431, 2
        %v3045 = vsel %vm1187, %v3042, %v3044
        %v3046 = vrot.slane %v2432, 2
        %v3047 = vrot.slane %v2433, 2
        %v3048 = vsel %vm1187, %v3046, %v3047
        %v3049 = vrot.slane %v2434, 2
        %v3050 = vsel %vm1187, %v3047, %v3049
        %v3051 = vrot.slane %v2435, 2
        %v3052 = vrot.slane %v2436, 2
        %v3053 = vsel %vm1187, %v3051, %v3052
        %v3054 = vrot.slane %v2437, 2
        %v3055 = vsel %vm1187, %v3052, %v3054
        %v3056 = vrot.slane %v2438, 2
        %v3057 = vrot.slane %v2439, 2
        %v3058 = vsel %vm1187, %v3056, %v3057
        %v3059 = vrot.slane %v2440, 2
        %v3060 = vsel %vm1187, %v3057, %v3059
        %v3061 = vrot.slane %v2441, 2
        %v3062 = vrot.slane %v2442, 2
        %v3063 = vsel %vm1187, %v3061, %v3062
        %v3064 = vrot.slane %v2443, 2
        %v3065 = vsel %vm1187, %v3062, %v3064
        %v3066 = vrot.slane %v2444, 2
        %v3067 = vrot.slane %v2445, 2
        %v3068 = vsel %vm1187, %v3066, %v3067
        %v3069 = vrot.slane %v2446, 2
        %v3070 = vsel %vm1187, %v3067, %v3069
        %v3071 = vrot.slane %v2447, 2
        %v3072 = vrot.slane %v2448, 2
        %v3073 = vsel %vm1187, %v3071, %v3072
        %v3074 = vrot.slane %v2449, 2
        %v3075 = vsel %vm1187, %v3072, %v3074
        %v3076 = vrot.slane %v2450, 2
        %v3077 = vrot.slane %v2451, 2
        %v3078 = vsel %vm1187, %v3076, %v3077
        %v3079 = vrot.slane %v2452, 2
        %v3080 = vsel %vm1187, %v3077, %v3079
        %v3081 = vrot.slane %v2453, 2
        %v3082 = vrot.slane %v2454, 2
        %v3083 = vsel %vm1187, %v3081, %v3082
        %v3084 = vrot.slane %v2455, 2
        %v3085 = vsel %vm1187, %v3082, %v3084
        %v3086 = vrot.slane %v2456, 2
        %v3087 = vrot.slane %v2457, 2
        %v3088 = vsel %vm1187, %v3086, %v3087
        %v3089 = vrot.slane %v2458, 2
        %v3090 = vsel %vm1187, %v3087, %v3089
        %v3091 = vrot.slane %v2459, 2
        %v3092 = vrot.slane %v2460, 2
        %v3093 = vsel %vm1187, %v3091, %v3092
        %v3094 = vrot.slane %v2461, 2
        %v3095 = vsel %vm1187, %v3092, %v3094
        %v3096 = vrot.slane %v2462, 2
        %v3097 = vrot.slane %v2463, 2
        %v3098 = vsel %vm1187, %v3096, %v3097
        %v3099 = vrot.slane %v2464, 2
        %v3100 = vsel %vm1187, %v3097, %v3099
        %v3101 = vrot.slane %v2465, 2
        %v3102 = vrot.slane %v2466, 2
        %v3103 = vsel %vm1187, %v3101, %v3102
        %v3104 = vrot.slane %v2467, 2
        %v3105 = vsel %vm1187, %v3102, %v3104
        %v3106 = vrot.slane %v2468, 2
        %v3107 = vrot.slane %v2469, 2
        %v3108 = vsel %vm1187, %v3106, %v3107
        %v3109 = vrot.slane %v2470, 2
        %v3110 = vsel %vm1187, %v3107, %v3109
        %v3111 = vrot.slane %v2471, 2
        %v3112 = vrot.slane %v2472, 2
        %v3113 = vsel %vm1187, %v3111, %v3112
        %v3114 = vrot.slane %v2473, 2
        %v3115 = vsel %vm1187, %v3112, %v3114
        %v3116 = vrot.slane %v2474, 2
        %v3117 = vrot.slane %v2475, 2
        %v3118 = vsel %vm1187, %v3116, %v3117
        %v3119 = vrot.slane %v2476, 2
        %v3120 = vsel %vm1187, %v3117, %v3119
        %v3153 = vpack.c.bf16 %v3045, %v3043
        %v3154 = vpack.c.bf16 %v3050, %v3048
        %v3155 = vpack.c.bf16 %v3055, %v3053
        %v3156 = vpack.c.bf16 %v3060, %v3058
        %v3157 = vpack.c.bf16 %v3065, %v3063
        %v3158 = vpack.c.bf16 %v3070, %v3068
        %v3159 = vpack.c.bf16 %v3075, %v3073
        %v3160 = vpack.c.bf16 %v3080, %v3078
        %v3161 = vpack.c.bf16 %v3085, %v3083
        %v3162 = vpack.c.bf16 %v3090, %v3088
        %v3163 = vpack.c.bf16 %v3095, %v3093
        %v3164 = vpack.c.bf16 %v3100, %v3098
        %v3165 = vpack.c.bf16 %v3105, %v3103
        %v3166 = vpack.c.bf16 %v3110, %v3108
        %v3167 = vpack.c.bf16 %v3115, %v3113
        %v3168 = vpack.c.bf16 %v3120, %v3118
        %s3169 = scalar_lea.vmem %s3, 128
        %v3170 = vld [vmem:[%s3169] sm:$0xf]
        %v3171 = vld [vmem:[%s3169 + $0x4] sm:$0xf]
        %v3172 = vld [vmem:[%s3169 + $0x8] sm:$0xf]
        %v3173 = vld [vmem:[%s3169 + $0xc] sm:$0xf]
        %v3178 = vunpack.c.l.b16 %v3170
        %v3179 = vunpack.c.l.b16 %v3171
        %v3180 = vunpack.c.l.b16 %v3172
        %v3181 = vunpack.c.l.b16 %v3173
        %v3182 = vpack.c.b16 %v3179, %v3178
        %v3183 = vpack.c.b16 %v3181, %v3180
        %v3187 = vsel %vm264, %v3153, 0
        %v3190 = vsel %vm264, %v3154, 0
        %v3193 = vsel %vm264, %v3155, 0
        %v3196 = vsel %vm264, %v3156, 0
        %v3199 = vsel %vm264, %v3157, 0
        %v3202 = vsel %vm264, %v3158, 0
        %v3205 = vsel %vm264, %v3159, 0
        %v3208 = vsel %vm264, %v3160, 0
        %v3211 = vsel %vm264, %v3161, 0
        %v3214 = vsel %vm264, %v3162, 0
        %v3217 = vsel %vm264, %v3163, 0
        %v3220 = vsel %vm264, %v3164, 0
        %v3223 = vsel %vm264, %v3165, 0
        %v3226 = vsel %vm264, %v3166, 0
        %v3229 = vsel %vm264, %v3167, 0
        %v3232 = vsel %vm264, %v3168, 0
        %3234 = vmatpush.bf16.msra.mxu0 0
        %3235 = vmatpush.bf16.msra.mxu0 0
        %3236 = vmatpush.bf16.msra.mxu0 0
        %3237 = vmatpush.bf16.msra.mxu0 0
        %3238 = vmatpush.bf16.msra.mxu0 0
        %3239 = vmatpush.bf16.msra.mxu0 0
        %3240 = vmatpush.bf16.msra.mxu0 %v3183
        %3241 = vmatpush.bf16.msra.mxu0 %v3182
        %3242 = vmatmul.bf16.gmra.mxu0 %v3187
        %v3243 = vpop.f32.mrf.mxu0
        %v3244 = vadd.f32 0.0, %v3243
        %v3245 = vpop.f32.mrf.mxu0
        %v3246 = vadd.f32 0.0, %v3245
        %3247 = vmatmul.bf16.gmra.mxu0 %v3190
        %v3248 = vpop.f32.mrf.mxu0
        %v3249 = vadd.f32 0.0, %v3248
        %v3250 = vpop.f32.mrf.mxu0
        %v3251 = vadd.f32 0.0, %v3250
        %3252 = vmatmul.bf16.gmra.mxu0 %v3193
        %v3253 = vpop.f32.mrf.mxu0
        %v3254 = vadd.f32 0.0, %v3253
        %v3255 = vpop.f32.mrf.mxu0
        %v3256 = vadd.f32 0.0, %v3255
        %3257 = vmatmul.bf16.gmra.mxu0 %v3196
        %v3258 = vpop.f32.mrf.mxu0
        %v3259 = vadd.f32 0.0, %v3258
        %v3260 = vpop.f32.mrf.mxu0
        %v3261 = vadd.f32 0.0, %v3260
        %3262 = vmatmul.bf16.gmra.mxu0 %v3199
        %v3263 = vpop.f32.mrf.mxu0
        %v3264 = vadd.f32 0.0, %v3263
        %v3265 = vpop.f32.mrf.mxu0
        %v3266 = vadd.f32 0.0, %v3265
        %3267 = vmatmul.bf16.gmra.mxu0 %v3202
        %v3268 = vpop.f32.mrf.mxu0
        %v3269 = vadd.f32 0.0, %v3268
        %v3270 = vpop.f32.mrf.mxu0
        %v3271 = vadd.f32 0.0, %v3270
        %3272 = vmatmul.bf16.gmra.mxu0 %v3205
        %v3273 = vpop.f32.mrf.mxu0
        %v3274 = vadd.f32 0.0, %v3273
        %v3275 = vpop.f32.mrf.mxu0
        %v3276 = vadd.f32 0.0, %v3275
        %3277 = vmatmul.bf16.gmra.mxu0 %v3208
        %v3278 = vpop.f32.mrf.mxu0
        %v3279 = vadd.f32 0.0, %v3278
        %v3280 = vpop.f32.mrf.mxu0
        %v3281 = vadd.f32 0.0, %v3280
        %3282 = vmatmul.bf16.gmra.mxu0 %v3211
        %v3283 = vpop.f32.mrf.mxu0
        %v3284 = vadd.f32 0.0, %v3283
        %v3285 = vpop.f32.mrf.mxu0
        %v3286 = vadd.f32 0.0, %v3285
        %3287 = vmatmul.bf16.gmra.mxu0 %v3214
        %v3288 = vpop.f32.mrf.mxu0
        %v3289 = vadd.f32 0.0, %v3288
        %v3290 = vpop.f32.mrf.mxu0
        %v3291 = vadd.f32 0.0, %v3290
        %3292 = vmatmul.bf16.gmra.mxu0 %v3217
        %v3293 = vpop.f32.mrf.mxu0
        %v3294 = vadd.f32 0.0, %v3293
        %v3295 = vpop.f32.mrf.mxu0
        %v3296 = vadd.f32 0.0, %v3295
        %3297 = vmatmul.bf16.gmra.mxu0 %v3220
        %v3298 = vpop.f32.mrf.mxu0
        %v3299 = vadd.f32 0.0, %v3298
        %v3300 = vpop.f32.mrf.mxu0
        %v3301 = vadd.f32 0.0, %v3300
        %3302 = vmatmul.bf16.gmra.mxu0 %v3223
        %v3303 = vpop.f32.mrf.mxu0
        %v3304 = vadd.f32 0.0, %v3303
        %v3305 = vpop.f32.mrf.mxu0
        %v3306 = vadd.f32 0.0, %v3305
        %3307 = vmatmul.bf16.gmra.mxu0 %v3226
        %v3308 = vpop.f32.mrf.mxu0
        %v3309 = vadd.f32 0.0, %v3308
        %v3310 = vpop.f32.mrf.mxu0
        %v3311 = vadd.f32 0.0, %v3310
        %3312 = vmatmul.bf16.gmra.mxu0 %v3229
        %v3313 = vpop.f32.mrf.mxu0
        %v3314 = vadd.f32 0.0, %v3313
        %v3315 = vpop.f32.mrf.mxu0
        %v3316 = vadd.f32 0.0, %v3315
        %3317 = vmatmul.bf16.gmra.mxu0 %v3232
        %v3318 = vpop.f32.mrf.mxu0
        %v3319 = vadd.f32 0.0, %v3318
        %v3320 = vpop.f32.mrf.mxu0
        %v3321 = vadd.f32 0.0, %v3320
        %3322 = vdwg.mxu0
        %v3323 = vadd.f32 %v3009, %v3244
        %v3324 = vadd.f32 %v3010, %v3246
        %v3325 = vadd.f32 %v3011, %v3249
        %v3326 = vadd.f32 %v3012, %v3251
        %v3327 = vadd.f32 %v3013, %v3254
        %v3328 = vadd.f32 %v3014, %v3256
        %v3329 = vadd.f32 %v3015, %v3259
        %v3330 = vadd.f32 %v3016, %v3261
        %v3331 = vadd.f32 %v3017, %v3264
        %v3332 = vadd.f32 %v3018, %v3266
        %v3333 = vadd.f32 %v3019, %v3269
        %v3334 = vadd.f32 %v3020, %v3271
        %v3335 = vadd.f32 %v3021, %v3274
        %v3336 = vadd.f32 %v3022, %v3276
        %v3337 = vadd.f32 %v3023, %v3279
        %v3338 = vadd.f32 %v3024, %v3281
        %v3339 = vadd.f32 %v3025, %v3284
        %v3340 = vadd.f32 %v3026, %v3286
        %v3341 = vadd.f32 %v3027, %v3289
        %v3342 = vadd.f32 %v3028, %v3291
        %v3343 = vadd.f32 %v3029, %v3294
        %v3344 = vadd.f32 %v3030, %v3296
        %v3345 = vadd.f32 %v3031, %v3299
        %v3346 = vadd.f32 %v3032, %v3301
        %v3347 = vadd.f32 %v3033, %v3304
        %v3348 = vadd.f32 %v3034, %v3306
        %v3349 = vadd.f32 %v3035, %v3309
        %v3350 = vadd.f32 %v3036, %v3311
        %v3351 = vadd.f32 %v3037, %v3314
        %v3352 = vadd.f32 %v3038, %v3316
        %v3353 = vadd.f32 %v3039, %v3319
        %v3354 = vadd.f32 %v3040, %v3321
        %v3355 = vld [vmem:[%s4] sm:$0x1]
        %v3357 = vperm.slane %v3355, 0
        %v3359 = vadd.f32 %v3323, %v3357
        %v3360 = vadd.f32 %v3324, %v3357
        %v3361 = vadd.f32 %v3325, %v3357
        %v3362 = vadd.f32 %v3326, %v3357
        %v3363 = vadd.f32 %v3327, %v3357
        %v3364 = vadd.f32 %v3328, %v3357
        %v3365 = vadd.f32 %v3329, %v3357
        %v3366 = vadd.f32 %v3330, %v3357
        %v3367 = vadd.f32 %v3331, %v3357
        %v3368 = vadd.f32 %v3332, %v3357
        %v3369 = vadd.f32 %v3333, %v3357
        %v3370 = vadd.f32 %v3334, %v3357
        %v3371 = vadd.f32 %v3335, %v3357
        %v3372 = vadd.f32 %v3336, %v3357
        %v3373 = vadd.f32 %v3337, %v3357
        %v3374 = vadd.f32 %v3338, %v3357
        %v3375 = vadd.f32 %v3339, %v3357
        %v3376 = vadd.f32 %v3340, %v3357
        %v3377 = vadd.f32 %v3341, %v3357
        %v3378 = vadd.f32 %v3342, %v3357
        %v3379 = vadd.f32 %v3343, %v3357
        %v3380 = vadd.f32 %v3344, %v3357
        %v3381 = vadd.f32 %v3345, %v3357
        %v3382 = vadd.f32 %v3346, %v3357
        %v3383 = vadd.f32 %v3347, %v3357
        %v3384 = vadd.f32 %v3348, %v3357
        %v3385 = vadd.f32 %v3349, %v3357
        %v3386 = vadd.f32 %v3350, %v3357
        %v3387 = vadd.f32 %v3351, %v3357
        %v3388 = vadd.f32 %v3352, %v3357
        %v3389 = vadd.f32 %v3353, %v3357
        %v3390 = vadd.f32 %v3354, %v3357
        %v3391 = vxor.u32 %v3359, 2147483648
        %v3392 = vxor.u32 %v3360, 2147483648
        %v3393 = vxor.u32 %v3361, 2147483648
        %v3394 = vxor.u32 %v3362, 2147483648
        %v3395 = vxor.u32 %v3363, 2147483648
        %v3396 = vxor.u32 %v3364, 2147483648
        %v3397 = vxor.u32 %v3365, 2147483648
        %v3398 = vxor.u32 %v3366, 2147483648
        %v3399 = vxor.u32 %v3367, 2147483648
        %v3400 = vxor.u32 %v3368, 2147483648
        %v3401 = vxor.u32 %v3369, 2147483648
        %v3402 = vxor.u32 %v3370, 2147483648
        %v3403 = vxor.u32 %v3371, 2147483648
        %v3404 = vxor.u32 %v3372, 2147483648
        %v3405 = vxor.u32 %v3373, 2147483648
        %v3406 = vxor.u32 %v3374, 2147483648
        %v3407 = vxor.u32 %v3375, 2147483648
        %v3408 = vxor.u32 %v3376, 2147483648
        %v3409 = vxor.u32 %v3377, 2147483648
        %v3410 = vxor.u32 %v3378, 2147483648
        %v3411 = vxor.u32 %v3379, 2147483648
        %v3412 = vxor.u32 %v3380, 2147483648
        %v3413 = vxor.u32 %v3381, 2147483648
        %v3414 = vxor.u32 %v3382, 2147483648
        %v3415 = vxor.u32 %v3383, 2147483648
        %v3416 = vxor.u32 %v3384, 2147483648
        %v3417 = vxor.u32 %v3385, 2147483648
        %v3418 = vxor.u32 %v3386, 2147483648
        %v3419 = vxor.u32 %v3387, 2147483648
        %v3420 = vxor.u32 %v3388, 2147483648
        %v3421 = vxor.u32 %v3389, 2147483648
        %v3422 = vxor.u32 %v3390, 2147483648
        %v3423 = vmul.f32 %v3391, 1.442695
        %v3424 = vpow.pop %v3423
        %v3425 = vmul.f32 %v3392, 1.442695
        %v3426 = vpow.pop %v3425
        %v3427 = vmul.f32 %v3393, 1.442695
        %v3428 = vpow.pop %v3427
        %v3429 = vmul.f32 %v3394, 1.442695
        %v3430 = vpow.pop %v3429
        %v3431 = vmul.f32 %v3395, 1.442695
        %v3432 = vpow.pop %v3431
        %v3433 = vmul.f32 %v3396, 1.442695
        %v3434 = vpow.pop %v3433
        %v3435 = vmul.f32 %v3397, 1.442695
        %v3436 = vpow.pop %v3435
        %v3437 = vmul.f32 %v3398, 1.442695
        %v3438 = vpow.pop %v3437
        %v3439 = vmul.f32 %v3399, 1.442695
        %v3440 = vpow.pop %v3439
        %v3441 = vmul.f32 %v3400, 1.442695
        %v3442 = vpow.pop %v3441
        %v3443 = vmul.f32 %v3401, 1.442695
        %v3444 = vpow.pop %v3443
        %v3445 = vmul.f32 %v3402, 1.442695
        %v3446 = vpow.pop %v3445
        %v3447 = vmul.f32 %v3403, 1.442695
        %v3448 = vpow.pop %v3447
        %v3449 = vmul.f32 %v3404, 1.442695
        %v3450 = vpow.pop %v3449
        %v3451 = vmul.f32 %v3405, 1.442695
        %v3452 = vpow.pop %v3451
        %v3453 = vmul.f32 %v3406, 1.442695
        %v3454 = vpow.pop %v3453
        %v3455 = vmul.f32 %v3407, 1.442695
        %v3456 = vpow.pop %v3455
        %v3457 = vmul.f32 %v3408, 1.442695
        %v3458 = vpow.pop %v3457
        %v3459 = vmul.f32 %v3409, 1.442695
        %v3460 = vpow.pop %v3459
        %v3461 = vmul.f32 %v3410, 1.442695
        %v3462 = vpow.pop %v3461
        %v3463 = vmul.f32 %v3411, 1.442695
        %v3464 = vpow.pop %v3463
        %v3465 = vmul.f32 %v3412, 1.442695
        %v3466 = vpow.pop %v3465
        %v3467 = vmul.f32 %v3413, 1.442695
        %v3468 = vpow.pop %v3467
        %v3469 = vmul.f32 %v3414, 1.442695
        %v3470 = vpow.pop %v3469
        %v3471 = vmul.f32 %v3415, 1.442695
        %v3472 = vpow.pop %v3471
        %v3473 = vmul.f32 %v3416, 1.442695
        %v3474 = vpow.pop %v3473
        %v3475 = vmul.f32 %v3417, 1.442695
        %v3476 = vpow.pop %v3475
        %v3477 = vmul.f32 %v3418, 1.442695
        %v3478 = vpow.pop %v3477
        %v3479 = vmul.f32 %v3419, 1.442695
        %v3480 = vpow.pop %v3479
        %v3481 = vmul.f32 %v3420, 1.442695
        %v3482 = vpow.pop %v3481
        %v3483 = vmul.f32 %v3421, 1.442695
        %v3484 = vpow.pop %v3483
        %v3485 = vmul.f32 %v3422, 1.442695
        %v3486 = vpow.pop %v3485
        %v3487 = vadd.f32 %v3424, 1.0
        %v3488 = vadd.f32 %v3426, 1.0
        %v3489 = vadd.f32 %v3428, 1.0
        %v3490 = vadd.f32 %v3430, 1.0
        %v3491 = vadd.f32 %v3432, 1.0
        %v3492 = vadd.f32 %v3434, 1.0
        %v3493 = vadd.f32 %v3436, 1.0
        %v3494 = vadd.f32 %v3438, 1.0
        %v3495 = vadd.f32 %v3440, 1.0
        %v3496 = vadd.f32 %v3442, 1.0
        %v3497 = vadd.f32 %v3444, 1.0
        %v3498 = vadd.f32 %v3446, 1.0
        %v3499 = vadd.f32 %v3448, 1.0
        %v3500 = vadd.f32 %v3450, 1.0
        %v3501 = vadd.f32 %v3452, 1.0
        %v3502 = vadd.f32 %v3454, 1.0
        %v3503 = vadd.f32 %v3456, 1.0
        %v3504 = vadd.f32 %v3458, 1.0
        %v3505 = vadd.f32 %v3460, 1.0
        %v3506 = vadd.f32 %v3462, 1.0
        %v3507 = vadd.f32 %v3464, 1.0
        %v3508 = vadd.f32 %v3466, 1.0
        %v3509 = vadd.f32 %v3468, 1.0
        %v3510 = vadd.f32 %v3470, 1.0
        %v3511 = vadd.f32 %v3472, 1.0
        %v3512 = vadd.f32 %v3474, 1.0
        %v3513 = vadd.f32 %v3476, 1.0
        %v3514 = vadd.f32 %v3478, 1.0
        %v3515 = vadd.f32 %v3480, 1.0
        %v3516 = vadd.f32 %v3482, 1.0
        %v3517 = vadd.f32 %v3484, 1.0
        %v3518 = vadd.f32 %v3486, 1.0
        %v3519 = vrcp.pop %v3487
        %v3520 = vmul.f32 %v3487, %v3519
        %v3521 = vsub.f32 1.0, %v3520
        %v3522 = vmul.f32 %v3519, %v3521
        %v3523 = vadd.f32 %v3519, %v3522
        %vm3524 = vweird.f32 %v3487
        %vm3525 = vweird.f32 %v3519
        %vm3526 = vmor %vm3524, %vm3525
        %v3527 = vsel %vm3526, %v3519, %v3523
        %v3528 = vand.u32 2147483647, %v3487
        %vm3529 = vcmp.eq.f32.partialorder %v3528, 8.507059e+37
        %v3530 = vand.u32 %v3487, 2147483648
        %v3531 = vor.u32 1.1754944e-38, %v3530
        %v3532 = vsel %vm3529, %v3531, %v3527
        %v3533 = vmul.f32 1.0, %v3532
        %v3534 = vrcp.pop %v3488
        %v3535 = vmul.f32 %v3488, %v3534
        %v3536 = vsub.f32 1.0, %v3535
        %v3537 = vmul.f32 %v3534, %v3536
        %v3538 = vadd.f32 %v3534, %v3537
        %vm3539 = vweird.f32 %v3488
        %vm3540 = vweird.f32 %v3534
        %vm3541 = vmor %vm3539, %vm3540
        %v3542 = vsel %vm3541, %v3534, %v3538
        %v3543 = vand.u32 2147483647, %v3488
        %vm3544 = vcmp.eq.f32.partialorder %v3543, 8.507059e+37
        %v3545 = vand.u32 %v3488, 2147483648
        %v3546 = vor.u32 1.1754944e-38, %v3545
        %v3547 = vsel %vm3544, %v3546, %v3542
        %v3548 = vmul.f32 1.0, %v3547
        %v3549 = vrcp.pop %v3489
        %v3550 = vmul.f32 %v3489, %v3549
        %v3551 = vsub.f32 1.0, %v3550
        %v3552 = vmul.f32 %v3549, %v3551
        %v3553 = vadd.f32 %v3549, %v3552
        %vm3554 = vweird.f32 %v3489
        %vm3555 = vweird.f32 %v3549
        %vm3556 = vmor %vm3554, %vm3555
        %v3557 = vsel %vm3556, %v3549, %v3553
        %v3558 = vand.u32 2147483647, %v3489
        %vm3559 = vcmp.eq.f32.partialorder %v3558, 8.507059e+37
        %v3560 = vand.u32 %v3489, 2147483648
        %v3561 = vor.u32 1.1754944e-38, %v3560
        %v3562 = vsel %vm3559, %v3561, %v3557
        %v3563 = vmul.f32 1.0, %v3562
        %v3564 = vrcp.pop %v3490
        %v3565 = vmul.f32 %v3490, %v3564
        %v3566 = vsub.f32 1.0, %v3565
        %v3567 = vmul.f32 %v3564, %v3566
        %v3568 = vadd.f32 %v3564, %v3567
        %vm3569 = vweird.f32 %v3490
        %vm3570 = vweird.f32 %v3564
        %vm3571 = vmor %vm3569, %vm3570
        %v3572 = vsel %vm3571, %v3564, %v3568
        %v3573 = vand.u32 2147483647, %v3490
        %vm3574 = vcmp.eq.f32.partialorder %v3573, 8.507059e+37
        %v3575 = vand.u32 %v3490, 2147483648
        %v3576 = vor.u32 1.1754944e-38, %v3575
        %v3577 = vsel %vm3574, %v3576, %v3572
        %v3578 = vmul.f32 1.0, %v3577
        %v3579 = vrcp.pop %v3491
        %v3580 = vmul.f32 %v3491, %v3579
        %v3581 = vsub.f32 1.0, %v3580
        %v3582 = vmul.f32 %v3579, %v3581
        %v3583 = vadd.f32 %v3579, %v3582
        %vm3584 = vweird.f32 %v3491
        %vm3585 = vweird.f32 %v3579
        %vm3586 = vmor %vm3584, %vm3585
        %v3587 = vsel %vm3586, %v3579, %v3583
        %v3588 = vand.u32 2147483647, %v3491
        %vm3589 = vcmp.eq.f32.partialorder %v3588, 8.507059e+37
        %v3590 = vand.u32 %v3491, 2147483648
        %v3591 = vor.u32 1.1754944e-38, %v3590
        %v3592 = vsel %vm3589, %v3591, %v3587
        %v3593 = vmul.f32 1.0, %v3592
        %v3594 = vrcp.pop %v3492
        %v3595 = vmul.f32 %v3492, %v3594
        %v3596 = vsub.f32 1.0, %v3595
        %v3597 = vmul.f32 %v3594, %v3596
        %v3598 = vadd.f32 %v3594, %v3597
        %vm3599 = vweird.f32 %v3492
        %vm3600 = vweird.f32 %v3594
        %vm3601 = vmor %vm3599, %vm3600
        %v3602 = vsel %vm3601, %v3594, %v3598
        %v3603 = vand.u32 2147483647, %v3492
        %vm3604 = vcmp.eq.f32.partialorder %v3603, 8.507059e+37
        %v3605 = vand.u32 %v3492, 2147483648
        %v3606 = vor.u32 1.1754944e-38, %v3605
        %v3607 = vsel %vm3604, %v3606, %v3602
        %v3608 = vmul.f32 1.0, %v3607
        %v3609 = vrcp.pop %v3493
        %v3610 = vmul.f32 %v3493, %v3609
        %v3611 = vsub.f32 1.0, %v3610
        %v3612 = vmul.f32 %v3609, %v3611
        %v3613 = vadd.f32 %v3609, %v3612
        %vm3614 = vweird.f32 %v3493
        %vm3615 = vweird.f32 %v3609
        %vm3616 = vmor %vm3614, %vm3615
        %v3617 = vsel %vm3616, %v3609, %v3613
        %v3618 = vand.u32 2147483647, %v3493
        %vm3619 = vcmp.eq.f32.partialorder %v3618, 8.507059e+37
        %v3620 = vand.u32 %v3493, 2147483648
        %v3621 = vor.u32 1.1754944e-38, %v3620
        %v3622 = vsel %vm3619, %v3621, %v3617
        %v3623 = vmul.f32 1.0, %v3622
        %v3624 = vrcp.pop %v3494
        %v3625 = vmul.f32 %v3494, %v3624
        %v3626 = vsub.f32 1.0, %v3625
        %v3627 = vmul.f32 %v3624, %v3626
        %v3628 = vadd.f32 %v3624, %v3627
        %vm3629 = vweird.f32 %v3494
        %vm3630 = vweird.f32 %v3624
        %vm3631 = vmor %vm3629, %vm3630
        %v3632 = vsel %vm3631, %v3624, %v3628
        %v3633 = vand.u32 2147483647, %v3494
        %vm3634 = vcmp.eq.f32.partialorder %v3633, 8.507059e+37
        %v3635 = vand.u32 %v3494, 2147483648
        %v3636 = vor.u32 1.1754944e-38, %v3635
        %v3637 = vsel %vm3634, %v3636, %v3632
        %v3638 = vmul.f32 1.0, %v3637
        %v3639 = vrcp.pop %v3495
        %v3640 = vmul.f32 %v3495, %v3639
        %v3641 = vsub.f32 1.0, %v3640
        %v3642 = vmul.f32 %v3639, %v3641
        %v3643 = vadd.f32 %v3639, %v3642
        %vm3644 = vweird.f32 %v3495
        %vm3645 = vweird.f32 %v3639
        %vm3646 = vmor %vm3644, %vm3645
        %v3647 = vsel %vm3646, %v3639, %v3643
        %v3648 = vand.u32 2147483647, %v3495
        %vm3649 = vcmp.eq.f32.partialorder %v3648, 8.507059e+37
        %v3650 = vand.u32 %v3495, 2147483648
        %v3651 = vor.u32 1.1754944e-38, %v3650
        %v3652 = vsel %vm3649, %v3651, %v3647
        %v3653 = vmul.f32 1.0, %v3652
        %v3654 = vrcp.pop %v3496
        %v3655 = vmul.f32 %v3496, %v3654
        %v3656 = vsub.f32 1.0, %v3655
        %v3657 = vmul.f32 %v3654, %v3656
        %v3658 = vadd.f32 %v3654, %v3657
        %vm3659 = vweird.f32 %v3496
        %vm3660 = vweird.f32 %v3654
        %vm3661 = vmor %vm3659, %vm3660
        %v3662 = vsel %vm3661, %v3654, %v3658
        %v3663 = vand.u32 2147483647, %v3496
        %vm3664 = vcmp.eq.f32.partialorder %v3663, 8.507059e+37
        %v3665 = vand.u32 %v3496, 2147483648
        %v3666 = vor.u32 1.1754944e-38, %v3665
        %v3667 = vsel %vm3664, %v3666, %v3662
        %v3668 = vmul.f32 1.0, %v3667
        %v3669 = vrcp.pop %v3497
        %v3670 = vmul.f32 %v3497, %v3669
        %v3671 = vsub.f32 1.0, %v3670
        %v3672 = vmul.f32 %v3669, %v3671
        %v3673 = vadd.f32 %v3669, %v3672
        %vm3674 = vweird.f32 %v3497
        %vm3675 = vweird.f32 %v3669
        %vm3676 = vmor %vm3674, %vm3675
        %v3677 = vsel %vm3676, %v3669, %v3673
        %v3678 = vand.u32 2147483647, %v3497
        %vm3679 = vcmp.eq.f32.partialorder %v3678, 8.507059e+37
        %v3680 = vand.u32 %v3497, 2147483648
        %v3681 = vor.u32 1.1754944e-38, %v3680
        %v3682 = vsel %vm3679, %v3681, %v3677
        %v3683 = vmul.f32 1.0, %v3682
        %v3684 = vrcp.pop %v3498
        %v3685 = vmul.f32 %v3498, %v3684
        %v3686 = vsub.f32 1.0, %v3685
        %v3687 = vmul.f32 %v3684, %v3686
        %v3688 = vadd.f32 %v3684, %v3687
        %vm3689 = vweird.f32 %v3498
        %vm3690 = vweird.f32 %v3684
        %vm3691 = vmor %vm3689, %vm3690
        %v3692 = vsel %vm3691, %v3684, %v3688
        %v3693 = vand.u32 2147483647, %v3498
        %vm3694 = vcmp.eq.f32.partialorder %v3693, 8.507059e+37
        %v3695 = vand.u32 %v3498, 2147483648
        %v3696 = vor.u32 1.1754944e-38, %v3695
        %v3697 = vsel %vm3694, %v3696, %v3692
        %v3698 = vmul.f32 1.0, %v3697
        %v3699 = vrcp.pop %v3499
        %v3700 = vmul.f32 %v3499, %v3699
        %v3701 = vsub.f32 1.0, %v3700
        %v3702 = vmul.f32 %v3699, %v3701
        %v3703 = vadd.f32 %v3699, %v3702
        %vm3704 = vweird.f32 %v3499
        %vm3705 = vweird.f32 %v3699
        %vm3706 = vmor %vm3704, %vm3705
        %v3707 = vsel %vm3706, %v3699, %v3703
        %v3708 = vand.u32 2147483647, %v3499
        %vm3709 = vcmp.eq.f32.partialorder %v3708, 8.507059e+37
        %v3710 = vand.u32 %v3499, 2147483648
        %v3711 = vor.u32 1.1754944e-38, %v3710
        %v3712 = vsel %vm3709, %v3711, %v3707
        %v3713 = vmul.f32 1.0, %v3712
        %v3714 = vrcp.pop %v3500
        %v3715 = vmul.f32 %v3500, %v3714
        %v3716 = vsub.f32 1.0, %v3715
        %v3717 = vmul.f32 %v3714, %v3716
        %v3718 = vadd.f32 %v3714, %v3717
        %vm3719 = vweird.f32 %v3500
        %vm3720 = vweird.f32 %v3714
        %vm3721 = vmor %vm3719, %vm3720
        %v3722 = vsel %vm3721, %v3714, %v3718
        %v3723 = vand.u32 2147483647, %v3500
        %vm3724 = vcmp.eq.f32.partialorder %v3723, 8.507059e+37
        %v3725 = vand.u32 %v3500, 2147483648
        %v3726 = vor.u32 1.1754944e-38, %v3725
        %v3727 = vsel %vm3724, %v3726, %v3722
        %v3728 = vmul.f32 1.0, %v3727
        %v3729 = vrcp.pop %v3501
        %v3730 = vmul.f32 %v3501, %v3729
        %v3731 = vsub.f32 1.0, %v3730
        %v3732 = vmul.f32 %v3729, %v3731
        %v3733 = vadd.f32 %v3729, %v3732
        %vm3734 = vweird.f32 %v3501
        %vm3735 = vweird.f32 %v3729
        %vm3736 = vmor %vm3734, %vm3735
        %v3737 = vsel %vm3736, %v3729, %v3733
        %v3738 = vand.u32 2147483647, %v3501
        %vm3739 = vcmp.eq.f32.partialorder %v3738, 8.507059e+37
        %v3740 = vand.u32 %v3501, 2147483648
        %v3741 = vor.u32 1.1754944e-38, %v3740
        %v3742 = vsel %vm3739, %v3741, %v3737
        %v3743 = vmul.f32 1.0, %v3742
        %v3744 = vrcp.pop %v3502
        %v3745 = vmul.f32 %v3502, %v3744
        %v3746 = vsub.f32 1.0, %v3745
        %v3747 = vmul.f32 %v3744, %v3746
        %v3748 = vadd.f32 %v3744, %v3747
        %vm3749 = vweird.f32 %v3502
        %vm3750 = vweird.f32 %v3744
        %vm3751 = vmor %vm3749, %vm3750
        %v3752 = vsel %vm3751, %v3744, %v3748
        %v3753 = vand.u32 2147483647, %v3502
        %vm3754 = vcmp.eq.f32.partialorder %v3753, 8.507059e+37
        %v3755 = vand.u32 %v3502, 2147483648
        %v3756 = vor.u32 1.1754944e-38, %v3755
        %v3757 = vsel %vm3754, %v3756, %v3752
        %v3758 = vmul.f32 1.0, %v3757
        %v3759 = vrcp.pop %v3503
        %v3760 = vmul.f32 %v3503, %v3759
        %v3761 = vsub.f32 1.0, %v3760
        %v3762 = vmul.f32 %v3759, %v3761
        %v3763 = vadd.f32 %v3759, %v3762
        %vm3764 = vweird.f32 %v3503
        %vm3765 = vweird.f32 %v3759
        %vm3766 = vmor %vm3764, %vm3765
        %v3767 = vsel %vm3766, %v3759, %v3763
        %v3768 = vand.u32 2147483647, %v3503
        %vm3769 = vcmp.eq.f32.partialorder %v3768, 8.507059e+37
        %v3770 = vand.u32 %v3503, 2147483648
        %v3771 = vor.u32 1.1754944e-38, %v3770
        %v3772 = vsel %vm3769, %v3771, %v3767
        %v3773 = vmul.f32 1.0, %v3772
        %v3774 = vrcp.pop %v3504
        %v3775 = vmul.f32 %v3504, %v3774
        %v3776 = vsub.f32 1.0, %v3775
        %v3777 = vmul.f32 %v3774, %v3776
        %v3778 = vadd.f32 %v3774, %v3777
        %vm3779 = vweird.f32 %v3504
        %vm3780 = vweird.f32 %v3774
        %vm3781 = vmor %vm3779, %vm3780
        %v3782 = vsel %vm3781, %v3774, %v3778
        %v3783 = vand.u32 2147483647, %v3504
        %vm3784 = vcmp.eq.f32.partialorder %v3783, 8.507059e+37
        %v3785 = vand.u32 %v3504, 2147483648
        %v3786 = vor.u32 1.1754944e-38, %v3785
        %v3787 = vsel %vm3784, %v3786, %v3782
        %v3788 = vmul.f32 1.0, %v3787
        %v3789 = vrcp.pop %v3505
        %v3790 = vmul.f32 %v3505, %v3789
        %v3791 = vsub.f32 1.0, %v3790
        %v3792 = vmul.f32 %v3789, %v3791
        %v3793 = vadd.f32 %v3789, %v3792
        %vm3794 = vweird.f32 %v3505
        %vm3795 = vweird.f32 %v3789
        %vm3796 = vmor %vm3794, %vm3795
        %v3797 = vsel %vm3796, %v3789, %v3793
        %v3798 = vand.u32 2147483647, %v3505
        %vm3799 = vcmp.eq.f32.partialorder %v3798, 8.507059e+37
        %v3800 = vand.u32 %v3505, 2147483648
        %v3801 = vor.u32 1.1754944e-38, %v3800
        %v3802 = vsel %vm3799, %v3801, %v3797
        %v3803 = vmul.f32 1.0, %v3802
        %v3804 = vrcp.pop %v3506
        %v3805 = vmul.f32 %v3506, %v3804
        %v3806 = vsub.f32 1.0, %v3805
        %v3807 = vmul.f32 %v3804, %v3806
        %v3808 = vadd.f32 %v3804, %v3807
        %vm3809 = vweird.f32 %v3506
        %vm3810 = vweird.f32 %v3804
        %vm3811 = vmor %vm3809, %vm3810
        %v3812 = vsel %vm3811, %v3804, %v3808
        %v3813 = vand.u32 2147483647, %v3506
        %vm3814 = vcmp.eq.f32.partialorder %v3813, 8.507059e+37
        %v3815 = vand.u32 %v3506, 2147483648
        %v3816 = vor.u32 1.1754944e-38, %v3815
        %v3817 = vsel %vm3814, %v3816, %v3812
        %v3818 = vmul.f32 1.0, %v3817
        %v3819 = vrcp.pop %v3507
        %v3820 = vmul.f32 %v3507, %v3819
        %v3821 = vsub.f32 1.0, %v3820
        %v3822 = vmul.f32 %v3819, %v3821
        %v3823 = vadd.f32 %v3819, %v3822
        %vm3824 = vweird.f32 %v3507
        %vm3825 = vweird.f32 %v3819
        %vm3826 = vmor %vm3824, %vm3825
        %v3827 = vsel %vm3826, %v3819, %v3823
        %v3828 = vand.u32 2147483647, %v3507
        %vm3829 = vcmp.eq.f32.partialorder %v3828, 8.507059e+37
        %v3830 = vand.u32 %v3507, 2147483648
        %v3831 = vor.u32 1.1754944e-38, %v3830
        %v3832 = vsel %vm3829, %v3831, %v3827
        %v3833 = vmul.f32 1.0, %v3832
        %v3834 = vrcp.pop %v3508
        %v3835 = vmul.f32 %v3508, %v3834
        %v3836 = vsub.f32 1.0, %v3835
        %v3837 = vmul.f32 %v3834, %v3836
        %v3838 = vadd.f32 %v3834, %v3837
        %vm3839 = vweird.f32 %v3508
        %vm3840 = vweird.f32 %v3834
        %vm3841 = vmor %vm3839, %vm3840
        %v3842 = vsel %vm3841, %v3834, %v3838
        %v3843 = vand.u32 2147483647, %v3508
        %vm3844 = vcmp.eq.f32.partialorder %v3843, 8.507059e+37
        %v3845 = vand.u32 %v3508, 2147483648
        %v3846 = vor.u32 1.1754944e-38, %v3845
        %v3847 = vsel %vm3844, %v3846, %v3842
        %v3848 = vmul.f32 1.0, %v3847
        %v3849 = vrcp.pop %v3509
        %v3850 = vmul.f32 %v3509, %v3849
        %v3851 = vsub.f32 1.0, %v3850
        %v3852 = vmul.f32 %v3849, %v3851
        %v3853 = vadd.f32 %v3849, %v3852
        %vm3854 = vweird.f32 %v3509
        %vm3855 = vweird.f32 %v3849
        %vm3856 = vmor %vm3854, %vm3855
        %v3857 = vsel %vm3856, %v3849, %v3853
        %v3858 = vand.u32 2147483647, %v3509
        %vm3859 = vcmp.eq.f32.partialorder %v3858, 8.507059e+37
        %v3860 = vand.u32 %v3509, 2147483648
        %v3861 = vor.u32 1.1754944e-38, %v3860
        %v3862 = vsel %vm3859, %v3861, %v3857
        %v3863 = vmul.f32 1.0, %v3862
        %v3864 = vrcp.pop %v3510
        %v3865 = vmul.f32 %v3510, %v3864
        %v3866 = vsub.f32 1.0, %v3865
        %v3867 = vmul.f32 %v3864, %v3866
        %v3868 = vadd.f32 %v3864, %v3867
        %vm3869 = vweird.f32 %v3510
        %vm3870 = vweird.f32 %v3864
        %vm3871 = vmor %vm3869, %vm3870
        %v3872 = vsel %vm3871, %v3864, %v3868
        %v3873 = vand.u32 2147483647, %v3510
        %vm3874 = vcmp.eq.f32.partialorder %v3873, 8.507059e+37
        %v3875 = vand.u32 %v3510, 2147483648
        %v3876 = vor.u32 1.1754944e-38, %v3875
        %v3877 = vsel %vm3874, %v3876, %v3872
        %v3878 = vmul.f32 1.0, %v3877
        %v3879 = vrcp.pop %v3511
        %v3880 = vmul.f32 %v3511, %v3879
        %v3881 = vsub.f32 1.0, %v3880
        %v3882 = vmul.f32 %v3879, %v3881
        %v3883 = vadd.f32 %v3879, %v3882
        %vm3884 = vweird.f32 %v3511
        %vm3885 = vweird.f32 %v3879
        %vm3886 = vmor %vm3884, %vm3885
        %v3887 = vsel %vm3886, %v3879, %v3883
        %v3888 = vand.u32 2147483647, %v3511
        %vm3889 = vcmp.eq.f32.partialorder %v3888, 8.507059e+37
        %v3890 = vand.u32 %v3511, 2147483648
        %v3891 = vor.u32 1.1754944e-38, %v3890
        %v3892 = vsel %vm3889, %v3891, %v3887
        %v3893 = vmul.f32 1.0, %v3892
        %v3894 = vrcp.pop %v3512
        %v3895 = vmul.f32 %v3512, %v3894
        %v3896 = vsub.f32 1.0, %v3895
        %v3897 = vmul.f32 %v3894, %v3896
        %v3898 = vadd.f32 %v3894, %v3897
        %vm3899 = vweird.f32 %v3512
        %vm3900 = vweird.f32 %v3894
        %vm3901 = vmor %vm3899, %vm3900
        %v3902 = vsel %vm3901, %v3894, %v3898
        %v3903 = vand.u32 2147483647, %v3512
        %vm3904 = vcmp.eq.f32.partialorder %v3903, 8.507059e+37
        %v3905 = vand.u32 %v3512, 2147483648
        %v3906 = vor.u32 1.1754944e-38, %v3905
        %v3907 = vsel %vm3904, %v3906, %v3902
        %v3908 = vmul.f32 1.0, %v3907
        %v3909 = vrcp.pop %v3513
        %v3910 = vmul.f32 %v3513, %v3909
        %v3911 = vsub.f32 1.0, %v3910
        %v3912 = vmul.f32 %v3909, %v3911
        %v3913 = vadd.f32 %v3909, %v3912
        %vm3914 = vweird.f32 %v3513
        %vm3915 = vweird.f32 %v3909
        %vm3916 = vmor %vm3914, %vm3915
        %v3917 = vsel %vm3916, %v3909, %v3913
        %v3918 = vand.u32 2147483647, %v3513
        %vm3919 = vcmp.eq.f32.partialorder %v3918, 8.507059e+37
        %v3920 = vand.u32 %v3513, 2147483648
        %v3921 = vor.u32 1.1754944e-38, %v3920
        %v3922 = vsel %vm3919, %v3921, %v3917
        %v3923 = vmul.f32 1.0, %v3922
        %v3924 = vrcp.pop %v3514
        %v3925 = vmul.f32 %v3514, %v3924
        %v3926 = vsub.f32 1.0, %v3925
        %v3927 = vmul.f32 %v3924, %v3926
        %v3928 = vadd.f32 %v3924, %v3927
        %vm3929 = vweird.f32 %v3514
        %vm3930 = vweird.f32 %v3924
        %vm3931 = vmor %vm3929, %vm3930
        %v3932 = vsel %vm3931, %v3924, %v3928
        %v3933 = vand.u32 2147483647, %v3514
        %vm3934 = vcmp.eq.f32.partialorder %v3933, 8.507059e+37
        %v3935 = vand.u32 %v3514, 2147483648
        %v3936 = vor.u32 1.1754944e-38, %v3935
        %v3937 = vsel %vm3934, %v3936, %v3932
        %v3938 = vmul.f32 1.0, %v3937
        %v3939 = vrcp.pop %v3515
        %v3940 = vmul.f32 %v3515, %v3939
        %v3941 = vsub.f32 1.0, %v3940
        %v3942 = vmul.f32 %v3939, %v3941
        %v3943 = vadd.f32 %v3939, %v3942
        %vm3944 = vweird.f32 %v3515
        %vm3945 = vweird.f32 %v3939
        %vm3946 = vmor %vm3944, %vm3945
        %v3947 = vsel %vm3946, %v3939, %v3943
        %v3948 = vand.u32 2147483647, %v3515
        %vm3949 = vcmp.eq.f32.partialorder %v3948, 8.507059e+37
        %v3950 = vand.u32 %v3515, 2147483648
        %v3951 = vor.u32 1.1754944e-38, %v3950
        %v3952 = vsel %vm3949, %v3951, %v3947
        %v3953 = vmul.f32 1.0, %v3952
        %v3954 = vrcp.pop %v3516
        %v3955 = vmul.f32 %v3516, %v3954
        %v3956 = vsub.f32 1.0, %v3955
        %v3957 = vmul.f32 %v3954, %v3956
        %v3958 = vadd.f32 %v3954, %v3957
        %vm3959 = vweird.f32 %v3516
        %vm3960 = vweird.f32 %v3954
        %vm3961 = vmor %vm3959, %vm3960
        %v3962 = vsel %vm3961, %v3954, %v3958
        %v3963 = vand.u32 2147483647, %v3516
        %vm3964 = vcmp.eq.f32.partialorder %v3963, 8.507059e+37
        %v3965 = vand.u32 %v3516, 2147483648
        %v3966 = vor.u32 1.1754944e-38, %v3965
        %v3967 = vsel %vm3964, %v3966, %v3962
        %v3968 = vmul.f32 1.0, %v3967
        %v3969 = vrcp.pop %v3517
        %v3970 = vmul.f32 %v3517, %v3969
        %v3971 = vsub.f32 1.0, %v3970
        %v3972 = vmul.f32 %v3969, %v3971
        %v3973 = vadd.f32 %v3969, %v3972
        %vm3974 = vweird.f32 %v3517
        %vm3975 = vweird.f32 %v3969
        %vm3976 = vmor %vm3974, %vm3975
        %v3977 = vsel %vm3976, %v3969, %v3973
        %v3978 = vand.u32 2147483647, %v3517
        %vm3979 = vcmp.eq.f32.partialorder %v3978, 8.507059e+37
        %v3980 = vand.u32 %v3517, 2147483648
        %v3981 = vor.u32 1.1754944e-38, %v3980
        %v3982 = vsel %vm3979, %v3981, %v3977
        %v3983 = vmul.f32 1.0, %v3982
        %v3984 = vrcp.pop %v3518
        %v3985 = vmul.f32 %v3518, %v3984
        %v3986 = vsub.f32 1.0, %v3985
        %v3987 = vmul.f32 %v3984, %v3986
        %v3988 = vadd.f32 %v3984, %v3987
        %vm3989 = vweird.f32 %v3518
        %vm3990 = vweird.f32 %v3984
        %vm3991 = vmor %vm3989, %vm3990
        %v3992 = vsel %vm3991, %v3984, %v3988
        %v3993 = vand.u32 2147483647, %v3518
        %vm3994 = vcmp.eq.f32.partialorder %v3993, 8.507059e+37
        %v3995 = vand.u32 %v3518, 2147483648
        %v3996 = vor.u32 1.1754944e-38, %v3995
        %v3997 = vsel %vm3994, %v3996, %v3992
        %v3998 = vmul.f32 1.0, %v3997
        %v3999 = vtanh.pop %v3359
        %v4000 = vtanh.pop %v3360
        %v4001 = vtanh.pop %v3361
        %v4002 = vtanh.pop %v3362
        %v4003 = vtanh.pop %v3363
        %v4004 = vtanh.pop %v3364
        %v4005 = vtanh.pop %v3365
        %v4006 = vtanh.pop %v3366
        %v4007 = vtanh.pop %v3367
        %v4008 = vtanh.pop %v3368
        %v4009 = vtanh.pop %v3369
        %v4010 = vtanh.pop %v3370
        %v4011 = vtanh.pop %v3371
        %v4012 = vtanh.pop %v3372
        %v4013 = vtanh.pop %v3373
        %v4014 = vtanh.pop %v3374
        %v4015 = vtanh.pop %v3375
        %v4016 = vtanh.pop %v3376
        %v4017 = vtanh.pop %v3377
        %v4018 = vtanh.pop %v3378
        %v4019 = vtanh.pop %v3379
        %v4020 = vtanh.pop %v3380
        %v4021 = vtanh.pop %v3381
        %v4022 = vtanh.pop %v3382
        %v4023 = vtanh.pop %v3383
        %v4024 = vtanh.pop %v3384
        %v4025 = vtanh.pop %v3385
        %v4026 = vtanh.pop %v3386
        %v4027 = vtanh.pop %v3387
        %v4028 = vtanh.pop %v3388
        %v4029 = vtanh.pop %v3389
        %v4030 = vtanh.pop %v3390
        %4063 = vrot.lane.b32.xlu0 %v3999, 64
        %v4064 = vpop.permute.xlu0 %4063
        %4065 = vrot.lane.b32.xlu0 %v4000, 64
        %v4066 = vpop.permute.xlu0 %4065
        %4067 = vrot.lane.b32.xlu0 %v4001, 64
        %v4068 = vpop.permute.xlu0 %4067
        %4069 = vrot.lane.b32.xlu0 %v4002, 64
        %v4070 = vpop.permute.xlu0 %4069
        %4071 = vrot.lane.b32.xlu0 %v4003, 64
        %v4072 = vpop.permute.xlu0 %4071
        %4073 = vrot.lane.b32.xlu0 %v4004, 64
        %v4074 = vpop.permute.xlu0 %4073
        %4075 = vrot.lane.b32.xlu0 %v4005, 64
        %v4076 = vpop.permute.xlu0 %4075
        %4077 = vrot.lane.b32.xlu0 %v4006, 64
        %v4078 = vpop.permute.xlu0 %4077
        %4079 = vrot.lane.b32.xlu0 %v4007, 64
        %v4080 = vpop.permute.xlu0 %4079
        %4081 = vrot.lane.b32.xlu0 %v4008, 64
        %v4082 = vpop.permute.xlu0 %4081
        %4083 = vrot.lane.b32.xlu0 %v4009, 64
        %v4084 = vpop.permute.xlu0 %4083
        %4085 = vrot.lane.b32.xlu0 %v4010, 64
        %v4086 = vpop.permute.xlu0 %4085
        %4087 = vrot.lane.b32.xlu0 %v4011, 64
        %v4088 = vpop.permute.xlu0 %4087
        %4089 = vrot.lane.b32.xlu0 %v4012, 64
        %v4090 = vpop.permute.xlu0 %4089
        %4091 = vrot.lane.b32.xlu0 %v4013, 64
        %v4092 = vpop.permute.xlu0 %4091
        %4093 = vrot.lane.b32.xlu0 %v4014, 64
        %v4094 = vpop.permute.xlu0 %4093
        %4095 = vrot.lane.b32.xlu0 %v4015, 64
        %v4096 = vpop.permute.xlu0 %4095
        %4097 = vrot.lane.b32.xlu0 %v4016, 64
        %v4098 = vpop.permute.xlu0 %4097
        %4099 = vrot.lane.b32.xlu0 %v4017, 64
        %v4100 = vpop.permute.xlu0 %4099
        %4101 = vrot.lane.b32.xlu0 %v4018, 64
        %v4102 = vpop.permute.xlu0 %4101
        %4103 = vrot.lane.b32.xlu0 %v4019, 64
        %v4104 = vpop.permute.xlu0 %4103
        %4105 = vrot.lane.b32.xlu0 %v4020, 64
        %v4106 = vpop.permute.xlu0 %4105
        %4107 = vrot.lane.b32.xlu0 %v4021, 64
        %v4108 = vpop.permute.xlu0 %4107
        %4109 = vrot.lane.b32.xlu0 %v4022, 64
        %v4110 = vpop.permute.xlu0 %4109
        %4111 = vrot.lane.b32.xlu0 %v4023, 64
        %v4112 = vpop.permute.xlu0 %4111
        %4113 = vrot.lane.b32.xlu0 %v4024, 64
        %v4114 = vpop.permute.xlu0 %4113
        %4115 = vrot.lane.b32.xlu0 %v4025, 64
        %v4116 = vpop.permute.xlu0 %4115
        %4117 = vrot.lane.b32.xlu0 %v4026, 64
        %v4118 = vpop.permute.xlu0 %4117
        %4119 = vrot.lane.b32.xlu0 %v4027, 64
        %v4120 = vpop.permute.xlu0 %4119
        %4121 = vrot.lane.b32.xlu0 %v4028, 64
        %v4122 = vpop.permute.xlu0 %4121
        %4123 = vrot.lane.b32.xlu0 %v4029, 64
        %v4124 = vpop.permute.xlu0 %4123
        %4125 = vrot.lane.b32.xlu0 %v4030, 64
        %v4126 = vpop.permute.xlu0 %4125
        %v4159 = vmul.f32 %v3533, %v4064
        %v4160 = vmul.f32 %v3548, %v4066
        %v4161 = vmul.f32 %v3563, %v4068
        %v4162 = vmul.f32 %v3578, %v4070
        %v4163 = vmul.f32 %v3593, %v4072
        %v4164 = vmul.f32 %v3608, %v4074
        %v4165 = vmul.f32 %v3623, %v4076
        %v4166 = vmul.f32 %v3638, %v4078
        %v4167 = vmul.f32 %v3653, %v4080
        %v4168 = vmul.f32 %v3668, %v4082
        %v4169 = vmul.f32 %v3683, %v4084
        %v4170 = vmul.f32 %v3698, %v4086
        %v4171 = vmul.f32 %v3713, %v4088
        %v4172 = vmul.f32 %v3728, %v4090
        %v4173 = vmul.f32 %v3743, %v4092
        %v4174 = vmul.f32 %v3758, %v4094
        %v4175 = vmul.f32 %v3773, %v4096
        %v4176 = vmul.f32 %v3788, %v4098
        %v4177 = vmul.f32 %v3803, %v4100
        %v4178 = vmul.f32 %v3818, %v4102
        %v4179 = vmul.f32 %v3833, %v4104
        %v4180 = vmul.f32 %v3848, %v4106
        %v4181 = vmul.f32 %v3863, %v4108
        %v4182 = vmul.f32 %v3878, %v4110
        %v4183 = vmul.f32 %v3893, %v4112
        %v4184 = vmul.f32 %v3908, %v4114
        %v4185 = vmul.f32 %v3923, %v4116
        %v4186 = vmul.f32 %v3938, %v4118
        %v4187 = vmul.f32 %v3953, %v4120
        %v4188 = vmul.f32 %v3968, %v4122
        %v4189 = vmul.f32 %v3983, %v4124
        %v4190 = vmul.f32 %v3998, %v4126
        %v4191 = vtanh.pop %v4159
        %v4192 = vtanh.pop %v4160
        %v4193 = vtanh.pop %v4161
        %v4194 = vtanh.pop %v4162
        %v4195 = vtanh.pop %v4163
        %v4196 = vtanh.pop %v4164
        %v4197 = vtanh.pop %v4165
        %v4198 = vtanh.pop %v4166
        %v4199 = vtanh.pop %v4167
        %v4200 = vtanh.pop %v4168
        %v4201 = vtanh.pop %v4169
        %v4202 = vtanh.pop %v4170
        %v4203 = vtanh.pop %v4171
        %v4204 = vtanh.pop %v4172
        %v4205 = vtanh.pop %v4173
        %v4206 = vtanh.pop %v4174
        %v4207 = vtanh.pop %v4175
        %v4208 = vtanh.pop %v4176
        %v4209 = vtanh.pop %v4177
        %v4210 = vtanh.pop %v4178
        %v4211 = vtanh.pop %v4179
        %v4212 = vtanh.pop %v4180
        %v4213 = vtanh.pop %v4181
        %v4214 = vtanh.pop %v4182
        %v4215 = vtanh.pop %v4183
        %v4216 = vtanh.pop %v4184
        %v4217 = vtanh.pop %v4185
        %v4218 = vtanh.pop %v4186
        %v4219 = vtanh.pop %v4187
        %v4220 = vtanh.pop %v4188
        %v4221 = vtanh.pop %v4189
        %v4222 = vtanh.pop %v4190
        %4255 = vrot.lane.b32.xlu0 %v4191, 32
        %v4256 = vpop.permute.xlu0 %4255
        %4257 = vrot.lane.b32.xlu0 %v4192, 32
        %v4258 = vpop.permute.xlu0 %4257
        %4259 = vrot.lane.b32.xlu0 %v4193, 32
        %v4260 = vpop.permute.xlu0 %4259
        %4261 = vrot.lane.b32.xlu0 %v4194, 32
        %v4262 = vpop.permute.xlu0 %4261
        %4263 = vrot.lane.b32.xlu0 %v4195, 32
        %v4264 = vpop.permute.xlu0 %4263
        %4265 = vrot.lane.b32.xlu0 %v4196, 32
        %v4266 = vpop.permute.xlu0 %4265
        %4267 = vrot.lane.b32.xlu0 %v4197, 32
        %v4268 = vpop.permute.xlu0 %4267
        %4269 = vrot.lane.b32.xlu0 %v4198, 32
        %v4270 = vpop.permute.xlu0 %4269
        %4271 = vrot.lane.b32.xlu0 %v4199, 32
        %v4272 = vpop.permute.xlu0 %4271
        %4273 = vrot.lane.b32.xlu0 %v4200, 32
        %v4274 = vpop.permute.xlu0 %4273
        %4275 = vrot.lane.b32.xlu0 %v4201, 32
        %v4276 = vpop.permute.xlu0 %4275
        %4277 = vrot.lane.b32.xlu0 %v4202, 32
        %v4278 = vpop.permute.xlu0 %4277
        %4279 = vrot.lane.b32.xlu0 %v4203, 32
        %v4280 = vpop.permute.xlu0 %4279
        %4281 = vrot.lane.b32.xlu0 %v4204, 32
        %v4282 = vpop.permute.xlu0 %4281
        %4283 = vrot.lane.b32.xlu0 %v4205, 32
        %v4284 = vpop.permute.xlu0 %4283
        %4285 = vrot.lane.b32.xlu0 %v4206, 32
        %v4286 = vpop.permute.xlu0 %4285
        %4287 = vrot.lane.b32.xlu0 %v4207, 32
        %v4288 = vpop.permute.xlu0 %4287
        %4289 = vrot.lane.b32.xlu0 %v4208, 32
        %v4290 = vpop.permute.xlu0 %4289
        %4291 = vrot.lane.b32.xlu0 %v4209, 32
        %v4292 = vpop.permute.xlu0 %4291
        %4293 = vrot.lane.b32.xlu0 %v4210, 32
        %v4294 = vpop.permute.xlu0 %4293
        %4295 = vrot.lane.b32.xlu0 %v4211, 32
        %v4296 = vpop.permute.xlu0 %4295
        %4297 = vrot.lane.b32.xlu0 %v4212, 32
        %v4298 = vpop.permute.xlu0 %4297
        %4299 = vrot.lane.b32.xlu0 %v4213, 32
        %v4300 = vpop.permute.xlu0 %4299
        %4301 = vrot.lane.b32.xlu0 %v4214, 32
        %v4302 = vpop.permute.xlu0 %4301
        %4303 = vrot.lane.b32.xlu0 %v4215, 32
        %v4304 = vpop.permute.xlu0 %4303
        %4305 = vrot.lane.b32.xlu0 %v4216, 32
        %v4306 = vpop.permute.xlu0 %4305
        %4307 = vrot.lane.b32.xlu0 %v4217, 32
        %v4308 = vpop.permute.xlu0 %4307
        %4309 = vrot.lane.b32.xlu0 %v4218, 32
        %v4310 = vpop.permute.xlu0 %4309
        %4311 = vrot.lane.b32.xlu0 %v4219, 32
        %v4312 = vpop.permute.xlu0 %4311
        %4313 = vrot.lane.b32.xlu0 %v4220, 32
        %v4314 = vpop.permute.xlu0 %4313
        %4315 = vrot.lane.b32.xlu0 %v4221, 32
        %v4316 = vpop.permute.xlu0 %4315
        %4317 = vrot.lane.b32.xlu0 %v4222, 32
        %v4318 = vpop.permute.xlu0 %4317
        %v4351 = vmul.f32 %v3533, %v4256
        %v4352 = vmul.f32 %v3548, %v4258
        %v4353 = vmul.f32 %v3563, %v4260
        %v4354 = vmul.f32 %v3578, %v4262
        %v4355 = vmul.f32 %v3593, %v4264
        %v4356 = vmul.f32 %v3608, %v4266
        %v4357 = vmul.f32 %v3623, %v4268
        %v4358 = vmul.f32 %v3638, %v4270
        %v4359 = vmul.f32 %v3653, %v4272
        %v4360 = vmul.f32 %v3668, %v4274
        %v4361 = vmul.f32 %v3683, %v4276
        %v4362 = vmul.f32 %v3698, %v4278
        %v4363 = vmul.f32 %v3713, %v4280
        %v4364 = vmul.f32 %v3728, %v4282
        %v4365 = vmul.f32 %v3743, %v4284
        %v4366 = vmul.f32 %v3758, %v4286
        %v4367 = vmul.f32 %v3773, %v4288
        %v4368 = vmul.f32 %v3788, %v4290
        %v4369 = vmul.f32 %v3803, %v4292
        %v4370 = vmul.f32 %v3818, %v4294
        %v4371 = vmul.f32 %v3833, %v4296
        %v4372 = vmul.f32 %v3848, %v4298
        %v4373 = vmul.f32 %v3863, %v4300
        %v4374 = vmul.f32 %v3878, %v4302
        %v4375 = vmul.f32 %v3893, %v4304
        %v4376 = vmul.f32 %v3908, %v4306
        %v4377 = vmul.f32 %v3923, %v4308
        %v4378 = vmul.f32 %v3938, %v4310
        %v4379 = vmul.f32 %v3953, %v4312
        %v4380 = vmul.f32 %v3968, %v4314
        %v4381 = vmul.f32 %v3983, %v4316
        %v4382 = vmul.f32 %v3998, %v4318
        %4415 = vrot.lane.b32.xlu0 %v4351, 96
        %v4416 = vpop.permute.xlu0 %4415
        %4417 = vrot.lane.b32.xlu0 %v4352, 96
        %v4418 = vpop.permute.xlu0 %4417
        %4419 = vrot.lane.b32.xlu0 %v4353, 96
        %v4420 = vpop.permute.xlu0 %4419
        %4421 = vrot.lane.b32.xlu0 %v4354, 96
        %v4422 = vpop.permute.xlu0 %4421
        %4423 = vrot.lane.b32.xlu0 %v4355, 96
        %v4424 = vpop.permute.xlu0 %4423
        %4425 = vrot.lane.b32.xlu0 %v4356, 96
        %v4426 = vpop.permute.xlu0 %4425
        %4427 = vrot.lane.b32.xlu0 %v4357, 96
        %v4428 = vpop.permute.xlu0 %4427
        %4429 = vrot.lane.b32.xlu0 %v4358, 96
        %v4430 = vpop.permute.xlu0 %4429
        %4431 = vrot.lane.b32.xlu0 %v4359, 96
        %v4432 = vpop.permute.xlu0 %4431
        %4433 = vrot.lane.b32.xlu0 %v4360, 96
        %v4434 = vpop.permute.xlu0 %4433
        %4435 = vrot.lane.b32.xlu0 %v4361, 96
        %v4436 = vpop.permute.xlu0 %4435
        %4437 = vrot.lane.b32.xlu0 %v4362, 96
        %v4438 = vpop.permute.xlu0 %4437
        %4439 = vrot.lane.b32.xlu0 %v4363, 96
        %v4440 = vpop.permute.xlu0 %4439
        %4441 = vrot.lane.b32.xlu0 %v4364, 96
        %v4442 = vpop.permute.xlu0 %4441
        %4443 = vrot.lane.b32.xlu0 %v4365, 96
        %v4444 = vpop.permute.xlu0 %4443
        %4445 = vrot.lane.b32.xlu0 %v4366, 96
        %v4446 = vpop.permute.xlu0 %4445
        %4447 = vrot.lane.b32.xlu0 %v4367, 96
        %v4448 = vpop.permute.xlu0 %4447
        %4449 = vrot.lane.b32.xlu0 %v4368, 96
        %v4450 = vpop.permute.xlu0 %4449
        %4451 = vrot.lane.b32.xlu0 %v4369, 96
        %v4452 = vpop.permute.xlu0 %4451
        %4453 = vrot.lane.b32.xlu0 %v4370, 96
        %v4454 = vpop.permute.xlu0 %4453
        %4455 = vrot.lane.b32.xlu0 %v4371, 96
        %v4456 = vpop.permute.xlu0 %4455
        %4457 = vrot.lane.b32.xlu0 %v4372, 96
        %v4458 = vpop.permute.xlu0 %4457
        %4459 = vrot.lane.b32.xlu0 %v4373, 96
        %v4460 = vpop.permute.xlu0 %4459
        %4461 = vrot.lane.b32.xlu0 %v4374, 96
        %v4462 = vpop.permute.xlu0 %4461
        %4463 = vrot.lane.b32.xlu0 %v4375, 96
        %v4464 = vpop.permute.xlu0 %4463
        %4465 = vrot.lane.b32.xlu0 %v4376, 96
        %v4466 = vpop.permute.xlu0 %4465
        %4467 = vrot.lane.b32.xlu0 %v4377, 96
        %v4468 = vpop.permute.xlu0 %4467
        %4469 = vrot.lane.b32.xlu0 %v4378, 96
        %v4470 = vpop.permute.xlu0 %4469
        %4471 = vrot.lane.b32.xlu0 %v4379, 96
        %v4472 = vpop.permute.xlu0 %4471
        %4473 = vrot.lane.b32.xlu0 %v4380, 96
        %v4474 = vpop.permute.xlu0 %4473
        %4475 = vrot.lane.b32.xlu0 %v4381, 96
        %v4476 = vpop.permute.xlu0 %4475
        %4477 = vrot.lane.b32.xlu0 %v4382, 96
        %v4478 = vpop.permute.xlu0 %4477
        %4511 = vst.msk [vmem:[%s262] sm:$0xff] %vm264, %v4416
        %4512 = vst.msk [vmem:[%s262 + $0x8] sm:$0xff] %vm264, %v4418
        %4513 = vst.msk [vmem:[%s262 + $0x10] sm:$0xff] %vm264, %v4420
        %4514 = vst.msk [vmem:[%s262 + $0x18] sm:$0xff] %vm264, %v4422
        %4515 = vst.msk [vmem:[%s262 + $0x20] sm:$0xff] %vm264, %v4424
        %4516 = vst.msk [vmem:[%s262 + $0x28] sm:$0xff] %vm264, %v4426
        %4517 = vst.msk [vmem:[%s262 + $0x30] sm:$0xff] %vm264, %v4428
        %4518 = vst.msk [vmem:[%s262 + $0x38] sm:$0xff] %vm264, %v4430
        %4519 = vst.msk [vmem:[%s262 + $0x40] sm:$0xff] %vm264, %v4432
        %4520 = vst.msk [vmem:[%s262 + $0x48] sm:$0xff] %vm264, %v4434
        %4521 = vst.msk [vmem:[%s262 + $0x50] sm:$0xff] %vm264, %v4436
        %4522 = vst.msk [vmem:[%s262 + $0x58] sm:$0xff] %vm264, %v4438
        %4523 = vst.msk [vmem:[%s262 + $0x60] sm:$0xff] %vm264, %v4440
        %4524 = vst.msk [vmem:[%s262 + $0x68] sm:$0xff] %vm264, %v4442
        %4525 = vst.msk [vmem:[%s262 + $0x70] sm:$0xff] %vm264, %v4444
        %4526 = vst.msk [vmem:[%s262 + $0x78] sm:$0xff] %vm264, %v4446
        %4527 = vst.msk [vmem:[%s262 + $0x80] sm:$0xff] %vm264, %v4448
        %4528 = vst.msk [vmem:[%s262 + $0x88] sm:$0xff] %vm264, %v4450
        %4529 = vst.msk [vmem:[%s262 + $0x90] sm:$0xff] %vm264, %v4452
        %4530 = vst.msk [vmem:[%s262 + $0x98] sm:$0xff] %vm264, %v4454
        %4531 = vst.msk [vmem:[%s262 + $0xa0] sm:$0xff] %vm264, %v4456
        %4532 = vst.msk [vmem:[%s262 + $0xa8] sm:$0xff] %vm264, %v4458
        %4533 = vst.msk [vmem:[%s262 + $0xb0] sm:$0xff] %vm264, %v4460
        %4534 = vst.msk [vmem:[%s262 + $0xb8] sm:$0xff] %vm264, %v4462
        %4535 = vst.msk [vmem:[%s262 + $0xc0] sm:$0xff] %vm264, %v4464
        %4536 = vst.msk [vmem:[%s262 + $0xc8] sm:$0xff] %vm264, %v4466
        %4537 = vst.msk [vmem:[%s262 + $0xd0] sm:$0xff] %vm264, %v4468
        %4538 = vst.msk [vmem:[%s262 + $0xd8] sm:$0xff] %vm264, %v4470
        %4539 = vst.msk [vmem:[%s262 + $0xe0] sm:$0xff] %vm264, %v4472
        %4540 = vst.msk [vmem:[%s262 + $0xe8] sm:$0xff] %vm264, %v4474
        %4541 = vst.msk [vmem:[%s262 + $0xf0] sm:$0xff] %vm264, %v4476
        %4542 = vst.msk [vmem:[%s262 + $0xf8] sm:$0xff] %vm264, %v4478
        %4543 = vst.msk [vmem:[%s252] sm:$0xff] %vm264, %v4159
        %4544 = vst.msk [vmem:[%s252 + $0x8] sm:$0xff] %vm264, %v4160
        %4545 = vst.msk [vmem:[%s252 + $0x10] sm:$0xff] %vm264, %v4161
        %4546 = vst.msk [vmem:[%s252 + $0x18] sm:$0xff] %vm264, %v4162
        %4547 = vst.msk [vmem:[%s252 + $0x20] sm:$0xff] %vm264, %v4163
        %4548 = vst.msk [vmem:[%s252 + $0x28] sm:$0xff] %vm264, %v4164
        %4549 = vst.msk [vmem:[%s252 + $0x30] sm:$0xff] %vm264, %v4165
        %4550 = vst.msk [vmem:[%s252 + $0x38] sm:$0xff] %vm264, %v4166
        %4551 = vst.msk [vmem:[%s252 + $0x40] sm:$0xff] %vm264, %v4167
        %4552 = vst.msk [vmem:[%s252 + $0x48] sm:$0xff] %vm264, %v4168
        %4553 = vst.msk [vmem:[%s252 + $0x50] sm:$0xff] %vm264, %v4169
        %4554 = vst.msk [vmem:[%s252 + $0x58] sm:$0xff] %vm264, %v4170
        %4555 = vst.msk [vmem:[%s252 + $0x60] sm:$0xff] %vm264, %v4171
        %4556 = vst.msk [vmem:[%s252 + $0x68] sm:$0xff] %vm264, %v4172
        %4557 = vst.msk [vmem:[%s252 + $0x70] sm:$0xff] %vm264, %v4173
        %4558 = vst.msk [vmem:[%s252 + $0x78] sm:$0xff] %vm264, %v4174
        %4559 = vst.msk [vmem:[%s252 + $0x80] sm:$0xff] %vm264, %v4175
        %4560 = vst.msk [vmem:[%s252 + $0x88] sm:$0xff] %vm264, %v4176
        %4561 = vst.msk [vmem:[%s252 + $0x90] sm:$0xff] %vm264, %v4177
        %4562 = vst.msk [vmem:[%s252 + $0x98] sm:$0xff] %vm264, %v4178
        %4563 = vst.msk [vmem:[%s252 + $0xa0] sm:$0xff] %vm264, %v4179
        %4564 = vst.msk [vmem:[%s252 + $0xa8] sm:$0xff] %vm264, %v4180
        %4565 = vst.msk [vmem:[%s252 + $0xb0] sm:$0xff] %vm264, %v4181
        %4566 = vst.msk [vmem:[%s252 + $0xb8] sm:$0xff] %vm264, %v4182
        %4567 = vst.msk [vmem:[%s252 + $0xc0] sm:$0xff] %vm264, %v4183
        %4568 = vst.msk [vmem:[%s252 + $0xc8] sm:$0xff] %vm264, %v4184
        %4569 = vst.msk [vmem:[%s252 + $0xd0] sm:$0xff] %vm264, %v4185
        %4570 = vst.msk [vmem:[%s252 + $0xd8] sm:$0xff] %vm264, %v4186
        %4571 = vst.msk [vmem:[%s252 + $0xe0] sm:$0xff] %vm264, %v4187
        %4572 = vst.msk [vmem:[%s252 + $0xe8] sm:$0xff] %vm264, %v4188
        %4573 = vst.msk [vmem:[%s252 + $0xf0] sm:$0xff] %vm264, %v4189
        %4574 = vst.msk [vmem:[%s252 + $0xf8] sm:$0xff] %vm264, %v4190
        %p4575 = scmp.lt.s32.totalorder %s21, 1
        %s4576 = scalar_select %p4575, %s21, 1
        %s4577 = smul.addr %s4576, 32
        %s4578 = smul.addr %s4577, 8
        %s4579 = scalar_lea.vmem %s5, %s4578
        %s4580 = sand.u32 %s165, 1
        %s4581 = scalar_lea.sflag [#allocation4], %s4580
        %s4582 = sand.u32 %s165, 1
        %s4583 = smul.addr %s4582, 256
        %s4584 = scalar_lea.vmem [#allocation3], %s4583
        // Predicated region
        $region41: #{conv_lstm_forward.1} parent=39 // pred_check
          %p4585 = pneg %p149
        $region42: #{conv_lstm_forward.1} parent=39 // pred_check_branch
          %4587 = sbr.rel (%p4585) target = $region44
        $region43: #{conv_lstm_forward.1} parent=39 // pred_region
          _
        $region44: #{conv_lstm_forward.1} parent=39 // pred_fallthru
          _
        // Predicated region
        $region45: #{conv_lstm_forward.1} parent=39 // pred_check
          %p4588 = pneg %p175
        $region46: #{conv_lstm_forward.1} parent=39 // pred_check_branch
          %4590 = sbr.rel (%p4588) target = $region48
        $region47: #{conv_lstm_forward.1} parent=39 // pred_region
          %4592 = vsyncadd %s4581, 0
          %s4593 = smul.addr %s21, 32
          %s4594 = smul.addr %s4593, 8
          %s4595 = scalar_lea.hbm %s6, %s4594
          %s4596 = sshll.u32 %s4584, 4
          %s4597 = int_to_ptr.vmem [resolvable:$true] %s4596
          %s4598 = sshll.u32 %s4595, 4
          %s4599 = int_to_ptr.hbm [resolvable:$true] %s4598
          %4604 = dma.vmem_to_hbm [thread:$0]  %s4597, 4096, %s4599, %s4581, 128, 128, 8
        $region48: #{conv_lstm_forward.1} parent=39 // pred_fallthru
          _
      $region40: #{conv_lstm_forward.1} parent=5 // pred_fallthru
        _
      %p4605 = scmp.le.s32.totalorder 2, %s16
      // Predicated region
      $region49: #{conv_lstm_forward.1} parent=5 // pred_check
        %p4606 = pneg %p4605
      $region50: #{conv_lstm_forward.1} parent=5 // pred_check_branch
        %4608 = sbr.rel (%p4606) target = $region52
      $region51: #{conv_lstm_forward.1} parent=5 // pred_region
        %s4609 = ssub.s32 %s16, 2
        // Predicated region
        $region53: #{conv_lstm_forward.1} parent=51 // pred_check
          %p4610 = pneg %p155
        $region54: #{conv_lstm_forward.1} parent=51 // pred_check_branch
          %4612 = sbr.rel (%p4610) target = $region56
        $region55: #{conv_lstm_forward.1} parent=51 // pred_region
          %p4613 = scmp.lt.s32.totalorder %s22, 1
          %s4614 = scalar_select %p4613, %s22, 1
          %s4615 = smul.addr %s4614, 32
          %s4616 = smul.addr %s4615, 8
          %s4617 = scalar_lea.vmem %s5, %s4616
        $region56: #{conv_lstm_forward.1} parent=51 // pred_fallthru
          _
        // Predicated region
        $region57: #{conv_lstm_forward.1} parent=51 // pred_check
          %p4618 = pneg %p181
        $region58: #{conv_lstm_forward.1} parent=51 // pred_check_branch
          %4620 = sbr.rel (%p4618) target = $region60
        $region59: #{conv_lstm_forward.1} parent=51 // pred_region
          %s4621 = sand.u32 %s166, 1
          %s4622 = scalar_lea.sflag [#allocation4], %s4621
          %s4623 = sand.u32 %s166, 1
          %s4624 = smul.addr %s4623, 256
          %s4625 = scalar_lea.vmem [#allocation3], %s4624
          %4627 = dma.done %s4622, 4096
        $region60: #{conv_lstm_forward.1} parent=51 // pred_fallthru
          _
      $region52: #{conv_lstm_forward.1} parent=5 // pred_fallthru
        _
    $region6: #{conv_lstm_forward.1} parent=1 // loop_footer
      %s20 = sadd.s32 1, %s16
    $region7: #{conv_lstm_forward.1} parent=1 // loop_footer_branch
      %15 = sbr.rel target = $region3
    $region8: #{conv_lstm_forward.1} parent=1 // loop_exit
      _
    %4628 = vsyncpa [#allocation4], 1
    %s4629 = scalar_lea.sflag [#allocation4], 1
    %4630 = vsyncpa %s4629, 1

</llo_original>
